<compile_context>
chip_gen: v7x
topology: tpu7x:2x2x1
jax: 0.10.0
libtpu: 0.0.40
codegen_flags: <defaults>
</compile_context>

<pallas_src>
import jax
import jax.numpy as jnp
from jax import lax
from jax.experimental import pallas as pl
from jax.experimental.pallas import tpu as pltpu

NC = 3
NDF = 64
LEAKY_SLOPE = 0.2
BN_EPS = 1e-5
_CONV_ROW_TILE = 256     # in-kernel M tile (rows of the wide conv output)
_BN_ROW_TILE = 1024      # BN-apply row tile


def _leaky(x):
    return jnp.where(x > 0, x, LEAKY_SLOPE * x)


_VMEM_LIMIT_CACHE = [None]


def _vmem_limit_bytes():
    """Generation-aware scoped-VMEM limit: 64 MiB on 128-MiB parts (v5e/v6e),
    32 MiB on v7x (64 MiB physical); safe fallback if the query fails."""
    if _VMEM_LIMIT_CACHE[0] is None:
        cap = None
        try:
            cap = getattr(pltpu.get_tpu_info(), "vmem_capacity_bytes", None)
        except Exception:
            cap = None
        if not cap:
            limit = 32 * 1024 * 1024
        else:
            limit = int(max(32 * 1024 * 1024, min(cap // 2, 64 * 1024 * 1024)))
        _VMEM_LIMIT_CACHE[0] = limit
    return _VMEM_LIMIT_CACHE[0]


def _row_tiles(lw, tm):
    """Static (start, size) tiles covering lw rows (sizes multiple of tm except last)."""
    if lw <= tm:
        return ((0, lw),)
    tiles = []
    r = 0
    while r < lw:
        t = min(tm, lw - r)
        tiles.append((r, t))
        r += t
    return tuple(tiles)


# ----------------------------------------------------------------------------
# Fused stride-2 4x4 conv kernel.
#
# x_cat is either the parity-channel-concat array [N, (oh+2)*wq, 4*Cin]
# (layers 2/3, 4 tap groups at row offsets {0, 1, wq, wq+1}) or the layer-1
# im2col [N, lw, 16*Cin] (1 group at offset 0).  The conv is G accumulated
# row-shifted bf16 matmuls with an M-tiled, register-resident f32 accumulator.
# Output is "wide": lw = oh*wq rows with wq = ow+1; column (r % wq)==ow is a
# dummy column, sliced away by the caller and masked out of the optional
# BatchNorm statistics (per-channel sum / sum-of-squares from the f32 acc).
# ----------------------------------------------------------------------------
def _conv_wide(x_cat, w_groups, offsets, *, n, lw, cout, leaky, stats,
               y_dtype, wq, ow):
    lq, k4 = x_cat.shape[1], x_cat.shape[2]
    ng = w_groups.shape[0]
    assert ng == len(offsets)
    tiles = _row_tiles(lw, _CONV_ROW_TILE)

    def kernel(*args):
        if stats:
            x_ref, w_ref, mask_ref, y_ref, s_ref, q_ref = args
        else:
            x_ref, w_ref, y_ref = args

        s_acc = None
        q_acc = None
        for (r0, t) in tiles:
            acc = None
            for g in range(ng):
                a = x_ref[0, offsets[g] + r0: offsets[g] + r0 + t, :]   # (t, k4) bf16
                p = jnp.dot(a, w_ref[g], preferred_element_type=jnp.float32)
                acc = p if acc is None else acc + p
            y = _leaky(acc) if leaky else acc
            y_ref[0, r0:r0 + t, :] = y.astype(y_ref.dtype)
            if stats:
                masked = acc * mask_ref[r0:r0 + t, :]                   # zero dummy cols
                s_t = jnp.sum(masked, axis=0, keepdims=True)
                q_t = jnp.sum(masked * acc, axis=0, keepdims=True)
                s_acc = s_t if s_acc is None else s_acc + s_t
                q_acc = q_t if q_acc is None else q_acc + q_t
        if stats:
            s_ref[...] = s_acc.reshape(1, 1, cout)
            q_ref[...] = q_acc.reshape(1, 1, cout)

    inputs = [x_cat, w_groups]
    in_specs = [pl.BlockSpec((1, lq, k4), lambda i: (i, 0, 0)),
                pl.BlockSpec((ng, k4, cout), lambda i: (0, 0, 0))]
    if stats:
        valid = (jnp.arange(lw, dtype=jnp.int32) % wq) < ow
        inputs.append(valid.astype(jnp.float32).reshape(lw, 1))
        in_specs.append(pl.BlockSpec((lw, 1), lambda i: (0, 0)))

    y_shape = jax.ShapeDtypeStruct((n, lw, cout), y_dtype)
    y_spec = pl.BlockSpec((1, lw, cout), lambda i: (i, 0, 0))
    if stats:
        out_shape = (y_shape,
                     jax.ShapeDtypeStruct((n, 1, cout), jnp.float32),
                     jax.ShapeDtypeStruct((n, 1, cout), jnp.float32))
        out_specs = (y_spec,
                     pl.BlockSpec((1, 1, cout), lambda i: (i, 0, 0)),
                     pl.BlockSpec((1, 1, cout), lambda i: (i, 0, 0)))
    else:
        out_shape = y_shape
        out_specs = y_spec

    stat_bytes = (lw * 4 + 2 * n * cout * 4) if stats else 0
    cost = pl.CostEstimate(
        flops=int(2 * n * lw * ng * k4 * cout),
        transcendentals=0,
        bytes_accessed=int(n * lq * k4 * 2 + ng * k4 * cout * 2
                           + n * lw * cout * jnp.dtype(y_dtype).itemsize
                           + stat_bytes))

    return pl.pallas_call(
        kernel,
        out_shape=out_shape,
        grid=(n,),
        in_specs=in_specs,
        out_specs=out_specs,
        compiler_params=pltpu.CompilerParams(
            dimension_semantics=("parallel",),
            vmem_limit_bytes=_vmem_limit_bytes()),
        cost_estimate=cost,
    )(*inputs)


# ----------------------------------------------------------------------------
# Tiled, lane-dense BatchNorm-apply (+ LeakyReLU):  o = leaky(y*scale + shift)
# (applied directly on the wide bf16 conv buffer; math in f32).
# ----------------------------------------------------------------------------
def _bn_leaky_kernel(y_ref, sc_ref, sh_ref, o_ref):
    z = y_ref[...].astype(jnp.float32) * sc_ref[...] + sh_ref[...]
    o_ref[...] = _leaky(z).astype(o_ref.dtype)


def _bn_leaky_apply(y2d, scale, shift, out_dtype):
    m, cout = y2d.shape
    tm = m if m <= _BN_ROW_TILE else _BN_ROW_TILE
    cost = pl.CostEstimate(
        flops=int(4 * m * cout),
        transcendentals=0,
        bytes_accessed=int(m * cout * (y2d.dtype.itemsize
                                       + jnp.dtype(out_dtype).itemsize) + 2 * cout * 4))
    return pl.pallas_call(
        _bn_leaky_kernel,
        out_shape=jax.ShapeDtypeStruct((m, cout), out_dtype),
        grid=(pl.cdiv(m, tm),),
        in_specs=[pl.BlockSpec((tm, cout), lambda i: (i, 0)),
                  pl.BlockSpec((1, cout), lambda i: (0, 0)),
                  pl.BlockSpec((1, cout), lambda i: (0, 0))],
        out_specs=pl.BlockSpec((tm, cout), lambda i: (i, 0)),
        compiler_params=pltpu.CompilerParams(
            dimension_semantics=("parallel",),
            vmem_limit_bytes=_vmem_limit_bytes()),
        cost_estimate=cost,
    )(y2d, scale.reshape(1, cout), shift.reshape(1, cout))


# ----------------------------------------------------------------------------
# Layout glue (plain JAX, single pad per layer) + O(C) BN finalization.
# ----------------------------------------------------------------------------
def _parity_cat(x_nhwc):
    """One (N, (oh+2)*(ow+1), 4*Cin) bf16 array: the 4 (row-parity, col-parity)
    planes of the zero-padded input concatenated along the channel axis.
    Flattened-row stride is wq = ow + 1."""
    n, h, w, c = x_nhwc.shape
    oh, ow = h // 2, w // 2
    xp = jnp.pad(x_nhwc, ((0, 0), (1, 3), (1, 1), (0, 0)))       # (n, 2oh+4, 2ow+2, c)
    xp = xp.reshape(n, oh + 2, 2, ow + 1, 2, c)
    xp = jnp.transpose(xp, (0, 1, 3, 2, 4, 5))                   # (n, oh+2, ow+1, ph, pw, c)
    cat = xp.reshape(n, (oh + 2) * (ow + 1), 4 * c).astype(jnp.bfloat16)
    return cat, oh, ow


def _unwide(y_wide, n, oh, ow, cout):
    return y_wide.reshape(n, oh, ow + 1, cout)[:, :, :ow, :]


def _bn_affine(s, q, gamma, beta, count):
    s = jnp.sum(s.reshape(-1, s.shape[-1]), axis=0)
    q = jnp.sum(q.reshape(-1, q.shape[-1]), axis=0)
    mean = s / count
    var = jnp.maximum(q / count - mean * mean, 0.0)   # biased (training-mode) variance
    scale = gamma * lax.rsqrt(var + BN_EPS)
    shift = beta - mean * scale
    return scale, shift


def _w_groups(w_oihw):
    """(Cout, Cin, 4, 4) -> (4 groups g=dh*2+dw, 4*Cin k=(ph*2+pw)*Cin+c, Cout) bf16,
    matching the channel order of _parity_cat (kh = 2*dh+ph, kw = 2*dw+pw)."""
    cout, cin = w_oihw.shape[0], w_oihw.shape[1]
    wt = jnp.transpose(w_oihw, (2, 3, 1, 0))       # (kh, kw, cin, cout)
    wt = wt.reshape(2, 2, 2, 2, cin, cout)         # (dh, ph, dw, pw, cin, cout)
    wt = jnp.transpose(wt, (0, 2, 1, 3, 4, 5))     # (dh, dw, ph, pw, cin, cout)
    return wt.reshape(4, 4 * cin, cout).astype(jnp.bfloat16)


def prepare_params(params):
    """One-time weight layout prep (transpose/reshape/bf16 cast), outside the hot path."""
    w1g = _w_groups(params["w1"])                  # (4, 4*NC, NDF)
    return {
        "w1": w1g.reshape(1, 16 * NC, NDF),        # layer 1: single K=48 matmul
        "w2": _w_groups(params["w2"]),             # (4, 256, 128)
        "w3": _w_groups(params["w3"]),             # (4, 512, 128)
        "g2": params["g2"].astype(jnp.float32),
        "b2": params["b2"].astype(jnp.float32),
        "g3": params["g3"].astype(jnp.float32),
        "b3": params["b3"].astype(jnp.float32),
    }


# ----------------------------------------------------------------------------
# Full forward pass (NCHW in / NCHW out, NHWC internally).
# ----------------------------------------------------------------------------
def feature_extractor(x_nchw, prep):
    x = jnp.transpose(x_nchw, (0, 2, 3, 1))        # NCHW -> NHWC, once
    n = x.shape[0]

    # -- layer 1: conv + leaky.  Tiny im2col of the 3-channel input -> one K=48 matmul.
    cat, oh, ow = _parity_cat(x)
    wq, lw = ow + 1, oh * (ow + 1)
    offs = (0, 1, wq, wq + 1)
    im2col = jnp.concatenate([cat[:, o:o + lw, :] for o in offs], axis=-1)   # (n, lw, 48)
    y1 = _conv_wide(im2col, prep["w1"], (0,), n=n, lw=lw, cout=NDF,
                    leaky=True, stats=False, y_dtype=jnp.bfloat16, wq=wq, ow=ow)
    x1 = _unwide(y1, n, oh, ow, NDF)

    # -- layer 2: conv (+ f32 batch stats) -> BN + leaky on the wide bf16 buffer.
    cat, oh, ow = _parity_cat(x1)
    wq, lw = ow + 1, oh * (ow + 1)
    y2, s2, q2 = _conv_wide(cat, prep["w2"], (0, 1, wq, wq + 1), n=n, lw=lw,
                            cout=2 * NDF, leaky=False, stats=True,
                            y_dtype=jnp.bfloat16, wq=wq, ow=ow)
    sc2, sh2 = _bn_affine(s2, q2, prep["g2"], prep["b2"], n * oh * ow)
    z2 = _bn_leaky_apply(y2.reshape(n * lw, 2 * NDF), sc2, sh2, jnp.bfloat16)
    x2 = _unwide(z2.reshape(n, lw, 2 * NDF), n, oh, ow, 2 * NDF)

    # -- layer 3: conv (+ f32 batch stats) -> BN + leaky -> f32 final output.
    cat, oh, ow = _parity_cat(x2)
    wq, lw = ow + 1, oh * (ow + 1)
    y3, s3, q3 = _conv_wide(cat, prep["w3"], (0, 1, wq, wq + 1), n=n, lw=lw,
                            cout=2 * NDF, leaky=False, stats=True,
                            y_dtype=jnp.bfloat16, wq=wq, ow=ow)
    sc3, sh3 = _bn_affine(s3, q3, prep["g3"], prep["b3"], n * oh * ow)
    z3 = _bn_leaky_apply(y3.reshape(n * lw, 2 * NDF), sc3, sh3, jnp.float32)
    x3 = _unwide(z3.reshape(n, lw, 2 * NDF), n, oh, ow, 2 * NDF)

    return jnp.transpose(x3, (0, 3, 1, 2))         # NHWC -> NCHW, once


# ----------------------------------------------------------------------------
# Pure-JAX reference (PyTorch training-mode semantics) for the in-script check.
# ----------------------------------------------------------------------------
def reference(x_nchw, params):
    def conv(x, w):
        return lax.conv_general_dilated(
            x, w, (2, 2), ((1, 1), (1, 1)),
            dimension_numbers=("NCHW", "OIHW", "NCHW"),
            precision=lax.Precision.HIGHEST)

    def bn(x, g, b):
        mean = x.mean(axis=(0, 2, 3), keepdims=True)
        var = ((x - mean) ** 2).mean(axis=(0, 2, 3), keepdims=True)
        return ((x - mean) * lax.rsqrt(var + BN_EPS)
                * g.reshape(1, -1, 1, 1) + b.reshape(1, -1, 1, 1))

    y = _leaky(conv(x_nchw, params["w1"]))
    y = _leaky(bn(conv(y, params["w2"]), params["g2"], params["b2"]))
    y = _leaky(bn(conv(y, params["w3"]), params["g3"], params["b3"]))
    return y


def init_params(key):
    k1, k2, k3 = jax.random.split(key, 3)
    return {
        "w1": 0.05 * jax.random.normal(k1, (NDF, NC, 4, 4), jnp.float32),
        "w2": 0.05 * jax.random.normal(k2, (NDF * 2, NDF, 4, 4), jnp.float32),
        "w3": 0.05 * jax.random.normal(k3, (NDF * 2, NDF * 2, 4, 4), jnp.float32),
        "g2": jnp.ones((NDF * 2,), jnp.float32),
        "b2": jnp.zeros((NDF * 2,), jnp.float32),
        "g3": jnp.ones((NDF * 2,), jnp.float32),
        "b3": jnp.zeros((NDF * 2,), jnp.float32),
    }


if __name__ == "__main__":
    key = jax.random.PRNGKey(0)
    kx, kp = jax.random.split(key)
    x = jax.random.normal(kx, (2, NC, 16, 16), jnp.float32)    # NCHW input
    params = init_params(kp)
    prep = prepare_params(params)                              # one-time weight prep

    fwd = jax.jit(feature_extractor)
    out = jax.block_until_ready(fwd(x, prep))
    assert out.shape == (2, NDF * 2, 2, 2), out.shape

    ref = jax.block_until_ready(reference(x, params))
    # bf16 MXU inputs + bf16 wide intermediates (f32 accumulation / f32 BN stats)
    # vs a Precision.HIGHEST f32 reference: validated at a relaxed 3e-2 tolerance.
    err = float(jnp.max(jnp.abs(out - ref)))
    assert jnp.allclose(out, ref, atol=3e-2, rtol=3e-2), err

    print("KERNEL_OK")
</pallas_src>

<mosaic_0001>
module attributes {stable_mosaic.version = 11 : i64} {
  func.func @kernel(%arg0: i32, %arg1: memref<1x72x48xbf16, #tpu.memory_space<vmem>>, %arg2: memref<1x48x64xbf16, #tpu.memory_space<vmem>>, %arg3: memref<1x72x64xbf16, #tpu.memory_space<vmem>>) attributes {dimension_semantics = [#tpu.dimension_semantics<parallel>], iteration_bounds = array<i64: 2>, scalar_prefetch = 0 : i64, scratch_operands = 0 : i64, tpu.core_type = #tpu.core_type<tc>, window_params = [{transform_indices = @transform_0, window_bounds = array<i64: 1, 72, 48>}, {pipeline_mode = #tpu.pipeline_mode<synchronous>, transform_indices = @transform_1, window_bounds = array<i64: 1, 48, 64>}, {transform_indices = @transform_2, window_bounds = array<i64: 1, 72, 64>}]} {
    %c0 = arith.constant 0 : index
    %c0_0 = arith.constant 0 : index
    %c0_1 = arith.constant 0 : index
    %0 = vector.load %arg1[%c0, %c0_0, %c0_1] : memref<1x72x48xbf16, #tpu.memory_space<vmem>>, vector<1x72x48xbf16>
    %1 = vector.shape_cast %0 : vector<1x72x48xbf16> to vector<72x48xbf16>
    %c0_2 = arith.constant 0 : index
    %c0_3 = arith.constant 0 : index
    %c0_4 = arith.constant 0 : index
    %2 = vector.load %arg2[%c0_2, %c0_3, %c0_4] : memref<1x48x64xbf16, #tpu.memory_space<vmem>>, vector<1x48x64xbf16>
    %3 = vector.shape_cast %2 : vector<1x48x64xbf16> to vector<48x64xbf16>
    %cst = arith.constant dense<0.000000e+00> : vector<72x64xf32>
    %4 = tpu.matmul %1, %3, %cst {dimension_numbers = #tpu.dot_dimension_numbers<[1], [0], [0], [1], [0, 0, 1, 1], [], []>} : vector<72x48xbf16>, vector<48x64xbf16>, vector<72x64xf32> -> vector<72x64xf32>
    %cst_5 = arith.constant 0.000000e+00 : f32
    %5 = vector.broadcast %cst_5 : f32 to vector<72x64xf32>
    %6 = arith.cmpf ogt, %4, %5 : vector<72x64xf32>
    %cst_6 = arith.constant 2.000000e-01 : f32
    %7 = vector.broadcast %cst_6 : f32 to vector<72x64xf32>
    %8 = arith.mulf %7, %4 : vector<72x64xf32>
    %9 = arith.select %6, %4, %8 : vector<72x64xi1>, vector<72x64xf32>
    %10 = arith.truncf %9 : vector<72x64xf32> to vector<72x64xbf16>
    %c0_7 = arith.constant 0 : index
    %c0_8 = arith.constant 0 : index
    %c0_9 = arith.constant 0 : index
    %11 = vector.load %arg3[%c0_7, %c0_8, %c0_9] : memref<1x72x64xbf16, #tpu.memory_space<vmem>>, vector<1x72x64xbf16>
    %12 = vector.shape_cast %11 : vector<1x72x64xbf16> to vector<72x64xbf16>
    %13 = vector.shape_cast %10 : vector<72x64xbf16> to vector<1x72x64xbf16>
    tpu.vector_store %arg3[%c0_7, %c0_8, %c0_9], %13 {strides = array<i32>} : memref<1x72x64xbf16, #tpu.memory_space<vmem>>, vector<1x72x64xbf16>,
    return
  }
  func.func @transform_0(%arg0: i32) -> (i32, i32, i32) {
    %c0_i32 = arith.constant 0 : i32
    %c0_i32_0 = arith.constant 0 : i32
    %c0_i32_1 = arith.constant 0 : i32
    return %arg0, %c0_i32, %c0_i32_0 : i32, i32, i32
  }
  func.func @transform_1(%arg0: i32) -> (i32, i32, i32) {
    %c0_i32 = arith.constant 0 : i32
    %c0_i32_0 = arith.constant 0 : i32
    %c0_i32_1 = arith.constant 0 : i32
    %c0_i32_2 = arith.constant 0 : i32
    return %c0_i32, %c0_i32_0, %c0_i32_1 : i32, i32, i32
  }
  func.func @transform_2(%arg0: i32) -> (i32, i32, i32) {
    %c0_i32 = arith.constant 0 : i32
    %c0_i32_0 = arith.constant 0 : i32
    %c0_i32_1 = arith.constant 0 : i32
    return %arg0, %c0_i32, %c0_i32_0 : i32, i32, i32
  }
}

module attributes {stable_mosaic.version = 11 : i64} {
  func.func @kernel(%arg0: i32, %arg1: memref<1x30x256xbf16, #tpu.memory_space<vmem>>, %arg2: memref<4x256x128xbf16, #tpu.memory_space<vmem>>, %arg3: memref<20x1xf32, #tpu.memory_space<vmem>>, %arg4: memref<1x20x128xbf16, #tpu.memory_space<vmem>>, %arg5: memref<1x1x128xf32, #tpu.memory_space<vmem>>, %arg6: memref<1x1x128xf32, #tpu.memory_space<vmem>>) attributes {dimension_semantics = [#tpu.dimension_semantics<parallel>], iteration_bounds = array<i64: 2>, scalar_prefetch = 0 : i64, scratch_operands = 0 : i64, tpu.core_type = #tpu.core_type<tc>, window_params = [{transform_indices = @transform_0, window_bounds = array<i64: 1, 30, 256>}, {pipeline_mode = #tpu.pipeline_mode<synchronous>, transform_indices = @transform_1, window_bounds = array<i64: 4, 256, 128>}, {pipeline_mode = #tpu.pipeline_mode<synchronous>, transform_indices = @transform_2, window_bounds = array<i64: 20, 1>}, {transform_indices = @transform_3, window_bounds = array<i64: 1, 20, 128>}, {transform_indices = @transform_4, window_bounds = array<i64: 1, 1, 128>}, {transform_indices = @transform_5, window_bounds = array<i64: 1, 1, 128>}]} {
    %c0 = arith.constant 0 : index
    %c0_0 = arith.constant 0 : index
    %c0_1 = arith.constant 0 : index
    %0 = vector.load %arg1[%c0, %c0_0, %c0_1] : memref<1x30x256xbf16, #tpu.memory_space<vmem>>, vector<1x20x256xbf16>
    %1 = vector.shape_cast %0 : vector<1x20x256xbf16> to vector<20x256xbf16>
    %c0_2 = arith.constant 0 : index
    %c0_3 = arith.constant 0 : index
    %c0_4 = arith.constant 0 : index
    %2 = vector.load %arg2[%c0_2, %c0_3, %c0_4] : memref<4x256x128xbf16, #tpu.memory_space<vmem>>, vector<1x256x128xbf16>
    %3 = vector.shape_cast %2 : vector<1x256x128xbf16> to vector<256x128xbf16>
    %cst = arith.constant dense<0.000000e+00> : vector<20x128xf32>
    %4 = tpu.matmul %1, %3, %cst {dimension_numbers = #tpu.dot_dimension_numbers<[1], [0], [0], [1], [0, 0, 1, 1], [], []>} : vector<20x256xbf16>, vector<256x128xbf16>, vector<20x128xf32> -> vector<20x128xf32>
    %c0_5 = arith.constant 0 : index
    %c1 = arith.constant 1 : index
    %c0_6 = arith.constant 0 : index
    %5 = vector.load %arg1[%c0_5, %c1, %c0_6] : memref<1x30x256xbf16, #tpu.memory_space<vmem>>, vector<1x20x256xbf16>
    %6 = vector.shape_cast %5 : vector<1x20x256xbf16> to vector<20x256xbf16>
    %c1_7 = arith.constant 1 : index
    %c0_8 = arith.constant 0 : index
    %c0_9 = arith.constant 0 : index
    %7 = vector.load %arg2[%c1_7, %c0_8, %c0_9] : memref<4x256x128xbf16, #tpu.memory_space<vmem>>, vector<1x256x128xbf16>
    %8 = vector.shape_cast %7 : vector<1x256x128xbf16> to vector<256x128xbf16>
    %cst_10 = arith.constant dense<0.000000e+00> : vector<20x128xf32>
    %9 = tpu.matmul %6, %8, %cst_10 {dimension_numbers = #tpu.dot_dimension_numbers<[1], [0], [0], [1], [0, 0, 1, 1], [], []>} : vector<20x256xbf16>, vector<256x128xbf16>, vector<20x128xf32> -> vector<20x128xf32>
    %10 = arith.addf %4, %9 : vector<20x128xf32>
    %c0_11 = arith.constant 0 : index
    %c5 = arith.constant 5 : index
    %c0_12 = arith.constant 0 : index
    %11 = vector.load %arg1[%c0_11, %c5, %c0_12] : memref<1x30x256xbf16, #tpu.memory_space<vmem>>, vector<1x20x256xbf16>
    %12 = vector.shape_cast %11 : vector<1x20x256xbf16> to vector<20x256xbf16>
    %c2 = arith.constant 2 : index
    %c0_13 = arith.constant 0 : index
    %c0_14 = arith.constant 0 : index
    %13 = vector.load %arg2[%c2, %c0_13, %c0_14] : memref<4x256x128xbf16, #tpu.memory_space<vmem>>, vector<1x256x128xbf16>
    %14 = vector.shape_cast %13 : vector<1x256x128xbf16> to vector<256x128xbf16>
    %cst_15 = arith.constant dense<0.000000e+00> : vector<20x128xf32>
    %15 = tpu.matmul %12, %14, %cst_15 {dimension_numbers = #tpu.dot_dimension_numbers<[1], [0], [0], [1], [0, 0, 1, 1], [], []>} : vector<20x256xbf16>, vector<256x128xbf16>, vector<20x128xf32> -> vector<20x128xf32>
    %16 = arith.addf %10, %15 : vector<20x128xf32>
    %c0_16 = arith.constant 0 : index
    %c6 = arith.constant 6 : index
    %c0_17 = arith.constant 0 : index
    %17 = vector.load %arg1[%c0_16, %c6, %c0_17] : memref<1x30x256xbf16, #tpu.memory_space<vmem>>, vector<1x20x256xbf16>
    %18 = vector.shape_cast %17 : vector<1x20x256xbf16> to vector<20x256xbf16>
    %c3 = arith.constant 3 : index
    %c0_18 = arith.constant 0 : index
    %c0_19 = arith.constant 0 : index
    %19 = vector.load %arg2[%c3, %c0_18, %c0_19] : memref<4x256x128xbf16, #tpu.memory_space<vmem>>, vector<1x256x128xbf16>
    %20 = vector.shape_cast %19 : vector<1x256x128xbf16> to vector<256x128xbf16>
    %cst_20 = arith.constant dense<0.000000e+00> : vector<20x128xf32>
    %21 = tpu.matmul %18, %20, %cst_20 {dimension_numbers = #tpu.dot_dimension_numbers<[1], [0], [0], [1], [0, 0, 1, 1], [], []>} : vector<20x256xbf16>, vector<256x128xbf16>, vector<20x128xf32> -> vector<20x128xf32>
    %22 = arith.addf %16, %21 : vector<20x128xf32>
    %23 = arith.truncf %22 : vector<20x128xf32> to vector<20x128xbf16>
    %c0_21 = arith.constant 0 : index
    %c0_22 = arith.constant 0 : index
    %c0_23 = arith.constant 0 : index
    %24 = vector.load %arg4[%c0_21, %c0_22, %c0_23] : memref<1x20x128xbf16, #tpu.memory_space<vmem>>, vector<1x20x128xbf16>
    %25 = vector.shape_cast %24 : vector<1x20x128xbf16> to vector<20x128xbf16>
    %26 = vector.shape_cast %23 : vector<20x128xbf16> to vector<1x20x128xbf16>
    tpu.vector_store %arg4[%c0_21, %c0_22, %c0_23], %26 {strides = array<i32>} : memref<1x20x128xbf16, #tpu.memory_space<vmem>>, vector<1x20x128xbf16>,
    %c0_24 = arith.constant 0 : index
    %c0_25 = arith.constant 0 : index
    %27 = vector.load %arg3[%c0_24, %c0_25] : memref<20x1xf32, #tpu.memory_space<vmem>>, vector<20x1xf32>
    %28 = vector.broadcast %27 : vector<20x1xf32> to vector<20x128xf32>
    %29 = arith.mulf %22, %28 : vector<20x128xf32>
    %cst_26 = arith.constant dense<0.000000e+00> : vector<128xf32>
    %30 = vector.multi_reduction <add>, %29, %cst_26 [0] : vector<20x128xf32> to vector<128xf32>
    %31 = vector.shape_cast %30 : vector<128xf32> to vector<1x128xf32>
    %32 = arith.mulf %29, %22 : vector<20x128xf32>
    %cst_27 = arith.constant dense<0.000000e+00> : vector<128xf32>
    %33 = vector.multi_reduction <add>, %32, %cst_27 [0] : vector<20x128xf32> to vector<128xf32>
    %34 = vector.shape_cast %33 : vector<128xf32> to vector<1x128xf32>
    %35 = vector.shape_cast %31 : vector<1x128xf32> to vector<1x1x128xf32>
    %c0_28 = arith.constant 0 : index
    %c0_29 = arith.constant 0 : index
    %c0_30 = arith.constant 0 : index
    %36 = vector.load %arg5[%c0_28, %c0_29, %c0_30] : memref<1x1x128xf32, #tpu.memory_space<vmem>>, vector<1x1x128xf32>
    tpu.vector_store %arg5[%c0_28, %c0_29, %c0_30], %35 {strides = array<i32>} : memref<1x1x128xf32, #tpu.memory_space<vmem>>, vector<1x1x128xf32>,
    %37 = vector.shape_cast %34 : vector<1x128xf32> to vector<1x1x128xf32>
    %c0_31 = arith.constant 0 : index
    %c0_32 = arith.constant 0 : index
    %c0_33 = arith.constant 0 : index
    %38 = vector.load %arg6[%c0_31, %c0_32, %c0_33] : memref<1x1x128xf32, #tpu.memory_space<vmem>>, vector<1x1x128xf32>
    tpu.vector_store %arg6[%c0_31, %c0_32, %c0_33], %37 {strides = array<i32>} : memref<1x1x128xf32, #tpu.memory_space<vmem>>, vector<1x1x128xf32>,
    return
  }
  func.func @transform_0(%arg0: i32) -> (i32, i32, i32) {
    %c0_i32 = arith.constant 0 : i32
    %c0_i32_0 = arith.constant 0 : i32
    %c0_i32_1 = arith.constant 0 : i32
    return %arg0, %c0_i32, %c0_i32_0 : i32, i32, i32
  }
  func.func @transform_1(%arg0: i32) -> (i32, i32, i32) {
    %c0_i32 = arith.constant 0 : i32
    %c0_i32_0 = arith.constant 0 : i32
    %c0_i32_1 = arith.constant 0 : i32
    %c0_i32_2 = arith.constant 0 : i32
    return %c0_i32, %c0_i32_0, %c0_i32_1 : i32, i32, i32
  }
  func.func @transform_2(%arg0: i32) -> (i32, i32) {
    %c0_i32 = arith.constant 0 : i32
    %c0_i32_0 = arith.constant 0 : i32
    %c0_i32_1 = arith.constant 0 : i32
    return %c0_i32, %c0_i32_0 : i32, i32
  }
  func.func @transform_3(%arg0: i32) -> (i32, i32, i32) {
    %c0_i32 = arith.constant 0 : i32
    %c0_i32_0 = arith.constant 0 : i32
    %c0_i32_1 = arith.constant 0 : i32
    return %arg0, %c0_i32, %c0_i32_0 : i32, i32, i32
  }
  func.func @transform_4(%arg0: i32) -> (i32, i32, i32) {
    %c0_i32 = arith.constant 0 : i32
    %c0_i32_0 = arith.constant 0 : i32
    %c0_i32_1 = arith.constant 0 : i32
    return %arg0, %c0_i32, %c0_i32_0 : i32, i32, i32
  }
  func.func @transform_5(%arg0: i32) -> (i32, i32, i32) {
    %c0_i32 = arith.constant 0 : i32
    %c0_i32_0 = arith.constant 0 : i32
    %c0_i32_1 = arith.constant 0 : i32
    return %arg0, %c0_i32, %c0_i32_0 : i32, i32, i32
  }
}

module attributes {stable_mosaic.version = 11 : i64} {
  func.func @_bn_leaky_kernel(%arg0: i32, %arg1: memref<40x128xbf16, #tpu.memory_space<vmem>>, %arg2: memref<1x128xf32, #tpu.memory_space<vmem>>, %arg3: memref<1x128xf32, #tpu.memory_space<vmem>>, %arg4: memref<40x128xbf16, #tpu.memory_space<vmem>>) attributes {dimension_semantics = [#tpu.dimension_semantics<parallel>], iteration_bounds = array<i64: 1>, scalar_prefetch = 0 : i64, scratch_operands = 0 : i64, tpu.core_type = #tpu.core_type<tc>, window_params = [{transform_indices = @transform_0, window_bounds = array<i64: 40, 128>}, {pipeline_mode = #tpu.pipeline_mode<synchronous>, transform_indices = @transform_1, window_bounds = array<i64: 1, 128>}, {pipeline_mode = #tpu.pipeline_mode<synchronous>, transform_indices = @transform_2, window_bounds = array<i64: 1, 128>}, {transform_indices = @transform_3, window_bounds = array<i64: 40, 128>}]} {
    %c0 = arith.constant 0 : index
    %c0_0 = arith.constant 0 : index
    %0 = vector.load %arg1[%c0, %c0_0] : memref<40x128xbf16, #tpu.memory_space<vmem>>, vector<40x128xbf16>
    %1 = arith.extf %0 : vector<40x128xbf16> to vector<40x128xf32>
    %c0_1 = arith.constant 0 : index
    %c0_2 = arith.constant 0 : index
    %2 = vector.load %arg2[%c0_1, %c0_2] : memref<1x128xf32, #tpu.memory_space<vmem>>, vector<1x128xf32>
    %3 = vector.broadcast %2 : vector<1x128xf32> to vector<40x128xf32>
    %4 = arith.mulf %1, %3 : vector<40x128xf32>
    %c0_3 = arith.constant 0 : index
    %c0_4 = arith.constant 0 : index
    %5 = vector.load %arg3[%c0_3, %c0_4] : memref<1x128xf32, #tpu.memory_space<vmem>>, vector<1x128xf32>
    %6 = vector.broadcast %5 : vector<1x128xf32> to vector<40x128xf32>
    %7 = arith.addf %4, %6 : vector<40x128xf32>
    %cst = arith.constant 0.000000e+00 : f32
    %8 = vector.broadcast %cst : f32 to vector<40x128xf32>
    %9 = arith.cmpf ogt, %7, %8 : vector<40x128xf32>
    %cst_5 = arith.constant 2.000000e-01 : f32
    %10 = vector.broadcast %cst_5 : f32 to vector<40x128xf32>
    %11 = arith.mulf %10, %7 : vector<40x128xf32>
    %12 = arith.select %9, %7, %11 : vector<40x128xi1>, vector<40x128xf32>
    %13 = arith.truncf %12 : vector<40x128xf32> to vector<40x128xbf16>
    %c0_6 = arith.constant 0 : index
    %c0_7 = arith.constant 0 : index
    %14 = vector.load %arg4[%c0_6, %c0_7] : memref<40x128xbf16, #tpu.memory_space<vmem>>, vector<40x128xbf16>
    tpu.vector_store %arg4[%c0_6, %c0_7], %13 {strides = array<i32>} : memref<40x128xbf16, #tpu.memory_space<vmem>>, vector<40x128xbf16>,
    return
  }
  func.func @transform_0(%arg0: i32) -> (i32, i32) {
    %c0_i32 = arith.constant 0 : i32
    %c0_i32_0 = arith.constant 0 : i32
    return %arg0, %c0_i32 : i32, i32
  }
  func.func @transform_1(%arg0: i32) -> (i32, i32) {
    %c0_i32 = arith.constant 0 : i32
    %c0_i32_0 = arith.constant 0 : i32
    %c0_i32_1 = arith.constant 0 : i32
    return %c0_i32, %c0_i32_0 : i32, i32
  }
  func.func @transform_2(%arg0: i32) -> (i32, i32) {
    %c0_i32 = arith.constant 0 : i32
    %c0_i32_0 = arith.constant 0 : i32
    %c0_i32_1 = arith.constant 0 : i32
    return %c0_i32, %c0_i32_0 : i32, i32
  }
  func.func @transform_3(%arg0: i32) -> (i32, i32) {
    %c0_i32 = arith.constant 0 : i32
    %c0_i32_0 = arith.constant 0 : i32
    return %arg0, %c0_i32 : i32, i32
  }
}

module attributes {stable_mosaic.version = 11 : i64} {
  func.func @_bn_leaky_kernel(%arg0: i32, %arg1: memref<12x128xbf16, #tpu.memory_space<vmem>>, %arg2: memref<1x128xf32, #tpu.memory_space<vmem>>, %arg3: memref<1x128xf32, #tpu.memory_space<vmem>>, %arg4: memref<12x128xf32, #tpu.memory_space<vmem>>) attributes {dimension_semantics = [#tpu.dimension_semantics<parallel>], iteration_bounds = array<i64: 1>, scalar_prefetch = 0 : i64, scratch_operands = 0 : i64, tpu.core_type = #tpu.core_type<tc>, window_params = [{transform_indices = @transform_0, window_bounds = array<i64: 12, 128>}, {pipeline_mode = #tpu.pipeline_mode<synchronous>, transform_indices = @transform_1, window_bounds = array<i64: 1, 128>}, {pipeline_mode = #tpu.pipeline_mode<synchronous>, transform_indices = @transform_2, window_bounds = array<i64: 1, 128>}, {transform_indices = @transform_3, window_bounds = array<i64: 12, 128>}]} {
    %c0 = arith.constant 0 : index
    %c0_0 = arith.constant 0 : index
    %0 = vector.load %arg1[%c0, %c0_0] : memref<12x128xbf16, #tpu.memory_space<vmem>>, vector<12x128xbf16>
    %1 = arith.extf %0 : vector<12x128xbf16> to vector<12x128xf32>
    %c0_1 = arith.constant 0 : index
    %c0_2 = arith.constant 0 : index
    %2 = vector.load %arg2[%c0_1, %c0_2] : memref<1x128xf32, #tpu.memory_space<vmem>>, vector<1x128xf32>
    %3 = vector.broadcast %2 : vector<1x128xf32> to vector<12x128xf32>
    %4 = arith.mulf %1, %3 : vector<12x128xf32>
    %c0_3 = arith.constant 0 : index
    %c0_4 = arith.constant 0 : index
    %5 = vector.load %arg3[%c0_3, %c0_4] : memref<1x128xf32, #tpu.memory_space<vmem>>, vector<1x128xf32>
    %6 = vector.broadcast %5 : vector<1x128xf32> to vector<12x128xf32>
    %7 = arith.addf %4, %6 : vector<12x128xf32>
    %cst = arith.constant 0.000000e+00 : f32
    %8 = vector.broadcast %cst : f32 to vector<12x128xf32>
    %9 = arith.cmpf ogt, %7, %8 : vector<12x128xf32>
    %cst_5 = arith.constant 2.000000e-01 : f32
    %10 = vector.broadcast %cst_5 : f32 to vector<12x128xf32>
    %11 = arith.mulf %10, %7 : vector<12x128xf32>
    %12 = arith.select %9, %7, %11 : vector<12x128xi1>, vector<12x128xf32>
    %c0_6 = arith.constant 0 : index
    %c0_7 = arith.constant 0 : index
    %13 = vector.load %arg4[%c0_6, %c0_7] : memref<12x128xf32, #tpu.memory_space<vmem>>, vector<12x128xf32>
    tpu.vector_store %arg4[%c0_6, %c0_7], %12 {strides = array<i32>} : memref<12x128xf32, #tpu.memory_space<vmem>>, vector<12x128xf32>,
    return
  }
  func.func @transform_0(%arg0: i32) -> (i32, i32) {
    %c0_i32 = arith.constant 0 : i32
    %c0_i32_0 = arith.constant 0 : i32
    return %arg0, %c0_i32 : i32, i32
  }
  func.func @transform_1(%arg0: i32) -> (i32, i32) {
    %c0_i32 = arith.constant 0 : i32
    %c0_i32_0 = arith.constant 0 : i32
    %c0_i32_1 = arith.constant 0 : i32
    return %c0_i32, %c0_i32_0 : i32, i32
  }
  func.func @transform_2(%arg0: i32) -> (i32, i32) {
    %c0_i32 = arith.constant 0 : i32
    %c0_i32_0 = arith.constant 0 : i32
    %c0_i32_1 = arith.constant 0 : i32
    return %c0_i32, %c0_i32_0 : i32, i32
  }
  func.func @transform_3(%arg0: i32) -> (i32, i32) {
    %c0_i32 = arith.constant 0 : i32
    %c0_i32_0 = arith.constant 0 : i32
    return %arg0, %c0_i32 : i32, i32
  }
}

module attributes {stable_mosaic.version = 11 : i64} {
  func.func @kernel(%arg0: i32, %arg1: memref<1x12x512xbf16, #tpu.memory_space<vmem>>, %arg2: memref<4x512x128xbf16, #tpu.memory_space<vmem>>, %arg3: memref<6x1xf32, #tpu.memory_space<vmem>>, %arg4: memref<1x6x128xbf16, #tpu.memory_space<vmem>>, %arg5: memref<1x1x128xf32, #tpu.memory_space<vmem>>, %arg6: memref<1x1x128xf32, #tpu.memory_space<vmem>>) attributes {dimension_semantics = [#tpu.dimension_semantics<parallel>], iteration_bounds = array<i64: 2>, scalar_prefetch = 0 : i64, scratch_operands = 0 : i64, tpu.core_type = #tpu.core_type<tc>, window_params = [{transform_indices = @transform_0, window_bounds = array<i64: 1, 12, 512>}, {pipeline_mode = #tpu.pipeline_mode<synchronous>, transform_indices = @transform_1, window_bounds = array<i64: 4, 512, 128>}, {pipeline_mode = #tpu.pipeline_mode<synchronous>, transform_indices = @transform_2, window_bounds = array<i64: 6, 1>}, {transform_indices = @transform_3, window_bounds = array<i64: 1, 6, 128>}, {transform_indices = @transform_4, window_bounds = array<i64: 1, 1, 128>}, {transform_indices = @transform_5, window_bounds = array<i64: 1, 1, 128>}]} {
    %c0 = arith.constant 0 : index
    %c0_0 = arith.constant 0 : index
    %c0_1 = arith.constant 0 : index
    %0 = vector.load %arg1[%c0, %c0_0, %c0_1] : memref<1x12x512xbf16, #tpu.memory_space<vmem>>, vector<1x6x512xbf16>
    %1 = vector.shape_cast %0 : vector<1x6x512xbf16> to vector<6x512xbf16>
    %c0_2 = arith.constant 0 : index
    %c0_3 = arith.constant 0 : index
    %c0_4 = arith.constant 0 : index
    %2 = vector.load %arg2[%c0_2, %c0_3, %c0_4] : memref<4x512x128xbf16, #tpu.memory_space<vmem>>, vector<1x512x128xbf16>
    %3 = vector.shape_cast %2 : vector<1x512x128xbf16> to vector<512x128xbf16>
    %cst = arith.constant dense<0.000000e+00> : vector<6x128xf32>
    %4 = tpu.matmul %1, %3, %cst {dimension_numbers = #tpu.dot_dimension_numbers<[1], [0], [0], [1], [0, 0, 1, 1], [], []>} : vector<6x512xbf16>, vector<512x128xbf16>, vector<6x128xf32> -> vector<6x128xf32>
    %c0_5 = arith.constant 0 : index
    %c1 = arith.constant 1 : index
    %c0_6 = arith.constant 0 : index
    %5 = vector.load %arg1[%c0_5, %c1, %c0_6] : memref<1x12x512xbf16, #tpu.memory_space<vmem>>, vector<1x6x512xbf16>
    %6 = vector.shape_cast %5 : vector<1x6x512xbf16> to vector<6x512xbf16>
    %c1_7 = arith.constant 1 : index
    %c0_8 = arith.constant 0 : index
    %c0_9 = arith.constant 0 : index
    %7 = vector.load %arg2[%c1_7, %c0_8, %c0_9] : memref<4x512x128xbf16, #tpu.memory_space<vmem>>, vector<1x512x128xbf16>
    %8 = vector.shape_cast %7 : vector<1x512x128xbf16> to vector<512x128xbf16>
    %cst_10 = arith.constant dense<0.000000e+00> : vector<6x128xf32>
    %9 = tpu.matmul %6, %8, %cst_10 {dimension_numbers = #tpu.dot_dimension_numbers<[1], [0], [0], [1], [0, 0, 1, 1], [], []>} : vector<6x512xbf16>, vector<512x128xbf16>, vector<6x128xf32> -> vector<6x128xf32>
    %10 = arith.addf %4, %9 : vector<6x128xf32>
    %c0_11 = arith.constant 0 : index
    %c3 = arith.constant 3 : index
    %c0_12 = arith.constant 0 : index
    %11 = vector.load %arg1[%c0_11, %c3, %c0_12] : memref<1x12x512xbf16, #tpu.memory_space<vmem>>, vector<1x6x512xbf16>
    %12 = vector.shape_cast %11 : vector<1x6x512xbf16> to vector<6x512xbf16>
    %c2 = arith.constant 2 : index
    %c0_13 = arith.constant 0 : index
    %c0_14 = arith.constant 0 : index
    %13 = vector.load %arg2[%c2, %c0_13, %c0_14] : memref<4x512x128xbf16, #tpu.memory_space<vmem>>, vector<1x512x128xbf16>
    %14 = vector.shape_cast %13 : vector<1x512x128xbf16> to vector<512x128xbf16>
    %cst_15 = arith.constant dense<0.000000e+00> : vector<6x128xf32>
    %15 = tpu.matmul %12, %14, %cst_15 {dimension_numbers = #tpu.dot_dimension_numbers<[1], [0], [0], [1], [0, 0, 1, 1], [], []>} : vector<6x512xbf16>, vector<512x128xbf16>, vector<6x128xf32> -> vector<6x128xf32>
    %16 = arith.addf %10, %15 : vector<6x128xf32>
    %c0_16 = arith.constant 0 : index
    %c4 = arith.constant 4 : index
    %c0_17 = arith.constant 0 : index
    %17 = vector.load %arg1[%c0_16, %c4, %c0_17] : memref<1x12x512xbf16, #tpu.memory_space<vmem>>, vector<1x6x512xbf16>
    %18 = vector.shape_cast %17 : vector<1x6x512xbf16> to vector<6x512xbf16>
    %c3_18 = arith.constant 3 : index
    %c0_19 = arith.constant 0 : index
    %c0_20 = arith.constant 0 : index
    %19 = vector.load %arg2[%c3_18, %c0_19, %c0_20] : memref<4x512x128xbf16, #tpu.memory_space<vmem>>, vector<1x512x128xbf16>
    %20 = vector.shape_cast %19 : vector<1x512x128xbf16> to vector<512x128xbf16>
    %cst_21 = arith.constant dense<0.000000e+00> : vector<6x128xf32>
    %21 = tpu.matmul %18, %20, %cst_21 {dimension_numbers = #tpu.dot_dimension_numbers<[1], [0], [0], [1], [0, 0, 1, 1], [], []>} : vector<6x512xbf16>, vector<512x128xbf16>, vector<6x128xf32> -> vector<6x128xf32>
    %22 = arith.addf %16, %21 : vector<6x128xf32>
    %23 = arith.truncf %22 : vector<6x128xf32> to vector<6x128xbf16>
    %c0_22 = arith.constant 0 : index
    %c0_23 = arith.constant 0 : index
    %c0_24 = arith.constant 0 : index
    %24 = vector.load %arg4[%c0_22, %c0_23, %c0_24] : memref<1x6x128xbf16, #tpu.memory_space<vmem>>, vector<1x6x128xbf16>
    %25 = vector.shape_cast %24 : vector<1x6x128xbf16> to vector<6x128xbf16>
    %26 = vector.shape_cast %23 : vector<6x128xbf16> to vector<1x6x128xbf16>
    tpu.vector_store %arg4[%c0_22, %c0_23, %c0_24], %26 {strides = array<i32>} : memref<1x6x128xbf16, #tpu.memory_space<vmem>>, vector<1x6x128xbf16>,
    %c0_25 = arith.constant 0 : index
    %c0_26 = arith.constant 0 : index
    %27 = vector.load %arg3[%c0_25, %c0_26] : memref<6x1xf32, #tpu.memory_space<vmem>>, vector<6x1xf32>
    %28 = vector.broadcast %27 : vector<6x1xf32> to vector<6x128xf32>
    %29 = arith.mulf %22, %28 : vector<6x128xf32>
    %cst_27 = arith.constant dense<0.000000e+00> : vector<128xf32>
    %30 = vector.multi_reduction <add>, %29, %cst_27 [0] : vector<6x128xf32> to vector<128xf32>
    %31 = vector.shape_cast %30 : vector<128xf32> to vector<1x128xf32>
    %32 = arith.mulf %29, %22 : vector<6x128xf32>
    %cst_28 = arith.constant dense<0.000000e+00> : vector<128xf32>
    %33 = vector.multi_reduction <add>, %32, %cst_28 [0] : vector<6x128xf32> to vector<128xf32>
    %34 = vector.shape_cast %33 : vector<128xf32> to vector<1x128xf32>
    %35 = vector.shape_cast %31 : vector<1x128xf32> to vector<1x1x128xf32>
    %c0_29 = arith.constant 0 : index
    %c0_30 = arith.constant 0 : index
    %c0_31 = arith.constant 0 : index
    %36 = vector.load %arg5[%c0_29, %c0_30, %c0_31] : memref<1x1x128xf32, #tpu.memory_space<vmem>>, vector<1x1x128xf32>
    tpu.vector_store %arg5[%c0_29, %c0_30, %c0_31], %35 {strides = array<i32>} : memref<1x1x128xf32, #tpu.memory_space<vmem>>, vector<1x1x128xf32>,
    %37 = vector.shape_cast %34 : vector<1x128xf32> to vector<1x1x128xf32>
    %c0_32 = arith.constant 0 : index
    %c0_33 = arith.constant 0 : index
    %c0_34 = arith.constant 0 : index
    %38 = vector.load %arg6[%c0_32, %c0_33, %c0_34] : memref<1x1x128xf32, #tpu.memory_space<vmem>>, vector<1x1x128xf32>
    tpu.vector_store %arg6[%c0_32, %c0_33, %c0_34], %37 {strides = array<i32>} : memref<1x1x128xf32, #tpu.memory_space<vmem>>, vector<1x1x128xf32>,
    return
  }
  func.func @transform_0(%arg0: i32) -> (i32, i32, i32) {
    %c0_i32 = arith.constant 0 : i32
    %c0_i32_0 = arith.constant 0 : i32
    %c0_i32_1 = arith.constant 0 : i32
    return %arg0, %c0_i32, %c0_i32_0 : i32, i32, i32
  }
  func.func @transform_1(%arg0: i32) -> (i32, i32, i32) {
    %c0_i32 = arith.constant 0 : i32
    %c0_i32_0 = arith.constant 0 : i32
    %c0_i32_1 = arith.constant 0 : i32
    %c0_i32_2 = arith.constant 0 : i32
    return %c0_i32, %c0_i32_0, %c0_i32_1 : i32, i32, i32
  }
  func.func @transform_2(%arg0: i32) -> (i32, i32) {
    %c0_i32 = arith.constant 0 : i32
    %c0_i32_0 = arith.constant 0 : i32
    %c0_i32_1 = arith.constant 0 : i32
    return %c0_i32, %c0_i32_0 : i32, i32
  }
  func.func @transform_3(%arg0: i32) -> (i32, i32, i32) {
    %c0_i32 = arith.constant 0 : i32
    %c0_i32_0 = arith.constant 0 : i32
    %c0_i32_1 = arith.constant 0 : i32
    return %arg0, %c0_i32, %c0_i32_0 : i32, i32, i32
  }
  func.func @transform_4(%arg0: i32) -> (i32, i32, i32) {
    %c0_i32 = arith.constant 0 : i32
    %c0_i32_0 = arith.constant 0 : i32
    %c0_i32_1 = arith.constant 0 : i32
    return %arg0, %c0_i32, %c0_i32_0 : i32, i32, i32
  }
  func.func @transform_5(%arg0: i32) -> (i32, i32, i32) {
    %c0_i32 = arith.constant 0 : i32
    %c0_i32_0 = arith.constant 0 : i32
    %c0_i32_1 = arith.constant 0 : i32
    return %arg0, %c0_i32, %c0_i32_0 : i32, i32, i32
  }
}

</mosaic_0001>

<llo_original>
// kernel: feature_extractor.5
$region0: #{feature_extractor.5}
  #allocation0 [shape = 'u32[]', space=smem, size = 0x4, offset = 0x4, fixed_abs, tag = 'smem constant byte address 0x4 - core index']
  #allocation1 [shape = 'u32[144,128]{1,0:T(1,128)}', space=vmem, size = 0x12000, scoped, tag = 'internal scratch']
  %s0 = inlined_call_operand.vmem [shape: bf16[2,72,48], index: 0, kind: input, shape index: {}]
  %s1 = inlined_call_operand.vmem [shape: bf16[1,48,64], index: 1, kind: input, shape index: {}]
  %s2 = inlined_call_operand.vmem [shape: bf16[2,72,64], index: 2, kind: output, shape index: {}]
  %s3 = sld [smem:[#allocation0]]
  $region41: #{feature_extractor.5} parent=0
    _
  %s5 = ssub.s32 1, %s3
  %s6 = scalar_select 0, %s5, %s3
  loop: start=0, step=1, limit=4
  $region2: #{feature_extractor.5} parent=0 // loop_pre_header
    _
  $region3: #{feature_extractor.5} parent=0 // loop_header
    %s8 = sphi 0, %s12
    %p9 = scmp.ge.s32.totalorder %s8, 4
    %s18 = sphi 0, %s20
    %s21 = sphi 0, %s18
    %s22 = sphi 0, %s21
    %s38 = sphi 0, %s22
    %s42 = sphi 0, %s42
    %s44 = sphi 0, %s42
    %s45 = sphi 0, %s44
    %s59 = sphi 0, %s45
    %s65 = sphi 0, %s67
    %s68 = sphi 0, %s65
    %s69 = sphi 0, %s68
    %s85 = sphi 0, %s69
  $region4: #{feature_extractor.5} parent=0 // loop_header_branch
    %11 = sbr.rel (%p9) target = $region8
  $region5: #{feature_extractor.5} parent=0 // loop_body
    %s13 = ssub.s32 %s8, 1
    %s14 = ssub.s32 %s8, 2
    %s15 = sadd.s32 %s8, 1
    %s16 = ssub.s32 %s8, %s15
    %p17 = scmp.eq.s32.totalorder %s16, 0
    %s19 = sadd.s32 %s18, 1
    %s20 = scalar_select %p17, %s18, %s19
    %p23 = pneg %p17
    %p24 = scmp.eq.s32.totalorder %s8, 1
    %p25 = por %p23, %p24
    %p26 = scmp.ne.s32.totalorder %s18, %s21
    %p27 = scmp.eq.s32.totalorder %s8, 0
    %p28 = por %p26, %p27
    %p29 = scmp.ne.s32.totalorder %s18, %s21
    %p30 = scmp.eq.s32.totalorder %s13, 1
    %p31 = por %p29, %p30
    %p32 = scmp.ne.s32.totalorder %s21, %s22
    %p33 = scmp.eq.s32.totalorder %s13, 0
    %p34 = por %p32, %p33
    %p35 = scmp.ne.s32.totalorder %s21, %s22
    %p36 = scmp.eq.s32.totalorder %s14, 1
    %p37 = por %p35, %p36
    %p39 = scmp.ne.s32.totalorder %s22, %s38
    %p40 = scmp.eq.s32.totalorder %s14, 0
    %p41 = por %p39, %p40
    %s43 = sadd.s32 %s42, 1
    %p46 = scmp.eq.s32.totalorder %s8, 1
    %p47 = scmp.ne.s32.totalorder %s42, %s44
    %p48 = scmp.eq.s32.totalorder %s8, 0
    %p49 = por %p47, %p48
    %p50 = scmp.ne.s32.totalorder %s42, %s44
    %p51 = scmp.eq.s32.totalorder %s13, 1
    %p52 = por %p50, %p51
    %p53 = scmp.ne.s32.totalorder %s44, %s45
    %p54 = scmp.eq.s32.totalorder %s13, 0
    %p55 = por %p53, %p54
    %p56 = scmp.ne.s32.totalorder %s44, %s45
    %p57 = scmp.eq.s32.totalorder %s14, 1
    %p58 = por %p56, %p57
    %p60 = scmp.ne.s32.totalorder %s45, %s59
    %p61 = scmp.eq.s32.totalorder %s14, 0
    %p62 = por %p60, %p61
    %s63 = ssub.s32 %s8, %s15
    %p64 = scmp.eq.s32.totalorder %s63, 0
    %s66 = sadd.s32 %s65, 1
    %s67 = scalar_select %p64, %s65, %s66
    %p70 = pneg %p64
    %p71 = scmp.eq.s32.totalorder %s8, 1
    %p72 = por %p70, %p71
    %p73 = scmp.ne.s32.totalorder %s65, %s68
    %p74 = scmp.eq.s32.totalorder %s8, 0
    %p75 = por %p73, %p74
    %p76 = scmp.ne.s32.totalorder %s65, %s68
    %p77 = scmp.eq.s32.totalorder %s13, 1
    %p78 = por %p76, %p77
    %p79 = scmp.ne.s32.totalorder %s68, %s69
    %p80 = scmp.eq.s32.totalorder %s13, 0
    %p81 = por %p79, %p80
    %p82 = scmp.ne.s32.totalorder %s68, %s69
    %p83 = scmp.eq.s32.totalorder %s14, 1
    %p84 = por %p82, %p83
    %p86 = scmp.ne.s32.totalorder %s69, %s85
    %p87 = scmp.eq.s32.totalorder %s14, 0
    %p88 = por %p86, %p87
    %p89 = scmp.le.s32.totalorder 1, %s8
    %p90 = scmp.lt.s32.totalorder %s8, 3
    %p91 = pnand %p89, %p90
    %p92 = pneg %p91
    // Predicated region
    $region9: #{feature_extractor.5} parent=5 // pred_check
      _
    $region10: #{feature_extractor.5} parent=5 // pred_check_branch
      %94 = sbr.rel (%p91) target = $region12
    $region11: #{feature_extractor.5} parent=5 // pred_region
      %s95 = ssub.s32 %s8, 1
      // Predicated region
      $region13: #{feature_extractor.5} parent=11 // pred_check
        %p96 = pneg %p55
      $region14: #{feature_extractor.5} parent=11 // pred_check_branch
        %98 = sbr.rel (%p96) target = $region16
      $region15: #{feature_extractor.5} parent=11 // pred_region
        _
      $region16: #{feature_extractor.5} parent=11 // pred_fallthru
        _
    $region12: #{feature_extractor.5} parent=5 // pred_fallthru
      _
    %p99 = scmp.lt.s32.totalorder %s8, 2
    // Predicated region
    $region17: #{feature_extractor.5} parent=5 // pred_check
      %p100 = pneg %p99
    $region18: #{feature_extractor.5} parent=5 // pred_check_branch
      %102 = sbr.rel (%p100) target = $region20
    $region19: #{feature_extractor.5} parent=5 // pred_region
      // Predicated region
      $region21: #{feature_extractor.5} parent=19 // pred_check
        %p103 = pneg %p28
      $region22: #{feature_extractor.5} parent=19 // pred_check_branch
        %105 = sbr.rel (%p103) target = $region24
      $region23: #{feature_extractor.5} parent=19 // pred_region
        %p106 = scmp.lt.s32.totalorder %s8, 1
        %s107 = scalar_select %p106, %s8, 1
        %s108 = smul.addr %s107, 9
        %s109 = smul.addr %s108, 4
        %s110 = scalar_lea.vmem %s0, %s109
      $region24: #{feature_extractor.5} parent=19 // pred_fallthru
        _
    $region20: #{feature_extractor.5} parent=5 // pred_fallthru
      _
    %p111 = scmp.le.s32.totalorder 1, %s8
    %p112 = scmp.lt.s32.totalorder %s8, 3
    %p113 = pnand %p111, %p112
    %p114 = pneg %p113
    // Predicated region
    $region25: #{feature_extractor.5} parent=5 // pred_check
      _
    $region26: #{feature_extractor.5} parent=5 // pred_check_branch
      %116 = sbr.rel (%p113) target = $region28
    $region27: #{feature_extractor.5} parent=5 // pred_region
      %s117 = ssub.s32 %s8, 1
      %p118 = scmp.lt.s32.totalorder %s13, 1
      %s119 = scalar_select %p118, %s13, 1
      %s120 = smul.addr %s119, 9
      %s121 = smul.addr %s120, 4
      %s122 = scalar_lea.vmem %s0, %s121
      %p123 = pneg %p34
      %p124 = pneg %p31
      %p125 = pneg %p55
      %p126 = pneg %p52
      %p127 = pneg %p81
      %p128 = pneg %p78
      %p129 = scmp.lt.s32.totalorder %s13, 1
      %s130 = scalar_select %p129, %s13, 1
      %s131 = smul.addr %s130, 9
      %s132 = smul.addr %s131, 4
      %s133 = scalar_lea.vmem %s2, %s132
      %p134 = scmp.lt.s32.totalorder %s13, 1
      %s135 = scalar_select %p134, %s13, 1
      %s136 = smul.addr %s135, 9
      %s137 = smul.addr %s136, 4
      %s138 = scalar_lea.vmem %s0, %s137
      %p139 = scmp.lt.s32.totalorder %s13, 1
      %s140 = scalar_select %p139, %s13, 1
      %s141 = smul.addr %s140, 9
      %s142 = smul.addr %s141, 4
      %s143 = scalar_lea.vmem %s2, %s142
      %v145 = vld [vmem:[%s138] sm:$0xf]
      %v146 = vld [vmem:[%s138 + $0x4] sm:$0xf]
      %v147 = vld [vmem:[%s138 + $0x8] sm:$0xf]
      %v148 = vld [vmem:[%s138 + $0xc] sm:$0xf]
      %v149 = vld [vmem:[%s138 + $0x10] sm:$0xf]
      %v150 = vld [vmem:[%s138 + $0x14] sm:$0xf]
      %v151 = vld [vmem:[%s138 + $0x18] sm:$0xf]
      %v152 = vld [vmem:[%s138 + $0x1c] sm:$0xf]
      %v153 = vld [vmem:[%s138 + $0x20] sm:$0xf]
      %v154 = vld [vmem:[%s1] sm:$0xf]
      %v155 = vld [vmem:[%s1 + $0x4] sm:$0xf]
      %v156 = vld [vmem:[%s1 + $0x8] sm:$0xf]
      %v157 = vld [vmem:[%s1 + $0xc] sm:$0xf]
      %v158 = vld [vmem:[%s1 + $0x10] sm:$0xf]
      %v159 = vld [vmem:[%s1 + $0x14] sm:$0xf]
      %v169 = vunpack.c.l.b16 %v145
      %v170 = vunpack.c.l.b16 %v146
      %v171 = vunpack.c.l.b16 %v147
      %v172 = vunpack.c.l.b16 %v148
      %v173 = vunpack.c.l.b16 %v149
      %v174 = vunpack.c.l.b16 %v150
      %v175 = vunpack.c.l.b16 %v151
      %v176 = vunpack.c.l.b16 %v152
      %v177 = vunpack.c.l.b16 %v153
      %v178 = vpack.c.b16 %v170, %v169
      %v179 = vpack.c.b16 %v172, %v171
      %v180 = vpack.c.b16 %v174, %v173
      %v181 = vpack.c.b16 %v176, %v175
      %v182 = vpack.c.b16 %v177, %v177
      %v189 = vunpack.c.l.b16 %v154
      %v190 = vunpack.c.l.b16 %v155
      %v191 = vunpack.c.l.b16 %v156
      %v192 = vunpack.c.l.b16 %v157
      %v193 = vunpack.c.l.b16 %v158
      %v194 = vunpack.c.l.b16 %v159
      %v195 = vpack.c.b16 %v190, %v189
      %v196 = vpack.c.b16 %v192, %v191
      %v197 = vpack.c.b16 %v194, %v193
      %vm201 = vcmask 392192
      %v203 = vsel %vm201, %v178, 0
      %v206 = vsel %vm201, %v179, 0
      %v209 = vsel %vm201, %v180, 0
      %v212 = vsel %vm201, %v181, 0
      %v215 = vsel %vm201, %v182, 0
      %217 = vmatprep.subr.bf16.mxu0 0
      %218 = vmatpush1.bf16.msra.mxu0 %v195
      %219 = vmatprep.subr.bf16.mxu0 0
      %220 = vmatpush1.bf16.msra.mxu0 %v196
      %221 = vmatprep.subr.bf16.mxu0 0
      %222 = vmatpush1.bf16.msra.mxu0 %v197
      %223 = vmatprep.subr.bf16.mxu0 0
      %224 = vmatpush1.bf16.msra.mxu0 0
      %225 = vmatprep.subr.bf16.mxu0 0
      %226 = vmatpush1.bf16.msra.mxu0 0
      %227 = vmatprep.subr.bf16.mxu0 0
      %228 = vmatpush1.bf16.msra.mxu0 0
      %229 = vmatprep.subr.bf16.mxu0 0
      %230 = vmatpush1.bf16.msra.mxu0 0
      %231 = vmatprep.subr.bf16.mxu0 0
      %232 = vmatpush1.bf16.msra.mxu0 0
      %233 = vmatprep.subr.bf16.mxu0 0
      %234 = vmatpush1.bf16.msra.mxu0 0
      %235 = vmatprep.subr.bf16.mxu0 0
      %236 = vmatpush1.bf16.msra.mxu0 0
      %237 = vmatprep.subr.bf16.mxu0 0
      %238 = vmatpush1.bf16.msra.mxu0 0
      %239 = vmatprep.subr.bf16.mxu0 0
      %240 = vmatpush1.bf16.msra.mxu0 0
      %241 = vmatprep.subr.bf16.mxu0 0
      %242 = vmatpush1.bf16.msra.mxu0 0
      %243 = vmatprep.subr.bf16.mxu0 0
      %244 = vmatpush1.bf16.msra.mxu0 0
      %245 = vmatprep.subr.bf16.mxu0 0
      %246 = vmatpush1.bf16.msra.mxu0 0
      %247 = vmatprep.subr.bf16.mxu0 0
      %248 = vmatpush1.bf16.msra.mxu0 0
      %249 = vmatprep.mubr.bf16.mxu0 0
      %250 = vmatmul.mubr.bf16.gmra.mrb[0].mxu0 %v203
      %v251 = vpop.f32.mrb[0].mxu0
      %v252 = vadd.f32 0.0, %v251
      %v253 = vpop.f32.mrb[0].mxu0
      %v254 = vpop.f32.mrb[0].mxu0
      %v255 = vadd.f32 0.0, %v254
      %v256 = vpop.f32.mrb[0].mxu0
      %257 = vmatprep.mubr.bf16.mxu0 0
      %258 = vmatmul.mubr.bf16.gmra.mrb[0].mxu0 %v206
      %v259 = vpop.f32.mrb[0].mxu0
      %v260 = vadd.f32 0.0, %v259
      %v261 = vpop.f32.mrb[0].mxu0
      %v262 = vpop.f32.mrb[0].mxu0
      %v263 = vadd.f32 0.0, %v262
      %v264 = vpop.f32.mrb[0].mxu0
      %265 = vmatprep.mubr.bf16.mxu0 0
      %266 = vmatmul.mubr.bf16.gmra.mrb[0].mxu0 %v209
      %v267 = vpop.f32.mrb[0].mxu0
      %v268 = vadd.f32 0.0, %v267
      %v269 = vpop.f32.mrb[0].mxu0
      %v270 = vpop.f32.mrb[0].mxu0
      %v271 = vadd.f32 0.0, %v270
      %v272 = vpop.f32.mrb[0].mxu0
      %273 = vmatprep.mubr.bf16.mxu0 0
      %274 = vmatmul.mubr.bf16.gmra.mrb[0].mxu0 %v212
      %v275 = vpop.f32.mrb[0].mxu0
      %v276 = vadd.f32 0.0, %v275
      %v277 = vpop.f32.mrb[0].mxu0
      %v278 = vpop.f32.mrb[0].mxu0
      %v279 = vadd.f32 0.0, %v278
      %v280 = vpop.f32.mrb[0].mxu0
      %281 = vmatprep.mubr.bf16.mxu0 0
      %282 = vmatmul.mubr.bf16.gmra.mrb[0].mxu0 %v215
      %v283 = vpop.f32.mrb[0].mxu0
      %v284 = vadd.f32 0.0, %v283
      %v285 = vpop.f32.mrb[0].mxu0
      %v286 = vpop.f32.mrb[0].mxu0
      %v287 = vpop.f32.mrb[0].mxu0
      %288 = vdwg.mxu0
      %vm289 = vcmp.gt.f32.partialorder %v252, 0.0
      %vm290 = vcmp.gt.f32.partialorder %v255, 0.0
      %vm291 = vcmp.gt.f32.partialorder %v260, 0.0
      %vm292 = vcmp.gt.f32.partialorder %v263, 0.0
      %vm293 = vcmp.gt.f32.partialorder %v268, 0.0
      %vm294 = vcmp.gt.f32.partialorder %v271, 0.0
      %vm295 = vcmp.gt.f32.partialorder %v276, 0.0
      %vm296 = vcmp.gt.f32.partialorder %v279, 0.0
      %vm297 = vcmp.gt.f32.partialorder %v284, 0.0
      %v298 = vmul.f32 %v252, 0.2
      %v299 = vmul.f32 %v255, 0.2
      %v300 = vmul.f32 %v260, 0.2
      %v301 = vmul.f32 %v263, 0.2
      %v302 = vmul.f32 %v268, 0.2
      %v303 = vmul.f32 %v271, 0.2
      %v304 = vmul.f32 %v276, 0.2
      %v305 = vmul.f32 %v279, 0.2
      %v306 = vmul.f32 %v284, 0.2
      %v307 = vsel %vm289, %v252, %v298
      %v308 = vsel %vm290, %v255, %v299
      %v309 = vsel %vm291, %v260, %v300
      %v310 = vsel %vm292, %v263, %v301
      %v311 = vsel %vm293, %v268, %v302
      %v312 = vsel %vm294, %v271, %v303
      %v313 = vsel %vm295, %v276, %v304
      %v314 = vsel %vm296, %v279, %v305
      %v315 = vsel %vm297, %v284, %v306
      %v316 = vpack.c.bf16 %v308, %v307
      %v317 = vpack.c.bf16 %v310, %v309
      %v318 = vpack.c.bf16 %v312, %v311
      %v319 = vpack.c.bf16 %v314, %v313
      %v320 = vpack.c.bf16 %v315, %v315
      %v326 = vunpack.c.l.b16 %v316
      %v327 = vunpack.c.h.b16 %v316
      %v328 = vunpack.c.l.b16 %v317
      %v329 = vunpack.c.h.b16 %v317
      %v330 = vunpack.c.l.b16 %v318
      %v331 = vunpack.c.h.b16 %v318
      %v332 = vunpack.c.l.b16 %v319
      %v333 = vunpack.c.h.b16 %v319
      %v334 = vunpack.c.l.b16 %v320
      %v335 = vpack.c.b16 %v326, %v326
      %v336 = vpack.c.b16 %v327, %v327
      %v337 = vpack.c.b16 %v328, %v328
      %v338 = vpack.c.b16 %v329, %v329
      %v339 = vpack.c.b16 %v330, %v330
      %v340 = vpack.c.b16 %v331, %v331
      %v341 = vpack.c.b16 %v332, %v332
      %v342 = vpack.c.b16 %v333, %v333
      %v343 = vpack.c.b16 %v334, %v334
      %vm353 = vcmask 519168
      %354 = vst.msk [vmem:[%s143] sm:$0xf] %vm353, %v335
      %355 = vst.msk [vmem:[%s143 + $0x4] sm:$0xf] %vm353, %v336
      %356 = vst.msk [vmem:[%s143 + $0x8] sm:$0xf] %vm353, %v337
      %357 = vst.msk [vmem:[%s143 + $0xc] sm:$0xf] %vm353, %v338
      %358 = vst.msk [vmem:[%s143 + $0x10] sm:$0xf] %vm353, %v339
      %359 = vst.msk [vmem:[%s143 + $0x14] sm:$0xf] %vm353, %v340
      %360 = vst.msk [vmem:[%s143 + $0x18] sm:$0xf] %vm353, %v341
      %361 = vst.msk [vmem:[%s143 + $0x1c] sm:$0xf] %vm353, %v342
      %362 = vst.msk [vmem:[%s143 + $0x20] sm:$0xf] %vm353, %v343
      %p363 = scmp.lt.s32.totalorder %s13, 1
      %s364 = scalar_select %p363, %s13, 1
      %s365 = smul.addr %s364, 9
      %s366 = smul.addr %s365, 4
      %s367 = scalar_lea.vmem %s2, %s366
      // Predicated region
      $region29: #{feature_extractor.5} parent=27 // pred_check
        %p368 = pneg %p78
      $region30: #{feature_extractor.5} parent=27 // pred_check_branch
        %370 = sbr.rel (%p368) target = $region32
      $region31: #{feature_extractor.5} parent=27 // pred_region
        _
      $region32: #{feature_extractor.5} parent=27 // pred_fallthru
        _
    $region28: #{feature_extractor.5} parent=5 // pred_fallthru
      _
    %p371 = scmp.le.s32.totalorder 2, %s8
    // Predicated region
    $region33: #{feature_extractor.5} parent=5 // pred_check
      %p372 = pneg %p371
    $region34: #{feature_extractor.5} parent=5 // pred_check_branch
      %374 = sbr.rel (%p372) target = $region36
    $region35: #{feature_extractor.5} parent=5 // pred_region
      %s375 = ssub.s32 %s8, 2
      // Predicated region
      $region37: #{feature_extractor.5} parent=35 // pred_check
        %p376 = pneg %p84
      $region38: #{feature_extractor.5} parent=35 // pred_check_branch
        %378 = sbr.rel (%p376) target = $region40
      $region39: #{feature_extractor.5} parent=35 // pred_region
        %p379 = scmp.lt.s32.totalorder %s14, 1
        %s380 = scalar_select %p379, %s14, 1
        %s381 = smul.addr %s380, 9
        %s382 = smul.addr %s381, 4
        %s383 = scalar_lea.vmem %s2, %s382
      $region40: #{feature_extractor.5} parent=35 // pred_fallthru
        _
    $region36: #{feature_extractor.5} parent=5 // pred_fallthru
      _
  $region6: #{feature_extractor.5} parent=0 // loop_footer
    %s12 = sadd.s32 1, %s8
  $region7: #{feature_extractor.5} parent=0 // loop_footer_branch
    %7 = sbr.rel target = $region3
  $region8: #{feature_extractor.5} parent=0 // loop_exit
    _

// kernel: feature_extractor.7
$region0: #{feature_extractor.7}
  #allocation0 [shape = 'u32[]', space=smem, size = 0x4, offset = 0x4, fixed_abs, tag = 'smem constant byte address 0x4 - core index']
  #allocation1 [shape = 'u32[144,128]{1,0:T(1,128)}', space=vmem, size = 0x12000, scoped, tag = 'internal scratch']
  %s0 = inlined_call_operand.vmem [shape: bf16[40,128], index: 0, kind: input, shape index: {}]
  %s1 = inlined_call_operand.vmem [shape: f32[1,128], index: 1, kind: input, shape index: {}]
  %s2 = inlined_call_operand.vmem [shape: f32[1,128], index: 2, kind: input, shape index: {}]
  %s3 = inlined_call_operand.vmem [shape: bf16[40,128], index: 3, kind: output, shape index: {}]
  %s4 = sld [smem:[#allocation0]]
  $region22: #{feature_extractor.7} parent=0
    _
  %s6 = ssub.s32 1, %s4
  %s7 = scalar_select 0, %s6, %s4
  // Predicated region
  $region2: #{feature_extractor.7} parent=0 // pred_check
    _
  $region3: #{feature_extractor.7} parent=0 // pred_check_branch
    %9 = sbr.rel (0) target = $region5
  $region4: #{feature_extractor.7} parent=0 // pred_region
    _
  $region5: #{feature_extractor.7} parent=0 // pred_fallthru
    _
  // Predicated region
  $region6: #{feature_extractor.7} parent=0 // pred_check
    _
  $region7: #{feature_extractor.7} parent=0 // pred_check_branch
    %11 = sbr.rel (0) target = $region9
  $region8: #{feature_extractor.7} parent=0 // pred_region
    _
  $region9: #{feature_extractor.7} parent=0 // pred_fallthru
    _
  // Predicated region
  $region10: #{feature_extractor.7} parent=0 // pred_check
    _
  $region11: #{feature_extractor.7} parent=0 // pred_check_branch
    %13 = sbr.rel (0) target = $region13
  $region12: #{feature_extractor.7} parent=0 // pred_region
    _
  $region13: #{feature_extractor.7} parent=0 // pred_fallthru
    _
  %v14 = vld [vmem:[%s0] sm:$0xf]
  %v15 = vld [vmem:[%s0 + $0x4] sm:$0xf]
  %v16 = vld [vmem:[%s0 + $0x8] sm:$0xf]
  %v17 = vld [vmem:[%s0 + $0xc] sm:$0xf]
  %v18 = vld [vmem:[%s0 + $0x10] sm:$0xf]
  %v19 = vunpack.c.l.bf16 %v14
  %v20 = vunpack.c.l.bf16 %v15
  %v21 = vunpack.c.l.bf16 %v16
  %v22 = vunpack.c.l.bf16 %v17
  %v23 = vunpack.c.l.bf16 %v18
  %v24 = vld [vmem:[%s1] sm:$0x1]
  %v26 = vlaneseq
  %v27 = vshrl.u32 %v26, 7
  %v28 = vsub.s32 0, %v27
  %v29 = vrot.slane %v24, %v28
  %v31 = vmul.f32 %v19, %v29
  %v32 = vmul.f32 %v20, %v29
  %v33 = vmul.f32 %v21, %v29
  %v34 = vmul.f32 %v22, %v29
  %v35 = vmul.f32 %v23, %v29
  %v36 = vld [vmem:[%s2] sm:$0x1]
  %v38 = vlaneseq
  %v39 = vshrl.u32 %v38, 7
  %v40 = vsub.s32 0, %v39
  %v41 = vrot.slane %v36, %v40
  %v43 = vadd.f32 %v31, %v41
  %v44 = vadd.f32 %v32, %v41
  %v45 = vadd.f32 %v33, %v41
  %v46 = vadd.f32 %v34, %v41
  %v47 = vadd.f32 %v35, %v41
  %vm48 = vcmp.gt.f32.partialorder %v43, 0.0
  %vm49 = vcmp.gt.f32.partialorder %v44, 0.0
  %vm50 = vcmp.gt.f32.partialorder %v45, 0.0
  %vm51 = vcmp.gt.f32.partialorder %v46, 0.0
  %vm52 = vcmp.gt.f32.partialorder %v47, 0.0
  %v53 = vmul.f32 %v43, 0.2
  %v54 = vmul.f32 %v44, 0.2
  %v55 = vmul.f32 %v45, 0.2
  %v56 = vmul.f32 %v46, 0.2
  %v57 = vmul.f32 %v47, 0.2
  %v58 = vsel %vm48, %v43, %v53
  %v59 = vsel %vm49, %v44, %v54
  %v60 = vsel %vm50, %v45, %v55
  %v61 = vsel %vm51, %v46, %v56
  %v62 = vsel %vm52, %v47, %v57
  %v63 = vpack.c.bf16 %v59, %v58
  %v64 = vpack.c.bf16 %v61, %v60
  %v65 = vpack.c.bf16 %v62, %v62
  %v69 = vunpack.c.l.b16 %v63
  %v70 = vunpack.c.h.b16 %v63
  %v71 = vunpack.c.l.b16 %v64
  %v72 = vunpack.c.h.b16 %v64
  %v73 = vunpack.c.l.b16 %v65
  %v74 = vpack.c.b16 %v69, %v69
  %v75 = vpack.c.b16 %v70, %v70
  %v76 = vpack.c.b16 %v71, %v71
  %v77 = vpack.c.b16 %v72, %v72
  %v78 = vpack.c.b16 %v73, %v73
  %84 = vst [vmem:[%s3] sm:$0xf] %v74
  %85 = vst [vmem:[%s3 + $0x4] sm:$0xf] %v75
  %86 = vst [vmem:[%s3 + $0x8] sm:$0xf] %v76
  %87 = vst [vmem:[%s3 + $0xc] sm:$0xf] %v77
  %88 = vst [vmem:[%s3 + $0x10] sm:$0xf] %v78
  // Predicated region
  $region14: #{feature_extractor.7} parent=0 // pred_check
    _
  $region15: #{feature_extractor.7} parent=0 // pred_check_branch
    %90 = sbr.rel (0) target = $region17
  $region16: #{feature_extractor.7} parent=0 // pred_region
    _
  $region17: #{feature_extractor.7} parent=0 // pred_fallthru
    _
  // Predicated region
  $region18: #{feature_extractor.7} parent=0 // pred_check
    _
  $region19: #{feature_extractor.7} parent=0 // pred_check_branch
    %92 = sbr.rel (0) target = $region21
  $region20: #{feature_extractor.7} parent=0 // pred_region
    _
  $region21: #{feature_extractor.7} parent=0 // pred_fallthru
    _

// kernel: feature_extractor.6
$region0: #{feature_extractor.6}
  #allocation0 [shape = 'u32[]', space=smem, size = 0x4, offset = 0x4, fixed_abs, tag = 'smem constant byte address 0x4 - core index']
  #allocation1 [shape = 'u32[144,128]{1,0:T(1,128)}', space=vmem, size = 0x12000, scoped, tag = 'internal scratch']
  %s0 = inlined_call_operand.vmem [shape: bf16[2,30,256], index: 0, kind: input, shape index: {}]
  %s1 = inlined_call_operand.vmem [shape: bf16[4,256,128], index: 1, kind: input, shape index: {}]
  %s2 = inlined_call_operand.vmem [shape: f32[20,1], index: 2, kind: input, shape index: {}]
  %s3 = inlined_call_operand.vmem [shape: bf16[2,20,128], index: 3, kind: output, shape index: {0}]
  %s4 = inlined_call_operand.vmem [shape: f32[2,1,128], index: 4, kind: output, shape index: {1}]
  %s5 = inlined_call_operand.vmem [shape: f32[2,1,128], index: 5, kind: output, shape index: {2}]
  %6 = xla_tuple %s3, %s4, %s5
  %s7 = sld [smem:[#allocation0]]
  $region61: #{feature_extractor.6} parent=0
    _
  %s9 = ssub.s32 1, %s7
  %s10 = scalar_select 0, %s9, %s7
  loop: start=0, step=1, limit=4
  $region2: #{feature_extractor.6} parent=0 // loop_pre_header
    _
  $region3: #{feature_extractor.6} parent=0 // loop_header
    %s12 = sphi 0, %s16
    %p13 = scmp.ge.s32.totalorder %s12, 4
    %s22 = sphi 0, %s24
    %s25 = sphi 0, %s22
    %s26 = sphi 0, %s25
    %s42 = sphi 0, %s26
    %s46 = sphi 0, %s46
    %s48 = sphi 0, %s46
    %s49 = sphi 0, %s48
    %s63 = sphi 0, %s49
    %s67 = sphi 0, %s67
    %s69 = sphi 0, %s67
    %s70 = sphi 0, %s69
    %s84 = sphi 0, %s70
    %s90 = sphi 0, %s92
    %s93 = sphi 0, %s90
    %s94 = sphi 0, %s93
    %s110 = sphi 0, %s94
    %s116 = sphi 0, %s118
    %s119 = sphi 0, %s116
    %s120 = sphi 0, %s119
    %s136 = sphi 0, %s120
    %s142 = sphi 0, %s144
    %s145 = sphi 0, %s142
    %s146 = sphi 0, %s145
    %s162 = sphi 0, %s146
  $region4: #{feature_extractor.6} parent=0 // loop_header_branch
    %15 = sbr.rel (%p13) target = $region8
  $region5: #{feature_extractor.6} parent=0 // loop_body
    %s17 = ssub.s32 %s12, 1
    %s18 = ssub.s32 %s12, 2
    %s19 = sadd.s32 %s12, 1
    %s20 = ssub.s32 %s12, %s19
    %p21 = scmp.eq.s32.totalorder %s20, 0
    %s23 = sadd.s32 %s22, 1
    %s24 = scalar_select %p21, %s22, %s23
    %p27 = pneg %p21
    %p28 = scmp.eq.s32.totalorder %s12, 1
    %p29 = por %p27, %p28
    %p30 = scmp.ne.s32.totalorder %s22, %s25
    %p31 = scmp.eq.s32.totalorder %s12, 0
    %p32 = por %p30, %p31
    %p33 = scmp.ne.s32.totalorder %s22, %s25
    %p34 = scmp.eq.s32.totalorder %s17, 1
    %p35 = por %p33, %p34
    %p36 = scmp.ne.s32.totalorder %s25, %s26
    %p37 = scmp.eq.s32.totalorder %s17, 0
    %p38 = por %p36, %p37
    %p39 = scmp.ne.s32.totalorder %s25, %s26
    %p40 = scmp.eq.s32.totalorder %s18, 1
    %p41 = por %p39, %p40
    %p43 = scmp.ne.s32.totalorder %s26, %s42
    %p44 = scmp.eq.s32.totalorder %s18, 0
    %p45 = por %p43, %p44
    %s47 = sadd.s32 %s46, 1
    %p50 = scmp.eq.s32.totalorder %s12, 1
    %p51 = scmp.ne.s32.totalorder %s46, %s48
    %p52 = scmp.eq.s32.totalorder %s12, 0
    %p53 = por %p51, %p52
    %p54 = scmp.ne.s32.totalorder %s46, %s48
    %p55 = scmp.eq.s32.totalorder %s17, 1
    %p56 = por %p54, %p55
    %p57 = scmp.ne.s32.totalorder %s48, %s49
    %p58 = scmp.eq.s32.totalorder %s17, 0
    %p59 = por %p57, %p58
    %p60 = scmp.ne.s32.totalorder %s48, %s49
    %p61 = scmp.eq.s32.totalorder %s18, 1
    %p62 = por %p60, %p61
    %p64 = scmp.ne.s32.totalorder %s49, %s63
    %p65 = scmp.eq.s32.totalorder %s18, 0
    %p66 = por %p64, %p65
    %s68 = sadd.s32 %s67, 1
    %p71 = scmp.eq.s32.totalorder %s12, 1
    %p72 = scmp.ne.s32.totalorder %s67, %s69
    %p73 = scmp.eq.s32.totalorder %s12, 0
    %p74 = por %p72, %p73
    %p75 = scmp.ne.s32.totalorder %s67, %s69
    %p76 = scmp.eq.s32.totalorder %s17, 1
    %p77 = por %p75, %p76
    %p78 = scmp.ne.s32.totalorder %s69, %s70
    %p79 = scmp.eq.s32.totalorder %s17, 0
    %p80 = por %p78, %p79
    %p81 = scmp.ne.s32.totalorder %s69, %s70
    %p82 = scmp.eq.s32.totalorder %s18, 1
    %p83 = por %p81, %p82
    %p85 = scmp.ne.s32.totalorder %s70, %s84
    %p86 = scmp.eq.s32.totalorder %s18, 0
    %p87 = por %p85, %p86
    %s88 = ssub.s32 %s12, %s19
    %p89 = scmp.eq.s32.totalorder %s88, 0
    %s91 = sadd.s32 %s90, 1
    %s92 = scalar_select %p89, %s90, %s91
    %p95 = pneg %p89
    %p96 = scmp.eq.s32.totalorder %s12, 1
    %p97 = por %p95, %p96
    %p98 = scmp.ne.s32.totalorder %s90, %s93
    %p99 = scmp.eq.s32.totalorder %s12, 0
    %p100 = por %p98, %p99
    %p101 = scmp.ne.s32.totalorder %s90, %s93
    %p102 = scmp.eq.s32.totalorder %s17, 1
    %p103 = por %p101, %p102
    %p104 = scmp.ne.s32.totalorder %s93, %s94
    %p105 = scmp.eq.s32.totalorder %s17, 0
    %p106 = por %p104, %p105
    %p107 = scmp.ne.s32.totalorder %s93, %s94
    %p108 = scmp.eq.s32.totalorder %s18, 1
    %p109 = por %p107, %p108
    %p111 = scmp.ne.s32.totalorder %s94, %s110
    %p112 = scmp.eq.s32.totalorder %s18, 0
    %p113 = por %p111, %p112
    %s114 = ssub.s32 %s12, %s19
    %p115 = scmp.eq.s32.totalorder %s114, 0
    %s117 = sadd.s32 %s116, 1
    %s118 = scalar_select %p115, %s116, %s117
    %p121 = pneg %p115
    %p122 = scmp.eq.s32.totalorder %s12, 1
    %p123 = por %p121, %p122
    %p124 = scmp.ne.s32.totalorder %s116, %s119
    %p125 = scmp.eq.s32.totalorder %s12, 0
    %p126 = por %p124, %p125
    %p127 = scmp.ne.s32.totalorder %s116, %s119
    %p128 = scmp.eq.s32.totalorder %s17, 1
    %p129 = por %p127, %p128
    %p130 = scmp.ne.s32.totalorder %s119, %s120
    %p131 = scmp.eq.s32.totalorder %s17, 0
    %p132 = por %p130, %p131
    %p133 = scmp.ne.s32.totalorder %s119, %s120
    %p134 = scmp.eq.s32.totalorder %s18, 1
    %p135 = por %p133, %p134
    %p137 = scmp.ne.s32.totalorder %s120, %s136
    %p138 = scmp.eq.s32.totalorder %s18, 0
    %p139 = por %p137, %p138
    %s140 = ssub.s32 %s12, %s19
    %p141 = scmp.eq.s32.totalorder %s140, 0
    %s143 = sadd.s32 %s142, 1
    %s144 = scalar_select %p141, %s142, %s143
    %p147 = pneg %p141
    %p148 = scmp.eq.s32.totalorder %s12, 1
    %p149 = por %p147, %p148
    %p150 = scmp.ne.s32.totalorder %s142, %s145
    %p151 = scmp.eq.s32.totalorder %s12, 0
    %p152 = por %p150, %p151
    %p153 = scmp.ne.s32.totalorder %s142, %s145
    %p154 = scmp.eq.s32.totalorder %s17, 1
    %p155 = por %p153, %p154
    %p156 = scmp.ne.s32.totalorder %s145, %s146
    %p157 = scmp.eq.s32.totalorder %s17, 0
    %p158 = por %p156, %p157
    %p159 = scmp.ne.s32.totalorder %s145, %s146
    %p160 = scmp.eq.s32.totalorder %s18, 1
    %p161 = por %p159, %p160
    %p163 = scmp.ne.s32.totalorder %s146, %s162
    %p164 = scmp.eq.s32.totalorder %s18, 0
    %p165 = por %p163, %p164
    %p166 = scmp.le.s32.totalorder 1, %s12
    %p167 = scmp.lt.s32.totalorder %s12, 3
    %p168 = pnand %p166, %p167
    %p169 = pneg %p168
    // Predicated region
    $region9: #{feature_extractor.6} parent=5 // pred_check
      _
    $region10: #{feature_extractor.6} parent=5 // pred_check_branch
      %171 = sbr.rel (%p168) target = $region12
    $region11: #{feature_extractor.6} parent=5 // pred_region
      %s172 = ssub.s32 %s12, 1
      // Predicated region
      $region13: #{feature_extractor.6} parent=11 // pred_check
        %p173 = pneg %p59
      $region14: #{feature_extractor.6} parent=11 // pred_check_branch
        %175 = sbr.rel (%p173) target = $region16
      $region15: #{feature_extractor.6} parent=11 // pred_region
        _
      $region16: #{feature_extractor.6} parent=11 // pred_fallthru
        _
      // Predicated region
      $region17: #{feature_extractor.6} parent=11 // pred_check
        %p176 = pneg %p80
      $region18: #{feature_extractor.6} parent=11 // pred_check_branch
        %178 = sbr.rel (%p176) target = $region20
      $region19: #{feature_extractor.6} parent=11 // pred_region
        _
      $region20: #{feature_extractor.6} parent=11 // pred_fallthru
        _
    $region12: #{feature_extractor.6} parent=5 // pred_fallthru
      _
    %p179 = scmp.lt.s32.totalorder %s12, 2
    // Predicated region
    $region21: #{feature_extractor.6} parent=5 // pred_check
      %p180 = pneg %p179
    $region22: #{feature_extractor.6} parent=5 // pred_check_branch
      %182 = sbr.rel (%p180) target = $region24
    $region23: #{feature_extractor.6} parent=5 // pred_region
      // Predicated region
      $region25: #{feature_extractor.6} parent=23 // pred_check
        %p183 = pneg %p32
      $region26: #{feature_extractor.6} parent=23 // pred_check_branch
        %185 = sbr.rel (%p183) target = $region28
      $region27: #{feature_extractor.6} parent=23 // pred_region
        %p186 = scmp.lt.s32.totalorder %s12, 1
        %s187 = scalar_select %p186, %s12, 1
        %s188 = smul.addr %s187, 8
        %s189 = smul.addr %s188, 4
        %s190 = scalar_lea.vmem %s0, %s189
      $region28: #{feature_extractor.6} parent=23 // pred_fallthru
        _
    $region24: #{feature_extractor.6} parent=5 // pred_fallthru
      _
    %p191 = scmp.le.s32.totalorder 1, %s12
    %p192 = scmp.lt.s32.totalorder %s12, 3
    %p193 = pnand %p191, %p192
    %p194 = pneg %p193
    // Predicated region
    $region29: #{feature_extractor.6} parent=5 // pred_check
      _
    $region30: #{feature_extractor.6} parent=5 // pred_check_branch
      %196 = sbr.rel (%p193) target = $region32
    $region31: #{feature_extractor.6} parent=5 // pred_region
      %s197 = ssub.s32 %s12, 1
      %p198 = scmp.lt.s32.totalorder %s17, 1
      %s199 = scalar_select %p198, %s17, 1
      %s200 = smul.addr %s199, 8
      %s201 = smul.addr %s200, 4
      %s202 = scalar_lea.vmem %s0, %s201
      %p203 = pneg %p38
      %p204 = pneg %p35
      %p205 = pneg %p59
      %p206 = pneg %p56
      %p207 = pneg %p80
      %p208 = pneg %p77
      %p209 = pneg %p106
      %p210 = pneg %p103
      %p211 = scmp.lt.s32.totalorder %s17, 1
      %s212 = scalar_select %p211, %s17, 1
      %s213 = smul.addr %s212, 3
      %s214 = smul.addr %s213, 4
      %s215 = scalar_lea.vmem %s3, %s214
      %p216 = pneg %p132
      %p217 = pneg %p129
      %p218 = scmp.lt.s32.totalorder %s17, 1
      %s219 = scalar_select %p218, %s17, 1
      %s220 = scalar_lea.vmem %s4, %s219
      %p221 = pneg %p158
      %p222 = pneg %p155
      %p223 = scmp.lt.s32.totalorder %s17, 1
      %s224 = scalar_select %p223, %s17, 1
      %s225 = scalar_lea.vmem %s5, %s224
      %p226 = scmp.lt.s32.totalorder %s17, 1
      %s227 = scalar_select %p226, %s17, 1
      %s228 = smul.addr %s227, 8
      %s229 = smul.addr %s228, 4
      %s230 = scalar_lea.vmem %s0, %s229
      %p231 = scmp.lt.s32.totalorder %s17, 1
      %s232 = scalar_select %p231, %s17, 1
      %s233 = smul.addr %s232, 3
      %s234 = smul.addr %s233, 4
      %s235 = scalar_lea.vmem %s3, %s234
      %p236 = scmp.lt.s32.totalorder %s17, 1
      %s237 = scalar_select %p236, %s17, 1
      %s238 = scalar_lea.vmem %s4, %s237
      %p239 = scmp.lt.s32.totalorder %s17, 1
      %s240 = scalar_select %p239, %s17, 1
      %s241 = scalar_lea.vmem %s5, %s240
      %v243 = vld [vmem:[%s230] sm:$0xff]
      %v244 = vld [vmem:[%s230 + $0x8] sm:$0xff]
      %v245 = vld [vmem:[%s230 + $0x10] sm:$0x33]
      %v246 = vld [vmem:[%s1] sm:$0xf]
      %v247 = vld [vmem:[%s1 + $0x4] sm:$0xf]
      %v248 = vld [vmem:[%s1 + $0x8] sm:$0xf]
      %v249 = vld [vmem:[%s1 + $0xc] sm:$0xf]
      %v250 = vld [vmem:[%s1 + $0x10] sm:$0xf]
      %v251 = vld [vmem:[%s1 + $0x14] sm:$0xf]
      %v252 = vld [vmem:[%s1 + $0x18] sm:$0xf]
      %v253 = vld [vmem:[%s1 + $0x1c] sm:$0xf]
      %v254 = vld [vmem:[%s1 + $0x20] sm:$0xf]
      %v255 = vld [vmem:[%s1 + $0x24] sm:$0xf]
      %v256 = vld [vmem:[%s1 + $0x28] sm:$0xf]
      %v257 = vld [vmem:[%s1 + $0x2c] sm:$0xf]
      %v258 = vld [vmem:[%s1 + $0x30] sm:$0xf]
      %v259 = vld [vmem:[%s1 + $0x34] sm:$0xf]
      %v260 = vld [vmem:[%s1 + $0x38] sm:$0xf]
      %v261 = vld [vmem:[%s1 + $0x3c] sm:$0xf]
      %v262 = vld [vmem:[%s1 + $0x40] sm:$0xf]
      %v263 = vld [vmem:[%s1 + $0x44] sm:$0xf]
      %v264 = vld [vmem:[%s1 + $0x48] sm:$0xf]
      %v265 = vld [vmem:[%s1 + $0x4c] sm:$0xf]
      %v266 = vld [vmem:[%s1 + $0x50] sm:$0xf]
      %v267 = vld [vmem:[%s1 + $0x54] sm:$0xf]
      %v268 = vld [vmem:[%s1 + $0x58] sm:$0xf]
      %v269 = vld [vmem:[%s1 + $0x5c] sm:$0xf]
      %v270 = vld [vmem:[%s1 + $0x60] sm:$0xf]
      %v271 = vld [vmem:[%s1 + $0x64] sm:$0xf]
      %v272 = vld [vmem:[%s1 + $0x68] sm:$0xf]
      %v273 = vld [vmem:[%s1 + $0x6c] sm:$0xf]
      %v274 = vld [vmem:[%s1 + $0x70] sm:$0xf]
      %v275 = vld [vmem:[%s1 + $0x74] sm:$0xf]
      %v276 = vld [vmem:[%s1 + $0x78] sm:$0xf]
      %v277 = vld [vmem:[%s1 + $0x7c] sm:$0xf]
      %v278 = vld [vmem:[%s230 + $0x10] sm:$0x77]
      %s279 = scalar_lea.vmem %s1, 128
      %v280 = vld [vmem:[%s279] sm:$0xf]
      %v281 = vld [vmem:[%s279 + $0x4] sm:$0xf]
      %v282 = vld [vmem:[%s279 + $0x8] sm:$0xf]
      %v283 = vld [vmem:[%s279 + $0xc] sm:$0xf]
      %v284 = vld [vmem:[%s279 + $0x10] sm:$0xf]
      %v285 = vld [vmem:[%s279 + $0x14] sm:$0xf]
      %v286 = vld [vmem:[%s279 + $0x18] sm:$0xf]
      %v287 = vld [vmem:[%s279 + $0x1c] sm:$0xf]
      %v288 = vld [vmem:[%s279 + $0x20] sm:$0xf]
      %v289 = vld [vmem:[%s279 + $0x24] sm:$0xf]
      %v290 = vld [vmem:[%s279 + $0x28] sm:$0xf]
      %v291 = vld [vmem:[%s279 + $0x2c] sm:$0xf]
      %v292 = vld [vmem:[%s279 + $0x30] sm:$0xf]
      %v293 = vld [vmem:[%s279 + $0x34] sm:$0xf]
      %v294 = vld [vmem:[%s279 + $0x38] sm:$0xf]
      %v295 = vld [vmem:[%s279 + $0x3c] sm:$0xf]
      %v296 = vld [vmem:[%s279 + $0x40] sm:$0xf]
      %v297 = vld [vmem:[%s279 + $0x44] sm:$0xf]
      %v298 = vld [vmem:[%s279 + $0x48] sm:$0xf]
      %v299 = vld [vmem:[%s279 + $0x4c] sm:$0xf]
      %v300 = vld [vmem:[%s279 + $0x50] sm:$0xf]
      %v301 = vld [vmem:[%s279 + $0x54] sm:$0xf]
      %v302 = vld [vmem:[%s279 + $0x58] sm:$0xf]
      %v303 = vld [vmem:[%s279 + $0x5c] sm:$0xf]
      %v304 = vld [vmem:[%s279 + $0x60] sm:$0xf]
      %v305 = vld [vmem:[%s279 + $0x64] sm:$0xf]
      %v306 = vld [vmem:[%s279 + $0x68] sm:$0xf]
      %v307 = vld [vmem:[%s279 + $0x6c] sm:$0xf]
      %v308 = vld [vmem:[%s279 + $0x70] sm:$0xf]
      %v309 = vld [vmem:[%s279 + $0x74] sm:$0xf]
      %v310 = vld [vmem:[%s279 + $0x78] sm:$0xf]
      %v311 = vld [vmem:[%s279 + $0x7c] sm:$0xf]
      %v315 = vunpack.c.l.b16 %v243
      %v316 = vunpack.c.h.b16 %v243
      %v317 = vunpack.c.l.b16 %v244
      %v318 = vunpack.c.h.b16 %v244
      %v319 = vunpack.c.l.b16 %v278
      %v320 = vunpack.c.h.b16 %v278
      %v321 = vpack.c.b16 %v317, %v315
      %v322 = vpack.c.b16 %v318, %v316
      %v323 = vpack.c.b16 %v319, %v319
      %v324 = vpack.c.b16 %v320, %v320
      %vm325 = vsmask.f32 7424
      %v327 = vshrl.u32 %v321, 16
      %v329 = vshll.u32 %v321, 16
      %v331 = vrot.slane %v329, 1
      %v332 = vor.u32 %v327, %v331
      %v334 = vshll.u32 %v323, 16
      %v336 = vrot.slane %v334, 1
      %v337 = vsel %vm325, %v332, %v336
      %v339 = vshrl.u32 %v322, 16
      %v341 = vshll.u32 %v322, 16
      %v343 = vrot.slane %v341, 1
      %v344 = vor.u32 %v339, %v343
      %v346 = vshll.u32 %v324, 16
      %v348 = vrot.slane %v346, 1
      %v349 = vsel %vm325, %v344, %v348
      %v350 = vshrl.u32 %v323, 16
      %v352 = vor.u32 %v350, %v336
      %v353 = vshrl.u32 %v324, 16
      %v355 = vor.u32 %v353, %v348
      %v392 = vunpack.c.l.b16 %v280
      %v393 = vunpack.c.l.b16 %v281
      %v394 = vunpack.c.l.b16 %v282
      %v395 = vunpack.c.l.b16 %v283
      %v396 = vunpack.c.l.b16 %v284
      %v397 = vunpack.c.l.b16 %v285
      %v398 = vunpack.c.l.b16 %v286
      %v399 = vunpack.c.l.b16 %v287
      %v400 = vunpack.c.l.b16 %v288
      %v401 = vunpack.c.l.b16 %v289
      %v402 = vunpack.c.l.b16 %v290
      %v403 = vunpack.c.l.b16 %v291
      %v404 = vunpack.c.l.b16 %v292
      %v405 = vunpack.c.l.b16 %v293
      %v406 = vunpack.c.l.b16 %v294
      %v407 = vunpack.c.l.b16 %v295
      %v408 = vunpack.c.l.b16 %v296
      %v409 = vunpack.c.l.b16 %v297
      %v410 = vunpack.c.l.b16 %v298
      %v411 = vunpack.c.l.b16 %v299
      %v412 = vunpack.c.l.b16 %v300
      %v413 = vunpack.c.l.b16 %v301
      %v414 = vunpack.c.l.b16 %v302
      %v415 = vunpack.c.l.b16 %v303
      %v416 = vunpack.c.l.b16 %v304
      %v417 = vunpack.c.l.b16 %v305
      %v418 = vunpack.c.l.b16 %v306
      %v419 = vunpack.c.l.b16 %v307
      %v420 = vunpack.c.l.b16 %v308
      %v421 = vunpack.c.l.b16 %v309
      %v422 = vunpack.c.l.b16 %v310
      %v423 = vunpack.c.l.b16 %v311
      %v424 = vpack.c.b16 %v393, %v392
      %v425 = vpack.c.b16 %v395, %v394
      %v426 = vpack.c.b16 %v397, %v396
      %v427 = vpack.c.b16 %v399, %v398
      %v428 = vpack.c.b16 %v401, %v400
      %v429 = vpack.c.b16 %v403, %v402
      %v430 = vpack.c.b16 %v405, %v404
      %v431 = vpack.c.b16 %v407, %v406
      %v432 = vpack.c.b16 %v409, %v408
      %v433 = vpack.c.b16 %v411, %v410
      %v434 = vpack.c.b16 %v413, %v412
      %v435 = vpack.c.b16 %v415, %v414
      %v436 = vpack.c.b16 %v417, %v416
      %v437 = vpack.c.b16 %v419, %v418
      %v438 = vpack.c.b16 %v421, %v420
      %v439 = vpack.c.b16 %v423, %v422
      %456 = vmatprep.subr.bf16.mxu0 0
      %457 = vmatpush1.bf16.msra.mxu0 %v424
      %458 = vmatprep.subr.bf16.mxu0 0
      %459 = vmatpush1.bf16.msra.mxu0 %v425
      %460 = vmatprep.subr.bf16.mxu0 0
      %461 = vmatpush1.bf16.msra.mxu0 %v426
      %462 = vmatprep.subr.bf16.mxu0 0
      %463 = vmatpush1.bf16.msra.mxu0 %v427
      %464 = vmatprep.subr.bf16.mxu0 0
      %465 = vmatpush1.bf16.msra.mxu0 %v428
      %466 = vmatprep.subr.bf16.mxu0 0
      %467 = vmatpush1.bf16.msra.mxu0 %v429
      %468 = vmatprep.subr.bf16.mxu0 0
      %469 = vmatpush1.bf16.msra.mxu0 %v430
      %470 = vmatprep.subr.bf16.mxu0 0
      %471 = vmatpush1.bf16.msra.mxu0 %v431
      %472 = vmatprep.subr.bf16.mxu0 0
      %473 = vmatpush1.bf16.msra.mxu0 %v432
      %474 = vmatprep.subr.bf16.mxu0 0
      %475 = vmatpush1.bf16.msra.mxu0 %v433
      %476 = vmatprep.subr.bf16.mxu0 0
      %477 = vmatpush1.bf16.msra.mxu0 %v434
      %478 = vmatprep.subr.bf16.mxu0 0
      %479 = vmatpush1.bf16.msra.mxu0 %v435
      %480 = vmatprep.subr.bf16.mxu0 0
      %481 = vmatpush1.bf16.msra.mxu0 %v436
      %482 = vmatprep.subr.bf16.mxu0 0
      %483 = vmatpush1.bf16.msra.mxu0 %v437
      %484 = vmatprep.subr.bf16.mxu0 0
      %485 = vmatpush1.bf16.msra.mxu0 %v438
      %486 = vmatprep.subr.bf16.mxu0 0
      %487 = vmatpush1.bf16.msra.mxu0 %v439
      %488 = vmatprep.mubr.bf16.mxu0 %v349
      %489 = vmatmul.mubr.bf16.gmra.mrb[0].mxu0 %v337
      %v490 = vpop.f32.mrb[0].mxu0
      %v491 = vadd.f32 0.0, %v490
      %v492 = vpop.f32.mrb[0].mxu0
      %v493 = vpop.f32.mrb[0].mxu0
      %v494 = vadd.f32 0.0, %v493
      %v495 = vpop.f32.mrb[0].mxu0
      %496 = vmatprep.mubr.bf16.mxu0 %v355
      %497 = vmatmul.mubr.bf16.gmra.mrb[0].mxu0 %v352
      %v498 = vpop.f32.mrb[0].mxu0
      %v499 = vadd.f32 0.0, %v498
      %v500 = vpop.f32.mrb[0].mxu0
      %v501 = vpop.f32.mrb[0].mxu0
      %v502 = vpop.f32.mrb[0].mxu0
      %503 = vdwg.mxu0
      %v505 = vunpack.c.l.b16 %v245
      %v506 = vunpack.c.h.b16 %v245
      %v507 = vpack.c.b16 %v505, %v505
      %v508 = vpack.c.b16 %v506, %v506
      %v545 = vunpack.c.l.b16 %v246
      %v546 = vunpack.c.l.b16 %v247
      %v547 = vunpack.c.l.b16 %v248
      %v548 = vunpack.c.l.b16 %v249
      %v549 = vunpack.c.l.b16 %v250
      %v550 = vunpack.c.l.b16 %v251
      %v551 = vunpack.c.l.b16 %v252
      %v552 = vunpack.c.l.b16 %v253
      %v553 = vunpack.c.l.b16 %v254
      %v554 = vunpack.c.l.b16 %v255
      %v555 = vunpack.c.l.b16 %v256
      %v556 = vunpack.c.l.b16 %v257
      %v557 = vunpack.c.l.b16 %v258
      %v558 = vunpack.c.l.b16 %v259
      %v559 = vunpack.c.l.b16 %v260
      %v560 = vunpack.c.l.b16 %v261
      %v561 = vunpack.c.l.b16 %v262
      %v562 = vunpack.c.l.b16 %v263
      %v563 = vunpack.c.l.b16 %v264
      %v564 = vunpack.c.l.b16 %v265
      %v565 = vunpack.c.l.b16 %v266
      %v566 = vunpack.c.l.b16 %v267
      %v567 = vunpack.c.l.b16 %v268
      %v568 = vunpack.c.l.b16 %v269
      %v569 = vunpack.c.l.b16 %v270
      %v570 = vunpack.c.l.b16 %v271
      %v571 = vunpack.c.l.b16 %v272
      %v572 = vunpack.c.l.b16 %v273
      %v573 = vunpack.c.l.b16 %v274
      %v574 = vunpack.c.l.b16 %v275
      %v575 = vunpack.c.l.b16 %v276
      %v576 = vunpack.c.l.b16 %v277
      %v577 = vpack.c.b16 %v546, %v545
      %v578 = vpack.c.b16 %v548, %v547
      %v579 = vpack.c.b16 %v550, %v549
      %v580 = vpack.c.b16 %v552, %v551
      %v581 = vpack.c.b16 %v554, %v553
      %v582 = vpack.c.b16 %v556, %v555
      %v583 = vpack.c.b16 %v558, %v557
      %v584 = vpack.c.b16 %v560, %v559
      %v585 = vpack.c.b16 %v562, %v561
      %v586 = vpack.c.b16 %v564, %v563
      %v587 = vpack.c.b16 %v566, %v565
      %v588 = vpack.c.b16 %v568, %v567
      %v589 = vpack.c.b16 %v570, %v569
      %v590 = vpack.c.b16 %v572, %v571
      %v591 = vpack.c.b16 %v574, %v573
      %v592 = vpack.c.b16 %v576, %v575
      %609 = vmatprep.subr.bf16.mxu0 0
      %610 = vmatpush1.bf16.msra.mxu0 %v577
      %611 = vmatprep.subr.bf16.mxu0 0
      %612 = vmatpush1.bf16.msra.mxu0 %v578
      %613 = vmatprep.subr.bf16.mxu0 0
      %614 = vmatpush1.bf16.msra.mxu0 %v579
      %615 = vmatprep.subr.bf16.mxu0 0
      %616 = vmatpush1.bf16.msra.mxu0 %v580
      %617 = vmatprep.subr.bf16.mxu0 0
      %618 = vmatpush1.bf16.msra.mxu0 %v581
      %619 = vmatprep.subr.bf16.mxu0 0
      %620 = vmatpush1.bf16.msra.mxu0 %v582
      %621 = vmatprep.subr.bf16.mxu0 0
      %622 = vmatpush1.bf16.msra.mxu0 %v583
      %623 = vmatprep.subr.bf16.mxu0 0
      %624 = vmatpush1.bf16.msra.mxu0 %v584
      %625 = vmatprep.subr.bf16.mxu0 0
      %626 = vmatpush1.bf16.msra.mxu0 %v585
      %627 = vmatprep.subr.bf16.mxu0 0
      %628 = vmatpush1.bf16.msra.mxu0 %v586
      %629 = vmatprep.subr.bf16.mxu0 0
      %630 = vmatpush1.bf16.msra.mxu0 %v587
      %631 = vmatprep.subr.bf16.mxu0 0
      %632 = vmatpush1.bf16.msra.mxu0 %v588
      %633 = vmatprep.subr.bf16.mxu0 0
      %634 = vmatpush1.bf16.msra.mxu0 %v589
      %635 = vmatprep.subr.bf16.mxu0 0
      %636 = vmatpush1.bf16.msra.mxu0 %v590
      %637 = vmatprep.subr.bf16.mxu0 0
      %638 = vmatpush1.bf16.msra.mxu0 %v591
      %639 = vmatprep.subr.bf16.mxu0 0
      %640 = vmatpush1.bf16.msra.mxu0 %v592
      %641 = vmatprep.mubr.bf16.mxu0 %v322
      %642 = vmatmul.mubr.bf16.gmra.mrb[0].mxu0 %v321
      %v643 = vpop.f32.mrb[0].mxu0
      %v644 = vadd.f32 %v491, %v643
      %v645 = vpop.f32.mrb[0].mxu0
      %v646 = vpop.f32.mrb[0].mxu0
      %v647 = vadd.f32 %v494, %v646
      %v648 = vpop.f32.mrb[0].mxu0
      %649 = vmatprep.mubr.bf16.mxu0 %v508
      %650 = vmatmul.mubr.bf16.gmra.mrb[0].mxu0 %v507
      %v651 = vpop.f32.mrb[0].mxu0
      %v652 = vadd.f32 %v499, %v651
      %v653 = vpop.f32.mrb[0].mxu0
      %v654 = vpop.f32.mrb[0].mxu0
      %v655 = vpop.f32.mrb[0].mxu0
      %656 = vdwg.mxu0
      %v657 = vld [vmem:[%s230] sm:$0xcc]
      %v658 = vld [vmem:[%s230 + $0x8] sm:$0xff]
      %v659 = vld [vmem:[%s230 + $0x10] sm:$0xff]
      %v660 = vld [vmem:[%s230 + $0x18] sm:$0x11]
      %s661 = scalar_lea.vmem %s1, 256
      %v662 = vld [vmem:[%s661] sm:$0xf]
      %v663 = vld [vmem:[%s661 + $0x4] sm:$0xf]
      %v664 = vld [vmem:[%s661 + $0x8] sm:$0xf]
      %v665 = vld [vmem:[%s661 + $0xc] sm:$0xf]
      %v666 = vld [vmem:[%s661 + $0x10] sm:$0xf]
      %v667 = vld [vmem:[%s661 + $0x14] sm:$0xf]
      %v668 = vld [vmem:[%s661 + $0x18] sm:$0xf]
      %v669 = vld [vmem:[%s661 + $0x1c] sm:$0xf]
      %v670 = vld [vmem:[%s661 + $0x20] sm:$0xf]
      %v671 = vld [vmem:[%s661 + $0x24] sm:$0xf]
      %v672 = vld [vmem:[%s661 + $0x28] sm:$0xf]
      %v673 = vld [vmem:[%s661 + $0x2c] sm:$0xf]
      %v674 = vld [vmem:[%s661 + $0x30] sm:$0xf]
      %v675 = vld [vmem:[%s661 + $0x34] sm:$0xf]
      %v676 = vld [vmem:[%s661 + $0x38] sm:$0xf]
      %v677 = vld [vmem:[%s661 + $0x3c] sm:$0xf]
      %v678 = vld [vmem:[%s661 + $0x40] sm:$0xf]
      %v679 = vld [vmem:[%s661 + $0x44] sm:$0xf]
      %v680 = vld [vmem:[%s661 + $0x48] sm:$0xf]
      %v681 = vld [vmem:[%s661 + $0x4c] sm:$0xf]
      %v682 = vld [vmem:[%s661 + $0x50] sm:$0xf]
      %v683 = vld [vmem:[%s661 + $0x54] sm:$0xf]
      %v684 = vld [vmem:[%s661 + $0x58] sm:$0xf]
      %v685 = vld [vmem:[%s661 + $0x5c] sm:$0xf]
      %v686 = vld [vmem:[%s661 + $0x60] sm:$0xf]
      %v687 = vld [vmem:[%s661 + $0x64] sm:$0xf]
      %v688 = vld [vmem:[%s661 + $0x68] sm:$0xf]
      %v689 = vld [vmem:[%s661 + $0x6c] sm:$0xf]
      %v690 = vld [vmem:[%s661 + $0x70] sm:$0xf]
      %v691 = vld [vmem:[%s661 + $0x74] sm:$0xf]
      %v692 = vld [vmem:[%s661 + $0x78] sm:$0xf]
      %v693 = vld [vmem:[%s661 + $0x7c] sm:$0xf]
      %v698 = vunpack.c.l.b16 %v657
      %v699 = vunpack.c.h.b16 %v657
      %v700 = vunpack.c.l.b16 %v658
      %v701 = vunpack.c.h.b16 %v658
      %v702 = vunpack.c.l.b16 %v659
      %v703 = vunpack.c.h.b16 %v659
      %v704 = vunpack.c.l.b16 %v660
      %v705 = vunpack.c.h.b16 %v660
      %v706 = vpack.c.b16 %v700, %v698
      %v707 = vpack.c.b16 %v701, %v699
      %v708 = vpack.c.b16 %v704, %v702
      %v709 = vpack.c.b16 %v705, %v703
      %vm710 = vsmask.f32 5376
      %v712 = vshrl.u32 %v706, 16
      %v714 = vrot.slane %v712, 2
      %v715 = vshll.u32 %v706, 16
      %v717 = vrot.slane %v715, 3
      %v718 = vor.u32 %v714, %v717
      %v720 = vshrl.u32 %v708, 16
      %v722 = vrot.slane %v720, 2
      %v723 = vshll.u32 %v708, 16
      %v725 = vrot.slane %v723, 3
      %v726 = vor.u32 %v722, %v725
      %v727 = vsel %vm710, %v718, %v726
      %v729 = vshrl.u32 %v707, 16
      %v731 = vrot.slane %v729, 2
      %v732 = vshll.u32 %v707, 16
      %v734 = vrot.slane %v732, 3
      %v735 = vor.u32 %v731, %v734
      %v737 = vshrl.u32 %v709, 16
      %v739 = vrot.slane %v737, 2
      %v740 = vshll.u32 %v709, 16
      %v742 = vrot.slane %v740, 3
      %v743 = vor.u32 %v739, %v742
      %v744 = vsel %vm710, %v735, %v743
      %v781 = vunpack.c.l.b16 %v662
      %v782 = vunpack.c.l.b16 %v663
      %v783 = vunpack.c.l.b16 %v664
      %v784 = vunpack.c.l.b16 %v665
      %v785 = vunpack.c.l.b16 %v666
      %v786 = vunpack.c.l.b16 %v667
      %v787 = vunpack.c.l.b16 %v668
      %v788 = vunpack.c.l.b16 %v669
      %v789 = vunpack.c.l.b16 %v670
      %v790 = vunpack.c.l.b16 %v671
      %v791 = vunpack.c.l.b16 %v672
      %v792 = vunpack.c.l.b16 %v673
      %v793 = vunpack.c.l.b16 %v674
      %v794 = vunpack.c.l.b16 %v675
      %v795 = vunpack.c.l.b16 %v676
      %v796 = vunpack.c.l.b16 %v677
      %v797 = vunpack.c.l.b16 %v678
      %v798 = vunpack.c.l.b16 %v679
      %v799 = vunpack.c.l.b16 %v680
      %v800 = vunpack.c.l.b16 %v681
      %v801 = vunpack.c.l.b16 %v682
      %v802 = vunpack.c.l.b16 %v683
      %v803 = vunpack.c.l.b16 %v684
      %v804 = vunpack.c.l.b16 %v685
      %v805 = vunpack.c.l.b16 %v686
      %v806 = vunpack.c.l.b16 %v687
      %v807 = vunpack.c.l.b16 %v688
      %v808 = vunpack.c.l.b16 %v689
      %v809 = vunpack.c.l.b16 %v690
      %v810 = vunpack.c.l.b16 %v691
      %v811 = vunpack.c.l.b16 %v692
      %v812 = vunpack.c.l.b16 %v693
      %v813 = vpack.c.b16 %v782, %v781
      %v814 = vpack.c.b16 %v784, %v783
      %v815 = vpack.c.b16 %v786, %v785
      %v816 = vpack.c.b16 %v788, %v787
      %v817 = vpack.c.b16 %v790, %v789
      %v818 = vpack.c.b16 %v792, %v791
      %v819 = vpack.c.b16 %v794, %v793
      %v820 = vpack.c.b16 %v796, %v795
      %v821 = vpack.c.b16 %v798, %v797
      %v822 = vpack.c.b16 %v800, %v799
      %v823 = vpack.c.b16 %v802, %v801
      %v824 = vpack.c.b16 %v804, %v803
      %v825 = vpack.c.b16 %v806, %v805
      %v826 = vpack.c.b16 %v808, %v807
      %v827 = vpack.c.b16 %v810, %v809
      %v828 = vpack.c.b16 %v812, %v811
      %845 = vmatprep.subr.bf16.mxu0 0
      %846 = vmatpush1.bf16.msra.mxu0 %v813
      %847 = vmatprep.subr.bf16.mxu0 0
      %848 = vmatpush1.bf16.msra.mxu0 %v814
      %849 = vmatprep.subr.bf16.mxu0 0
      %850 = vmatpush1.bf16.msra.mxu0 %v815
      %851 = vmatprep.subr.bf16.mxu0 0
      %852 = vmatpush1.bf16.msra.mxu0 %v816
      %853 = vmatprep.subr.bf16.mxu0 0
      %854 = vmatpush1.bf16.msra.mxu0 %v817
      %855 = vmatprep.subr.bf16.mxu0 0
      %856 = vmatpush1.bf16.msra.mxu0 %v818
      %857 = vmatprep.subr.bf16.mxu0 0
      %858 = vmatpush1.bf16.msra.mxu0 %v819
      %859 = vmatprep.subr.bf16.mxu0 0
      %860 = vmatpush1.bf16.msra.mxu0 %v820
      %861 = vmatprep.subr.bf16.mxu0 0
      %862 = vmatpush1.bf16.msra.mxu0 %v821
      %863 = vmatprep.subr.bf16.mxu0 0
      %864 = vmatpush1.bf16.msra.mxu0 %v822
      %865 = vmatprep.subr.bf16.mxu0 0
      %866 = vmatpush1.bf16.msra.mxu0 %v823
      %867 = vmatprep.subr.bf16.mxu0 0
      %868 = vmatpush1.bf16.msra.mxu0 %v824
      %869 = vmatprep.subr.bf16.mxu0 0
      %870 = vmatpush1.bf16.msra.mxu0 %v825
      %871 = vmatprep.subr.bf16.mxu0 0
      %872 = vmatpush1.bf16.msra.mxu0 %v826
      %873 = vmatprep.subr.bf16.mxu0 0
      %874 = vmatpush1.bf16.msra.mxu0 %v827
      %875 = vmatprep.subr.bf16.mxu0 0
      %876 = vmatpush1.bf16.msra.mxu0 %v828
      %877 = vmatprep.mubr.bf16.mxu0 %v744
      %878 = vmatmul.mubr.bf16.gmra.mrb[0].mxu0 %v727
      %v879 = vpop.f32.mrb[0].mxu0
      %v880 = vadd.f32 0.0, %v879
      %v881 = vpop.f32.mrb[0].mxu0
      %v882 = vpop.f32.mrb[0].mxu0
      %v883 = vadd.f32 0.0, %v882
      %v884 = vpop.f32.mrb[0].mxu0
      %885 = vmatprep.mubr.bf16.mxu0 %v743
      %886 = vmatmul.mubr.bf16.gmra.mrb[0].mxu0 %v726
      %v887 = vpop.f32.mrb[0].mxu0
      %v888 = vadd.f32 0.0, %v887
      %v889 = vpop.f32.mrb[0].mxu0
      %v890 = vpop.f32.mrb[0].mxu0
      %v891 = vpop.f32.mrb[0].mxu0
      %892 = vdwg.mxu0
      %v893 = vadd.f32 %v644, %v880
      %v894 = vadd.f32 %v647, %v883
      %v895 = vadd.f32 %v652, %v888
      %v896 = vld [vmem:[%s230] sm:$0x88]
      %s897 = scalar_lea.vmem %s1, 384
      %v898 = vld [vmem:[%s897] sm:$0xf]
      %v899 = vld [vmem:[%s897 + $0x4] sm:$0xf]
      %v900 = vld [vmem:[%s897 + $0x8] sm:$0xf]
      %v901 = vld [vmem:[%s897 + $0xc] sm:$0xf]
      %v902 = vld [vmem:[%s897 + $0x10] sm:$0xf]
      %v903 = vld [vmem:[%s897 + $0x14] sm:$0xf]
      %v904 = vld [vmem:[%s897 + $0x18] sm:$0xf]
      %v905 = vld [vmem:[%s897 + $0x1c] sm:$0xf]
      %v906 = vld [vmem:[%s897 + $0x20] sm:$0xf]
      %v907 = vld [vmem:[%s897 + $0x24] sm:$0xf]
      %v908 = vld [vmem:[%s897 + $0x28] sm:$0xf]
      %v909 = vld [vmem:[%s897 + $0x2c] sm:$0xf]
      %v910 = vld [vmem:[%s897 + $0x30] sm:$0xf]
      %v911 = vld [vmem:[%s897 + $0x34] sm:$0xf]
      %v912 = vld [vmem:[%s897 + $0x38] sm:$0xf]
      %v913 = vld [vmem:[%s897 + $0x3c] sm:$0xf]
      %v914 = vld [vmem:[%s897 + $0x40] sm:$0xf]
      %v915 = vld [vmem:[%s897 + $0x44] sm:$0xf]
      %v916 = vld [vmem:[%s897 + $0x48] sm:$0xf]
      %v917 = vld [vmem:[%s897 + $0x4c] sm:$0xf]
      %v918 = vld [vmem:[%s897 + $0x50] sm:$0xf]
      %v919 = vld [vmem:[%s897 + $0x54] sm:$0xf]
      %v920 = vld [vmem:[%s897 + $0x58] sm:$0xf]
      %v921 = vld [vmem:[%s897 + $0x5c] sm:$0xf]
      %v922 = vld [vmem:[%s897 + $0x60] sm:$0xf]
      %v923 = vld [vmem:[%s897 + $0x64] sm:$0xf]
      %v924 = vld [vmem:[%s897 + $0x68] sm:$0xf]
      %v925 = vld [vmem:[%s897 + $0x6c] sm:$0xf]
      %v926 = vld [vmem:[%s897 + $0x70] sm:$0xf]
      %v927 = vld [vmem:[%s897 + $0x74] sm:$0xf]
      %v928 = vld [vmem:[%s897 + $0x78] sm:$0xf]
      %v929 = vld [vmem:[%s897 + $0x7c] sm:$0xf]
      %v931 = vunpack.c.l.b16 %v896
      %v932 = vunpack.c.h.b16 %v896
      %v933 = vpack.c.b16 %v700, %v931
      %v934 = vpack.c.b16 %v701, %v932
      %vm935 = vcmask 1044480
      %v936 = vrot.slane %v933, 3
      %v937 = vrot.slane %v708, 3
      %v938 = vsel %vm935, %v936, %v937
      %v939 = vrot.slane %v934, 3
      %v940 = vrot.slane %v709, 3
      %v941 = vsel %vm935, %v939, %v940
      %v978 = vunpack.c.l.b16 %v898
      %v979 = vunpack.c.l.b16 %v899
      %v980 = vunpack.c.l.b16 %v900
      %v981 = vunpack.c.l.b16 %v901
      %v982 = vunpack.c.l.b16 %v902
      %v983 = vunpack.c.l.b16 %v903
      %v984 = vunpack.c.l.b16 %v904
      %v985 = vunpack.c.l.b16 %v905
      %v986 = vunpack.c.l.b16 %v906
      %v987 = vunpack.c.l.b16 %v907
      %v988 = vunpack.c.l.b16 %v908
      %v989 = vunpack.c.l.b16 %v909
      %v990 = vunpack.c.l.b16 %v910
      %v991 = vunpack.c.l.b16 %v911
      %v992 = vunpack.c.l.b16 %v912
      %v993 = vunpack.c.l.b16 %v913
      %v994 = vunpack.c.l.b16 %v914
      %v995 = vunpack.c.l.b16 %v915
      %v996 = vunpack.c.l.b16 %v916
      %v997 = vunpack.c.l.b16 %v917
      %v998 = vunpack.c.l.b16 %v918
      %v999 = vunpack.c.l.b16 %v919
      %v1000 = vunpack.c.l.b16 %v920
      %v1001 = vunpack.c.l.b16 %v921
      %v1002 = vunpack.c.l.b16 %v922
      %v1003 = vunpack.c.l.b16 %v923
      %v1004 = vunpack.c.l.b16 %v924
      %v1005 = vunpack.c.l.b16 %v925
      %v1006 = vunpack.c.l.b16 %v926
      %v1007 = vunpack.c.l.b16 %v927
      %v1008 = vunpack.c.l.b16 %v928
      %v1009 = vunpack.c.l.b16 %v929
      %v1010 = vpack.c.b16 %v979, %v978
      %v1011 = vpack.c.b16 %v981, %v980
      %v1012 = vpack.c.b16 %v983, %v982
      %v1013 = vpack.c.b16 %v985, %v984
      %v1014 = vpack.c.b16 %v987, %v986
      %v1015 = vpack.c.b16 %v989, %v988
      %v1016 = vpack.c.b16 %v991, %v990
      %v1017 = vpack.c.b16 %v993, %v992
      %v1018 = vpack.c.b16 %v995, %v994
      %v1019 = vpack.c.b16 %v997, %v996
      %v1020 = vpack.c.b16 %v999, %v998
      %v1021 = vpack.c.b16 %v1001, %v1000
      %v1022 = vpack.c.b16 %v1003, %v1002
      %v1023 = vpack.c.b16 %v1005, %v1004
      %v1024 = vpack.c.b16 %v1007, %v1006
      %v1025 = vpack.c.b16 %v1009, %v1008
      %1042 = vmatprep.subr.bf16.mxu0 0
      %1043 = vmatpush1.bf16.msra.mxu0 %v1010
      %1044 = vmatprep.subr.bf16.mxu0 0
      %1045 = vmatpush1.bf16.msra.mxu0 %v1011
      %1046 = vmatprep.subr.bf16.mxu0 0
      %1047 = vmatpush1.bf16.msra.mxu0 %v1012
      %1048 = vmatprep.subr.bf16.mxu0 0
      %1049 = vmatpush1.bf16.msra.mxu0 %v1013
      %1050 = vmatprep.subr.bf16.mxu0 0
      %1051 = vmatpush1.bf16.msra.mxu0 %v1014
      %1052 = vmatprep.subr.bf16.mxu0 0
      %1053 = vmatpush1.bf16.msra.mxu0 %v1015
      %1054 = vmatprep.subr.bf16.mxu0 0
      %1055 = vmatpush1.bf16.msra.mxu0 %v1016
      %1056 = vmatprep.subr.bf16.mxu0 0
      %1057 = vmatpush1.bf16.msra.mxu0 %v1017
      %1058 = vmatprep.subr.bf16.mxu0 0
      %1059 = vmatpush1.bf16.msra.mxu0 %v1018
      %1060 = vmatprep.subr.bf16.mxu0 0
      %1061 = vmatpush1.bf16.msra.mxu0 %v1019
      %1062 = vmatprep.subr.bf16.mxu0 0
      %1063 = vmatpush1.bf16.msra.mxu0 %v1020
      %1064 = vmatprep.subr.bf16.mxu0 0
      %1065 = vmatpush1.bf16.msra.mxu0 %v1021
      %1066 = vmatprep.subr.bf16.mxu0 0
      %1067 = vmatpush1.bf16.msra.mxu0 %v1022
      %1068 = vmatprep.subr.bf16.mxu0 0
      %1069 = vmatpush1.bf16.msra.mxu0 %v1023
      %1070 = vmatprep.subr.bf16.mxu0 0
      %1071 = vmatpush1.bf16.msra.mxu0 %v1024
      %1072 = vmatprep.subr.bf16.mxu0 0
      %1073 = vmatpush1.bf16.msra.mxu0 %v1025
      %1074 = vmatprep.mubr.bf16.mxu0 %v941
      %1075 = vmatmul.mubr.bf16.gmra.mrb[0].mxu0 %v938
      %v1076 = vpop.f32.mrb[0].mxu0
      %v1077 = vadd.f32 0.0, %v1076
      %v1078 = vpop.f32.mrb[0].mxu0
      %v1079 = vpop.f32.mrb[0].mxu0
      %v1080 = vadd.f32 0.0, %v1079
      %v1081 = vpop.f32.mrb[0].mxu0
      %1082 = vmatprep.mubr.bf16.mxu0 %v940
      %1083 = vmatmul.mubr.bf16.gmra.mrb[0].mxu0 %v937
      %v1084 = vpop.f32.mrb[0].mxu0
      %v1085 = vadd.f32 0.0, %v1084
      %v1086 = vpop.f32.mrb[0].mxu0
      %v1087 = vpop.f32.mrb[0].mxu0
      %v1088 = vpop.f32.mrb[0].mxu0
      %1089 = vdwg.mxu0
      %v1090 = vadd.f32 %v893, %v1077
      %v1091 = vadd.f32 %v894, %v1080
      %v1092 = vadd.f32 %v895, %v1085
      %v1093 = vpack.c.bf16 %v1091, %v1090
      %v1094 = vpack.c.bf16 %v1092, %v1092
      %v1097 = vunpack.c.l.b16 %v1093
      %v1098 = vunpack.c.h.b16 %v1093
      %v1099 = vunpack.c.l.b16 %v1094
      %v1100 = vpack.c.b16 %v1097, %v1097
      %v1101 = vpack.c.b16 %v1098, %v1098
      %v1102 = vpack.c.b16 %v1099, %v1099
      %1106 = vst [vmem:[%s235] sm:$0xf] %v1100
      %1107 = vst [vmem:[%s235 + $0x4] sm:$0xf] %v1101
      %1108 = vst [vmem:[%s235 + $0x8] sm:$0x3] %v1102
      %v1109 = vld [vmem:[%s2] sm:$0xff]
      %v1110 = vld [vmem:[%s2 + $0x8] sm:$0xff]
      %v1111 = vld [vmem:[%s2 + $0x10] sm:$0xf]
      %1113 = vset.pattern.permute.xlu0 0
      %1114 = vperm.xlu0 %1113, %v1109
      %v1115 = vpop.permute.xlu0 %1114
      %1118 = vset.pattern.permute.xlu0 0
      %1119 = vperm.xlu0 %1118, %v1110
      %v1120 = vpop.permute.xlu0 %1119
      %1123 = vset.pattern.permute.xlu0 0
      %1124 = vperm.xlu0 %1123, %v1111
      %v1125 = vpop.permute.xlu0 %1124
      %v1127 = vmul.f32 %v1090, %v1115
      %v1128 = vmul.f32 %v1091, %v1120
      %v1129 = vmul.f32 %v1092, %v1125
      %v1130 = vadd.f32 %v1127, %v1128
      %vm1131 = vcmask 1043456
      %v1132 = vsel %vm1131, %v1129, 0.0
      %v1133 = vadd.f32 %v1130, %v1132
      %v1134 = vrot.slane %v1133, 4
      %v1135 = vadd.f32 %v1133, %v1134
      %v1136 = vrot.slane %v1135, 2
      %v1137 = vadd.f32 %v1135, %v1136
      %v1138 = vrot.slane %v1137, 1
      %v1139 = vadd.f32 %v1137, %v1138
      %v1140 = vmul.f32 %v1127, %v1090
      %v1141 = vmul.f32 %v1128, %v1091
      %v1142 = vmul.f32 %v1129, %v1092
      %v1143 = vadd.f32 %v1140, %v1141
      %v1144 = vsel %vm1131, %v1142, 0.0
      %v1145 = vadd.f32 %v1143, %v1144
      %v1146 = vrot.slane %v1145, 4
      %v1147 = vadd.f32 %v1145, %v1146
      %v1148 = vrot.slane %v1147, 2
      %v1149 = vadd.f32 %v1147, %v1148
      %v1150 = vrot.slane %v1149, 1
      %v1151 = vadd.f32 %v1149, %v1150
      %1152 = vst [vmem:[%s238] sm:$0x1] %v1139
      %1153 = vst [vmem:[%s241] sm:$0x1] %v1151
      %p1154 = scmp.lt.s32.totalorder %s17, 1
      %s1155 = scalar_select %p1154, %s17, 1
      %s1156 = smul.addr %s1155, 3
      %s1157 = smul.addr %s1156, 4
      %s1158 = scalar_lea.vmem %s3, %s1157
      %p1159 = scmp.lt.s32.totalorder %s17, 1
      %s1160 = scalar_select %p1159, %s17, 1
      %s1161 = scalar_lea.vmem %s4, %s1160
      %p1162 = scmp.lt.s32.totalorder %s17, 1
      %s1163 = scalar_select %p1162, %s17, 1
      %s1164 = scalar_lea.vmem %s5, %s1163
      // Predicated region
      $region33: #{feature_extractor.6} parent=31 // pred_check
        %p1165 = pneg %p103
      $region34: #{feature_extractor.6} parent=31 // pred_check_branch
        %1167 = sbr.rel (%p1165) target = $region36
      $region35: #{feature_extractor.6} parent=31 // pred_region
        _
      $region36: #{feature_extractor.6} parent=31 // pred_fallthru
        _
      // Predicated region
      $region37: #{feature_extractor.6} parent=31 // pred_check
        %p1168 = pneg %p129
      $region38: #{feature_extractor.6} parent=31 // pred_check_branch
        %1170 = sbr.rel (%p1168) target = $region40
      $region39: #{feature_extractor.6} parent=31 // pred_region
        _
      $region40: #{feature_extractor.6} parent=31 // pred_fallthru
        _
      // Predicated region
      $region41: #{feature_extractor.6} parent=31 // pred_check
        %p1171 = pneg %p155
      $region42: #{feature_extractor.6} parent=31 // pred_check_branch
        %1173 = sbr.rel (%p1171) target = $region44
      $region43: #{feature_extractor.6} parent=31 // pred_region
        _
      $region44: #{feature_extractor.6} parent=31 // pred_fallthru
        _
    $region32: #{feature_extractor.6} parent=5 // pred_fallthru
      _
    %p1174 = scmp.le.s32.totalorder 2, %s12
    // Predicated region
    $region45: #{feature_extractor.6} parent=5 // pred_check
      %p1175 = pneg %p1174
    $region46: #{feature_extractor.6} parent=5 // pred_check_branch
      %1177 = sbr.rel (%p1175) target = $region48
    $region47: #{feature_extractor.6} parent=5 // pred_region
      %s1178 = ssub.s32 %s12, 2
      // Predicated region
      $region49: #{feature_extractor.6} parent=47 // pred_check
        %p1179 = pneg %p109
      $region50: #{feature_extractor.6} parent=47 // pred_check_branch
        %1181 = sbr.rel (%p1179) target = $region52
      $region51: #{feature_extractor.6} parent=47 // pred_region
        %p1182 = scmp.lt.s32.totalorder %s18, 1
        %s1183 = scalar_select %p1182, %s18, 1
        %s1184 = smul.addr %s1183, 3
        %s1185 = smul.addr %s1184, 4
        %s1186 = scalar_lea.vmem %s3, %s1185
      $region52: #{feature_extractor.6} parent=47 // pred_fallthru
        _
      // Predicated region
      $region53: #{feature_extractor.6} parent=47 // pred_check
        %p1187 = pneg %p135
      $region54: #{feature_extractor.6} parent=47 // pred_check_branch
        %1189 = sbr.rel (%p1187) target = $region56
      $region55: #{feature_extractor.6} parent=47 // pred_region
        %p1190 = scmp.lt.s32.totalorder %s18, 1
        %s1191 = scalar_select %p1190, %s18, 1
        %s1192 = scalar_lea.vmem %s4, %s1191
      $region56: #{feature_extractor.6} parent=47 // pred_fallthru
        _
      // Predicated region
      $region57: #{feature_extractor.6} parent=47 // pred_check
        %p1193 = pneg %p161
      $region58: #{feature_extractor.6} parent=47 // pred_check_branch
        %1195 = sbr.rel (%p1193) target = $region60
      $region59: #{feature_extractor.6} parent=47 // pred_region
        %p1196 = scmp.lt.s32.totalorder %s18, 1
        %s1197 = scalar_select %p1196, %s18, 1
        %s1198 = scalar_lea.vmem %s5, %s1197
      $region60: #{feature_extractor.6} parent=47 // pred_fallthru
        _
    $region48: #{feature_extractor.6} parent=5 // pred_fallthru
      _
  $region6: #{feature_extractor.6} parent=0 // loop_footer
    %s16 = sadd.s32 1, %s12
  $region7: #{feature_extractor.6} parent=0 // loop_footer_branch
    %11 = sbr.rel target = $region3
  $region8: #{feature_extractor.6} parent=0 // loop_exit
    _

// kernel: feature_extractor.9
$region0: #{feature_extractor.9}
  #allocation0 [shape = 'u32[]', space=smem, size = 0x4, offset = 0x4, fixed_abs, tag = 'smem constant byte address 0x4 - core index']
  #allocation1 [shape = 'u32[144,128]{1,0:T(1,128)}', space=vmem, size = 0x12000, scoped, tag = 'internal scratch']
  %s0 = inlined_call_operand.vmem [shape: bf16[12,128], index: 0, kind: input, shape index: {}]
  %s1 = inlined_call_operand.vmem [shape: f32[1,128], index: 1, kind: input, shape index: {}]
  %s2 = inlined_call_operand.vmem [shape: f32[1,128], index: 2, kind: input, shape index: {}]
  %s3 = inlined_call_operand.vmem [shape: f32[12,128], index: 3, kind: output, shape index: {}]
  %s4 = sld [smem:[#allocation0]]
  $region22: #{feature_extractor.9} parent=0
    _
  %s6 = ssub.s32 1, %s4
  %s7 = scalar_select 0, %s6, %s4
  // Predicated region
  $region2: #{feature_extractor.9} parent=0 // pred_check
    _
  $region3: #{feature_extractor.9} parent=0 // pred_check_branch
    %9 = sbr.rel (0) target = $region5
  $region4: #{feature_extractor.9} parent=0 // pred_region
    _
  $region5: #{feature_extractor.9} parent=0 // pred_fallthru
    _
  // Predicated region
  $region6: #{feature_extractor.9} parent=0 // pred_check
    _
  $region7: #{feature_extractor.9} parent=0 // pred_check_branch
    %11 = sbr.rel (0) target = $region9
  $region8: #{feature_extractor.9} parent=0 // pred_region
    _
  $region9: #{feature_extractor.9} parent=0 // pred_fallthru
    _
  // Predicated region
  $region10: #{feature_extractor.9} parent=0 // pred_check
    _
  $region11: #{feature_extractor.9} parent=0 // pred_check_branch
    %13 = sbr.rel (0) target = $region13
  $region12: #{feature_extractor.9} parent=0 // pred_region
    _
  $region13: #{feature_extractor.9} parent=0 // pred_fallthru
    _
  %v14 = vld [vmem:[%s0] sm:$0xf]
  %v15 = vld [vmem:[%s0 + $0x4] sm:$0x3]
  %v16 = vunpack.c.l.bf16 %v14
  %v17 = vunpack.c.l.bf16 %v15
  %v18 = vld [vmem:[%s1] sm:$0x1]
  %v20 = vlaneseq
  %v21 = vshrl.u32 %v20, 7
  %v22 = vsub.s32 0, %v21
  %v23 = vrot.slane %v18, %v22
  %v25 = vmul.f32 %v16, %v23
  %v26 = vmul.f32 %v17, %v23
  %v27 = vld [vmem:[%s2] sm:$0x1]
  %v29 = vlaneseq
  %v30 = vshrl.u32 %v29, 7
  %v31 = vsub.s32 0, %v30
  %v32 = vrot.slane %v27, %v31
  %v34 = vadd.f32 %v25, %v32
  %v35 = vadd.f32 %v26, %v32
  %vm36 = vcmp.gt.f32.partialorder %v34, 0.0
  %vm37 = vcmp.gt.f32.partialorder %v35, 0.0
  %v38 = vmul.f32 %v34, 0.2
  %v39 = vmul.f32 %v35, 0.2
  %v40 = vsel %vm36, %v34, %v38
  %v41 = vsel %vm37, %v35, %v39
  %42 = vst [vmem:[%s3] sm:$0xff] %v40
  %43 = vst [vmem:[%s3 + $0x8] sm:$0xf] %v41
  // Predicated region
  $region14: #{feature_extractor.9} parent=0 // pred_check
    _
  $region15: #{feature_extractor.9} parent=0 // pred_check_branch
    %45 = sbr.rel (0) target = $region17
  $region16: #{feature_extractor.9} parent=0 // pred_region
    _
  $region17: #{feature_extractor.9} parent=0 // pred_fallthru
    _
  // Predicated region
  $region18: #{feature_extractor.9} parent=0 // pred_check
    _
  $region19: #{feature_extractor.9} parent=0 // pred_check_branch
    %47 = sbr.rel (0) target = $region21
  $region20: #{feature_extractor.9} parent=0 // pred_region
    _
  $region21: #{feature_extractor.9} parent=0 // pred_fallthru
    _

// kernel: feature_extractor.8
$region0: #{feature_extractor.8}
  #allocation0 [shape = 'u32[]', space=smem, size = 0x4, offset = 0x4, fixed_abs, tag = 'smem constant byte address 0x4 - core index']
  #allocation1 [shape = 'u32[144,128]{1,0:T(1,128)}', space=vmem, size = 0x12000, scoped, tag = 'internal scratch']
  %s0 = inlined_call_operand.vmem [shape: bf16[2,12,512], index: 0, kind: input, shape index: {}]
  %s1 = inlined_call_operand.vmem [shape: bf16[4,512,128], index: 1, kind: input, shape index: {}]
  %s2 = inlined_call_operand.vmem [shape: f32[6,1], index: 2, kind: input, shape index: {}]
  %s3 = inlined_call_operand.vmem [shape: bf16[2,6,128], index: 3, kind: output, shape index: {0}]
  %s4 = inlined_call_operand.vmem [shape: f32[2,1,128], index: 4, kind: output, shape index: {1}]
  %s5 = inlined_call_operand.vmem [shape: f32[2,1,128], index: 5, kind: output, shape index: {2}]
  %6 = xla_tuple %s3, %s4, %s5
  %s7 = sld [smem:[#allocation0]]
  $region61: #{feature_extractor.8} parent=0
    _
  %s9 = ssub.s32 1, %s7
  %s10 = scalar_select 0, %s9, %s7
  loop: start=0, step=1, limit=4
  $region2: #{feature_extractor.8} parent=0 // loop_pre_header
    _
  $region3: #{feature_extractor.8} parent=0 // loop_header
    %s12 = sphi 0, %s16
    %p13 = scmp.ge.s32.totalorder %s12, 4
    %s22 = sphi 0, %s24
    %s25 = sphi 0, %s22
    %s26 = sphi 0, %s25
    %s42 = sphi 0, %s26
    %s46 = sphi 0, %s46
    %s48 = sphi 0, %s46
    %s49 = sphi 0, %s48
    %s63 = sphi 0, %s49
    %s67 = sphi 0, %s67
    %s69 = sphi 0, %s67
    %s70 = sphi 0, %s69
    %s84 = sphi 0, %s70
    %s90 = sphi 0, %s92
    %s93 = sphi 0, %s90
    %s94 = sphi 0, %s93
    %s110 = sphi 0, %s94
    %s116 = sphi 0, %s118
    %s119 = sphi 0, %s116
    %s120 = sphi 0, %s119
    %s136 = sphi 0, %s120
    %s142 = sphi 0, %s144
    %s145 = sphi 0, %s142
    %s146 = sphi 0, %s145
    %s162 = sphi 0, %s146
  $region4: #{feature_extractor.8} parent=0 // loop_header_branch
    %15 = sbr.rel (%p13) target = $region8
  $region5: #{feature_extractor.8} parent=0 // loop_body
    %s17 = ssub.s32 %s12, 1
    %s18 = ssub.s32 %s12, 2
    %s19 = sadd.s32 %s12, 1
    %s20 = ssub.s32 %s12, %s19
    %p21 = scmp.eq.s32.totalorder %s20, 0
    %s23 = sadd.s32 %s22, 1
    %s24 = scalar_select %p21, %s22, %s23
    %p27 = pneg %p21
    %p28 = scmp.eq.s32.totalorder %s12, 1
    %p29 = por %p27, %p28
    %p30 = scmp.ne.s32.totalorder %s22, %s25
    %p31 = scmp.eq.s32.totalorder %s12, 0
    %p32 = por %p30, %p31
    %p33 = scmp.ne.s32.totalorder %s22, %s25
    %p34 = scmp.eq.s32.totalorder %s17, 1
    %p35 = por %p33, %p34
    %p36 = scmp.ne.s32.totalorder %s25, %s26
    %p37 = scmp.eq.s32.totalorder %s17, 0
    %p38 = por %p36, %p37
    %p39 = scmp.ne.s32.totalorder %s25, %s26
    %p40 = scmp.eq.s32.totalorder %s18, 1
    %p41 = por %p39, %p40
    %p43 = scmp.ne.s32.totalorder %s26, %s42
    %p44 = scmp.eq.s32.totalorder %s18, 0
    %p45 = por %p43, %p44
    %s47 = sadd.s32 %s46, 1
    %p50 = scmp.eq.s32.totalorder %s12, 1
    %p51 = scmp.ne.s32.totalorder %s46, %s48
    %p52 = scmp.eq.s32.totalorder %s12, 0
    %p53 = por %p51, %p52
    %p54 = scmp.ne.s32.totalorder %s46, %s48
    %p55 = scmp.eq.s32.totalorder %s17, 1
    %p56 = por %p54, %p55
    %p57 = scmp.ne.s32.totalorder %s48, %s49
    %p58 = scmp.eq.s32.totalorder %s17, 0
    %p59 = por %p57, %p58
    %p60 = scmp.ne.s32.totalorder %s48, %s49
    %p61 = scmp.eq.s32.totalorder %s18, 1
    %p62 = por %p60, %p61
    %p64 = scmp.ne.s32.totalorder %s49, %s63
    %p65 = scmp.eq.s32.totalorder %s18, 0
    %p66 = por %p64, %p65
    %s68 = sadd.s32 %s67, 1
    %p71 = scmp.eq.s32.totalorder %s12, 1
    %p72 = scmp.ne.s32.totalorder %s67, %s69
    %p73 = scmp.eq.s32.totalorder %s12, 0
    %p74 = por %p72, %p73
    %p75 = scmp.ne.s32.totalorder %s67, %s69
    %p76 = scmp.eq.s32.totalorder %s17, 1
    %p77 = por %p75, %p76
    %p78 = scmp.ne.s32.totalorder %s69, %s70
    %p79 = scmp.eq.s32.totalorder %s17, 0
    %p80 = por %p78, %p79
    %p81 = scmp.ne.s32.totalorder %s69, %s70
    %p82 = scmp.eq.s32.totalorder %s18, 1
    %p83 = por %p81, %p82
    %p85 = scmp.ne.s32.totalorder %s70, %s84
    %p86 = scmp.eq.s32.totalorder %s18, 0
    %p87 = por %p85, %p86
    %s88 = ssub.s32 %s12, %s19
    %p89 = scmp.eq.s32.totalorder %s88, 0
    %s91 = sadd.s32 %s90, 1
    %s92 = scalar_select %p89, %s90, %s91
    %p95 = pneg %p89
    %p96 = scmp.eq.s32.totalorder %s12, 1
    %p97 = por %p95, %p96
    %p98 = scmp.ne.s32.totalorder %s90, %s93
    %p99 = scmp.eq.s32.totalorder %s12, 0
    %p100 = por %p98, %p99
    %p101 = scmp.ne.s32.totalorder %s90, %s93
    %p102 = scmp.eq.s32.totalorder %s17, 1
    %p103 = por %p101, %p102
    %p104 = scmp.ne.s32.totalorder %s93, %s94
    %p105 = scmp.eq.s32.totalorder %s17, 0
    %p106 = por %p104, %p105
    %p107 = scmp.ne.s32.totalorder %s93, %s94
    %p108 = scmp.eq.s32.totalorder %s18, 1
    %p109 = por %p107, %p108
    %p111 = scmp.ne.s32.totalorder %s94, %s110
    %p112 = scmp.eq.s32.totalorder %s18, 0
    %p113 = por %p111, %p112
    %s114 = ssub.s32 %s12, %s19
    %p115 = scmp.eq.s32.totalorder %s114, 0
    %s117 = sadd.s32 %s116, 1
    %s118 = scalar_select %p115, %s116, %s117
    %p121 = pneg %p115
    %p122 = scmp.eq.s32.totalorder %s12, 1
    %p123 = por %p121, %p122
    %p124 = scmp.ne.s32.totalorder %s116, %s119
    %p125 = scmp.eq.s32.totalorder %s12, 0
    %p126 = por %p124, %p125
    %p127 = scmp.ne.s32.totalorder %s116, %s119
    %p128 = scmp.eq.s32.totalorder %s17, 1
    %p129 = por %p127, %p128
    %p130 = scmp.ne.s32.totalorder %s119, %s120
    %p131 = scmp.eq.s32.totalorder %s17, 0
    %p132 = por %p130, %p131
    %p133 = scmp.ne.s32.totalorder %s119, %s120
    %p134 = scmp.eq.s32.totalorder %s18, 1
    %p135 = por %p133, %p134
    %p137 = scmp.ne.s32.totalorder %s120, %s136
    %p138 = scmp.eq.s32.totalorder %s18, 0
    %p139 = por %p137, %p138
    %s140 = ssub.s32 %s12, %s19
    %p141 = scmp.eq.s32.totalorder %s140, 0
    %s143 = sadd.s32 %s142, 1
    %s144 = scalar_select %p141, %s142, %s143
    %p147 = pneg %p141
    %p148 = scmp.eq.s32.totalorder %s12, 1
    %p149 = por %p147, %p148
    %p150 = scmp.ne.s32.totalorder %s142, %s145
    %p151 = scmp.eq.s32.totalorder %s12, 0
    %p152 = por %p150, %p151
    %p153 = scmp.ne.s32.totalorder %s142, %s145
    %p154 = scmp.eq.s32.totalorder %s17, 1
    %p155 = por %p153, %p154
    %p156 = scmp.ne.s32.totalorder %s145, %s146
    %p157 = scmp.eq.s32.totalorder %s17, 0
    %p158 = por %p156, %p157
    %p159 = scmp.ne.s32.totalorder %s145, %s146
    %p160 = scmp.eq.s32.totalorder %s18, 1
    %p161 = por %p159, %p160
    %p163 = scmp.ne.s32.totalorder %s146, %s162
    %p164 = scmp.eq.s32.totalorder %s18, 0
    %p165 = por %p163, %p164
    %p166 = scmp.le.s32.totalorder 1, %s12
    %p167 = scmp.lt.s32.totalorder %s12, 3
    %p168 = pnand %p166, %p167
    %p169 = pneg %p168
    // Predicated region
    $region9: #{feature_extractor.8} parent=5 // pred_check
      _
    $region10: #{feature_extractor.8} parent=5 // pred_check_branch
      %171 = sbr.rel (%p168) target = $region12
    $region11: #{feature_extractor.8} parent=5 // pred_region
      %s172 = ssub.s32 %s12, 1
      // Predicated region
      $region13: #{feature_extractor.8} parent=11 // pred_check
        %p173 = pneg %p59
      $region14: #{feature_extractor.8} parent=11 // pred_check_branch
        %175 = sbr.rel (%p173) target = $region16
      $region15: #{feature_extractor.8} parent=11 // pred_region
        _
      $region16: #{feature_extractor.8} parent=11 // pred_fallthru
        _
      // Predicated region
      $region17: #{feature_extractor.8} parent=11 // pred_check
        %p176 = pneg %p80
      $region18: #{feature_extractor.8} parent=11 // pred_check_branch
        %178 = sbr.rel (%p176) target = $region20
      $region19: #{feature_extractor.8} parent=11 // pred_region
        _
      $region20: #{feature_extractor.8} parent=11 // pred_fallthru
        _
    $region12: #{feature_extractor.8} parent=5 // pred_fallthru
      _
    %p179 = scmp.lt.s32.totalorder %s12, 2
    // Predicated region
    $region21: #{feature_extractor.8} parent=5 // pred_check
      %p180 = pneg %p179
    $region22: #{feature_extractor.8} parent=5 // pred_check_branch
      %182 = sbr.rel (%p180) target = $region24
    $region23: #{feature_extractor.8} parent=5 // pred_region
      // Predicated region
      $region25: #{feature_extractor.8} parent=23 // pred_check
        %p183 = pneg %p32
      $region26: #{feature_extractor.8} parent=23 // pred_check_branch
        %185 = sbr.rel (%p183) target = $region28
      $region27: #{feature_extractor.8} parent=23 // pred_region
        %p186 = scmp.lt.s32.totalorder %s12, 1
        %s187 = scalar_select %p186, %s12, 1
        %s188 = smul.addr %s187, 8
        %s189 = smul.addr %s188, 4
        %s190 = scalar_lea.vmem %s0, %s189
      $region28: #{feature_extractor.8} parent=23 // pred_fallthru
        _
    $region24: #{feature_extractor.8} parent=5 // pred_fallthru
      _
    %p191 = scmp.le.s32.totalorder 1, %s12
    %p192 = scmp.lt.s32.totalorder %s12, 3
    %p193 = pnand %p191, %p192
    %p194 = pneg %p193
    // Predicated region
    $region29: #{feature_extractor.8} parent=5 // pred_check
      _
    $region30: #{feature_extractor.8} parent=5 // pred_check_branch
      %196 = sbr.rel (%p193) target = $region32
    $region31: #{feature_extractor.8} parent=5 // pred_region
      %s197 = ssub.s32 %s12, 1
      %p198 = scmp.lt.s32.totalorder %s17, 1
      %s199 = scalar_select %p198, %s17, 1
      %s200 = smul.addr %s199, 8
      %s201 = smul.addr %s200, 4
      %s202 = scalar_lea.vmem %s0, %s201
      %p203 = pneg %p38
      %p204 = pneg %p35
      %p205 = pneg %p59
      %p206 = pneg %p56
      %p207 = pneg %p80
      %p208 = pneg %p77
      %p209 = pneg %p106
      %p210 = pneg %p103
      %p211 = scmp.lt.s32.totalorder %s17, 1
      %s212 = scalar_select %p211, %s17, 1
      %s213 = smul.addr %s212, 4
      %s214 = scalar_lea.vmem %s3, %s213
      %p215 = pneg %p132
      %p216 = pneg %p129
      %p217 = scmp.lt.s32.totalorder %s17, 1
      %s218 = scalar_select %p217, %s17, 1
      %s219 = scalar_lea.vmem %s4, %s218
      %p220 = pneg %p158
      %p221 = pneg %p155
      %p222 = scmp.lt.s32.totalorder %s17, 1
      %s223 = scalar_select %p222, %s17, 1
      %s224 = scalar_lea.vmem %s5, %s223
      %p225 = scmp.lt.s32.totalorder %s17, 1
      %s226 = scalar_select %p225, %s17, 1
      %s227 = smul.addr %s226, 8
      %s228 = smul.addr %s227, 4
      %s229 = scalar_lea.vmem %s0, %s228
      %p230 = scmp.lt.s32.totalorder %s17, 1
      %s231 = scalar_select %p230, %s17, 1
      %s232 = smul.addr %s231, 4
      %s233 = scalar_lea.vmem %s3, %s232
      %p234 = scmp.lt.s32.totalorder %s17, 1
      %s235 = scalar_select %p234, %s17, 1
      %s236 = scalar_lea.vmem %s4, %s235
      %p237 = scmp.lt.s32.totalorder %s17, 1
      %s238 = scalar_select %p237, %s17, 1
      %s239 = scalar_lea.vmem %s5, %s238
      %v241 = vld [vmem:[%s229] sm:$0x77]
      %v242 = vld [vmem:[%s229 + $0x8] sm:$0x77]
      %v243 = vld [vmem:[%s1] sm:$0xf]
      %v244 = vld [vmem:[%s1 + $0x4] sm:$0xf]
      %v245 = vld [vmem:[%s1 + $0x8] sm:$0xf]
      %v246 = vld [vmem:[%s1 + $0xc] sm:$0xf]
      %v247 = vld [vmem:[%s1 + $0x10] sm:$0xf]
      %v248 = vld [vmem:[%s1 + $0x14] sm:$0xf]
      %v249 = vld [vmem:[%s1 + $0x18] sm:$0xf]
      %v250 = vld [vmem:[%s1 + $0x1c] sm:$0xf]
      %v251 = vld [vmem:[%s1 + $0x20] sm:$0xf]
      %v252 = vld [vmem:[%s1 + $0x24] sm:$0xf]
      %v253 = vld [vmem:[%s1 + $0x28] sm:$0xf]
      %v254 = vld [vmem:[%s1 + $0x2c] sm:$0xf]
      %v255 = vld [vmem:[%s1 + $0x30] sm:$0xf]
      %v256 = vld [vmem:[%s1 + $0x34] sm:$0xf]
      %v257 = vld [vmem:[%s1 + $0x38] sm:$0xf]
      %v258 = vld [vmem:[%s1 + $0x3c] sm:$0xf]
      %v259 = vld [vmem:[%s1 + $0x40] sm:$0xf]
      %v260 = vld [vmem:[%s1 + $0x44] sm:$0xf]
      %v261 = vld [vmem:[%s1 + $0x48] sm:$0xf]
      %v262 = vld [vmem:[%s1 + $0x4c] sm:$0xf]
      %v263 = vld [vmem:[%s1 + $0x50] sm:$0xf]
      %v264 = vld [vmem:[%s1 + $0x54] sm:$0xf]
      %v265 = vld [vmem:[%s1 + $0x58] sm:$0xf]
      %v266 = vld [vmem:[%s1 + $0x5c] sm:$0xf]
      %v267 = vld [vmem:[%s1 + $0x60] sm:$0xf]
      %v268 = vld [vmem:[%s1 + $0x64] sm:$0xf]
      %v269 = vld [vmem:[%s1 + $0x68] sm:$0xf]
      %v270 = vld [vmem:[%s1 + $0x6c] sm:$0xf]
      %v271 = vld [vmem:[%s1 + $0x70] sm:$0xf]
      %v272 = vld [vmem:[%s1 + $0x74] sm:$0xf]
      %v273 = vld [vmem:[%s1 + $0x78] sm:$0xf]
      %v274 = vld [vmem:[%s1 + $0x7c] sm:$0xf]
      %v275 = vld [vmem:[%s1 + $0x80] sm:$0xf]
      %v276 = vld [vmem:[%s1 + $0x84] sm:$0xf]
      %v277 = vld [vmem:[%s1 + $0x88] sm:$0xf]
      %v278 = vld [vmem:[%s1 + $0x8c] sm:$0xf]
      %v279 = vld [vmem:[%s1 + $0x90] sm:$0xf]
      %v280 = vld [vmem:[%s1 + $0x94] sm:$0xf]
      %v281 = vld [vmem:[%s1 + $0x98] sm:$0xf]
      %v282 = vld [vmem:[%s1 + $0x9c] sm:$0xf]
      %v283 = vld [vmem:[%s1 + $0xa0] sm:$0xf]
      %v284 = vld [vmem:[%s1 + $0xa4] sm:$0xf]
      %v285 = vld [vmem:[%s1 + $0xa8] sm:$0xf]
      %v286 = vld [vmem:[%s1 + $0xac] sm:$0xf]
      %v287 = vld [vmem:[%s1 + $0xb0] sm:$0xf]
      %v288 = vld [vmem:[%s1 + $0xb4] sm:$0xf]
      %v289 = vld [vmem:[%s1 + $0xb8] sm:$0xf]
      %v290 = vld [vmem:[%s1 + $0xbc] sm:$0xf]
      %v291 = vld [vmem:[%s1 + $0xc0] sm:$0xf]
      %v292 = vld [vmem:[%s1 + $0xc4] sm:$0xf]
      %v293 = vld [vmem:[%s1 + $0xc8] sm:$0xf]
      %v294 = vld [vmem:[%s1 + $0xcc] sm:$0xf]
      %v295 = vld [vmem:[%s1 + $0xd0] sm:$0xf]
      %v296 = vld [vmem:[%s1 + $0xd4] sm:$0xf]
      %v297 = vld [vmem:[%s1 + $0xd8] sm:$0xf]
      %v298 = vld [vmem:[%s1 + $0xdc] sm:$0xf]
      %v299 = vld [vmem:[%s1 + $0xe0] sm:$0xf]
      %v300 = vld [vmem:[%s1 + $0xe4] sm:$0xf]
      %v301 = vld [vmem:[%s1 + $0xe8] sm:$0xf]
      %v302 = vld [vmem:[%s1 + $0xec] sm:$0xf]
      %v303 = vld [vmem:[%s1 + $0xf0] sm:$0xf]
      %v304 = vld [vmem:[%s1 + $0xf4] sm:$0xf]
      %v305 = vld [vmem:[%s1 + $0xf8] sm:$0xf]
      %v306 = vld [vmem:[%s1 + $0xfc] sm:$0xf]
      %v307 = vld [vmem:[%s229] sm:$0xff]
      %v308 = vld [vmem:[%s229 + $0x8] sm:$0xff]
      %s309 = scalar_lea.vmem %s1, 256
      %v310 = vld [vmem:[%s309] sm:$0xf]
      %v311 = vld [vmem:[%s309 + $0x4] sm:$0xf]
      %v312 = vld [vmem:[%s309 + $0x8] sm:$0xf]
      %v313 = vld [vmem:[%s309 + $0xc] sm:$0xf]
      %v314 = vld [vmem:[%s309 + $0x10] sm:$0xf]
      %v315 = vld [vmem:[%s309 + $0x14] sm:$0xf]
      %v316 = vld [vmem:[%s309 + $0x18] sm:$0xf]
      %v317 = vld [vmem:[%s309 + $0x1c] sm:$0xf]
      %v318 = vld [vmem:[%s309 + $0x20] sm:$0xf]
      %v319 = vld [vmem:[%s309 + $0x24] sm:$0xf]
      %v320 = vld [vmem:[%s309 + $0x28] sm:$0xf]
      %v321 = vld [vmem:[%s309 + $0x2c] sm:$0xf]
      %v322 = vld [vmem:[%s309 + $0x30] sm:$0xf]
      %v323 = vld [vmem:[%s309 + $0x34] sm:$0xf]
      %v324 = vld [vmem:[%s309 + $0x38] sm:$0xf]
      %v325 = vld [vmem:[%s309 + $0x3c] sm:$0xf]
      %v326 = vld [vmem:[%s309 + $0x40] sm:$0xf]
      %v327 = vld [vmem:[%s309 + $0x44] sm:$0xf]
      %v328 = vld [vmem:[%s309 + $0x48] sm:$0xf]
      %v329 = vld [vmem:[%s309 + $0x4c] sm:$0xf]
      %v330 = vld [vmem:[%s309 + $0x50] sm:$0xf]
      %v331 = vld [vmem:[%s309 + $0x54] sm:$0xf]
      %v332 = vld [vmem:[%s309 + $0x58] sm:$0xf]
      %v333 = vld [vmem:[%s309 + $0x5c] sm:$0xf]
      %v334 = vld [vmem:[%s309 + $0x60] sm:$0xf]
      %v335 = vld [vmem:[%s309 + $0x64] sm:$0xf]
      %v336 = vld [vmem:[%s309 + $0x68] sm:$0xf]
      %v337 = vld [vmem:[%s309 + $0x6c] sm:$0xf]
      %v338 = vld [vmem:[%s309 + $0x70] sm:$0xf]
      %v339 = vld [vmem:[%s309 + $0x74] sm:$0xf]
      %v340 = vld [vmem:[%s309 + $0x78] sm:$0xf]
      %v341 = vld [vmem:[%s309 + $0x7c] sm:$0xf]
      %v342 = vld [vmem:[%s309 + $0x80] sm:$0xf]
      %v343 = vld [vmem:[%s309 + $0x84] sm:$0xf]
      %v344 = vld [vmem:[%s309 + $0x88] sm:$0xf]
      %v345 = vld [vmem:[%s309 + $0x8c] sm:$0xf]
      %v346 = vld [vmem:[%s309 + $0x90] sm:$0xf]
      %v347 = vld [vmem:[%s309 + $0x94] sm:$0xf]
      %v348 = vld [vmem:[%s309 + $0x98] sm:$0xf]
      %v349 = vld [vmem:[%s309 + $0x9c] sm:$0xf]
      %v350 = vld [vmem:[%s309 + $0xa0] sm:$0xf]
      %v351 = vld [vmem:[%s309 + $0xa4] sm:$0xf]
      %v352 = vld [vmem:[%s309 + $0xa8] sm:$0xf]
      %v353 = vld [vmem:[%s309 + $0xac] sm:$0xf]
      %v354 = vld [vmem:[%s309 + $0xb0] sm:$0xf]
      %v355 = vld [vmem:[%s309 + $0xb4] sm:$0xf]
      %v356 = vld [vmem:[%s309 + $0xb8] sm:$0xf]
      %v357 = vld [vmem:[%s309 + $0xbc] sm:$0xf]
      %v358 = vld [vmem:[%s309 + $0xc0] sm:$0xf]
      %v359 = vld [vmem:[%s309 + $0xc4] sm:$0xf]
      %v360 = vld [vmem:[%s309 + $0xc8] sm:$0xf]
      %v361 = vld [vmem:[%s309 + $0xcc] sm:$0xf]
      %v362 = vld [vmem:[%s309 + $0xd0] sm:$0xf]
      %v363 = vld [vmem:[%s309 + $0xd4] sm:$0xf]
      %v364 = vld [vmem:[%s309 + $0xd8] sm:$0xf]
      %v365 = vld [vmem:[%s309 + $0xdc] sm:$0xf]
      %v366 = vld [vmem:[%s309 + $0xe0] sm:$0xf]
      %v367 = vld [vmem:[%s309 + $0xe4] sm:$0xf]
      %v368 = vld [vmem:[%s309 + $0xe8] sm:$0xf]
      %v369 = vld [vmem:[%s309 + $0xec] sm:$0xf]
      %v370 = vld [vmem:[%s309 + $0xf0] sm:$0xf]
      %v371 = vld [vmem:[%s309 + $0xf4] sm:$0xf]
      %v372 = vld [vmem:[%s309 + $0xf8] sm:$0xf]
      %v373 = vld [vmem:[%s309 + $0xfc] sm:$0xf]
      %v376 = vunpack.c.l.b16 %v307
      %v377 = vunpack.c.h.b16 %v307
      %v378 = vunpack.c.l.b16 %v308
      %v379 = vunpack.c.h.b16 %v308
      %v380 = vpack.c.b16 %v376, %v376
      %v381 = vpack.c.b16 %v377, %v377
      %v382 = vpack.c.b16 %v378, %v378
      %v383 = vpack.c.b16 %v379, %v379
      %v385 = vshrl.u32 %v380, 16
      %v387 = vshll.u32 %v380, 16
      %v389 = vrot.slane %v387, 1
      %v390 = vor.u32 %v385, %v389
      %v392 = vshrl.u32 %v381, 16
      %v394 = vshll.u32 %v381, 16
      %v396 = vrot.slane %v394, 1
      %v397 = vor.u32 %v392, %v396
      %v399 = vshrl.u32 %v382, 16
      %v401 = vshll.u32 %v382, 16
      %v403 = vrot.slane %v401, 1
      %v404 = vor.u32 %v399, %v403
      %v406 = vshrl.u32 %v383, 16
      %v408 = vshll.u32 %v383, 16
      %v410 = vrot.slane %v408, 1
      %v411 = vor.u32 %v406, %v410
      %v480 = vunpack.c.l.b16 %v310
      %v481 = vunpack.c.l.b16 %v311
      %v482 = vunpack.c.l.b16 %v312
      %v483 = vunpack.c.l.b16 %v313
      %v484 = vunpack.c.l.b16 %v314
      %v485 = vunpack.c.l.b16 %v315
      %v486 = vunpack.c.l.b16 %v316
      %v487 = vunpack.c.l.b16 %v317
      %v488 = vunpack.c.l.b16 %v318
      %v489 = vunpack.c.l.b16 %v319
      %v490 = vunpack.c.l.b16 %v320
      %v491 = vunpack.c.l.b16 %v321
      %v492 = vunpack.c.l.b16 %v322
      %v493 = vunpack.c.l.b16 %v323
      %v494 = vunpack.c.l.b16 %v324
      %v495 = vunpack.c.l.b16 %v325
      %v496 = vunpack.c.l.b16 %v326
      %v497 = vunpack.c.l.b16 %v327
      %v498 = vunpack.c.l.b16 %v328
      %v499 = vunpack.c.l.b16 %v329
      %v500 = vunpack.c.l.b16 %v330
      %v501 = vunpack.c.l.b16 %v331
      %v502 = vunpack.c.l.b16 %v332
      %v503 = vunpack.c.l.b16 %v333
      %v504 = vunpack.c.l.b16 %v334
      %v505 = vunpack.c.l.b16 %v335
      %v506 = vunpack.c.l.b16 %v336
      %v507 = vunpack.c.l.b16 %v337
      %v508 = vunpack.c.l.b16 %v338
      %v509 = vunpack.c.l.b16 %v339
      %v510 = vunpack.c.l.b16 %v340
      %v511 = vunpack.c.l.b16 %v341
      %v512 = vunpack.c.l.b16 %v342
      %v513 = vunpack.c.l.b16 %v343
      %v514 = vunpack.c.l.b16 %v344
      %v515 = vunpack.c.l.b16 %v345
      %v516 = vunpack.c.l.b16 %v346
      %v517 = vunpack.c.l.b16 %v347
      %v518 = vunpack.c.l.b16 %v348
      %v519 = vunpack.c.l.b16 %v349
      %v520 = vunpack.c.l.b16 %v350
      %v521 = vunpack.c.l.b16 %v351
      %v522 = vunpack.c.l.b16 %v352
      %v523 = vunpack.c.l.b16 %v353
      %v524 = vunpack.c.l.b16 %v354
      %v525 = vunpack.c.l.b16 %v355
      %v526 = vunpack.c.l.b16 %v356
      %v527 = vunpack.c.l.b16 %v357
      %v528 = vunpack.c.l.b16 %v358
      %v529 = vunpack.c.l.b16 %v359
      %v530 = vunpack.c.l.b16 %v360
      %v531 = vunpack.c.l.b16 %v361
      %v532 = vunpack.c.l.b16 %v362
      %v533 = vunpack.c.l.b16 %v363
      %v534 = vunpack.c.l.b16 %v364
      %v535 = vunpack.c.l.b16 %v365
      %v536 = vunpack.c.l.b16 %v366
      %v537 = vunpack.c.l.b16 %v367
      %v538 = vunpack.c.l.b16 %v368
      %v539 = vunpack.c.l.b16 %v369
      %v540 = vunpack.c.l.b16 %v370
      %v541 = vunpack.c.l.b16 %v371
      %v542 = vunpack.c.l.b16 %v372
      %v543 = vunpack.c.l.b16 %v373
      %v544 = vpack.c.b16 %v481, %v480
      %v545 = vpack.c.b16 %v483, %v482
      %v546 = vpack.c.b16 %v485, %v484
      %v547 = vpack.c.b16 %v487, %v486
      %v548 = vpack.c.b16 %v489, %v488
      %v549 = vpack.c.b16 %v491, %v490
      %v550 = vpack.c.b16 %v493, %v492
      %v551 = vpack.c.b16 %v495, %v494
      %v552 = vpack.c.b16 %v497, %v496
      %v553 = vpack.c.b16 %v499, %v498
      %v554 = vpack.c.b16 %v501, %v500
      %v555 = vpack.c.b16 %v503, %v502
      %v556 = vpack.c.b16 %v505, %v504
      %v557 = vpack.c.b16 %v507, %v506
      %v558 = vpack.c.b16 %v509, %v508
      %v559 = vpack.c.b16 %v511, %v510
      %v560 = vpack.c.b16 %v513, %v512
      %v561 = vpack.c.b16 %v515, %v514
      %v562 = vpack.c.b16 %v517, %v516
      %v563 = vpack.c.b16 %v519, %v518
      %v564 = vpack.c.b16 %v521, %v520
      %v565 = vpack.c.b16 %v523, %v522
      %v566 = vpack.c.b16 %v525, %v524
      %v567 = vpack.c.b16 %v527, %v526
      %v568 = vpack.c.b16 %v529, %v528
      %v569 = vpack.c.b16 %v531, %v530
      %v570 = vpack.c.b16 %v533, %v532
      %v571 = vpack.c.b16 %v535, %v534
      %v572 = vpack.c.b16 %v537, %v536
      %v573 = vpack.c.b16 %v539, %v538
      %v574 = vpack.c.b16 %v541, %v540
      %v575 = vpack.c.b16 %v543, %v542
      %608 = vmatprep.subr.bf16.mxu0 0
      %609 = vmatpush1.bf16.msra.mxu0 %v544
      %610 = vmatprep.subr.bf16.mxu0 0
      %611 = vmatpush1.bf16.msra.mxu0 %v545
      %612 = vmatprep.subr.bf16.mxu0 0
      %613 = vmatpush1.bf16.msra.mxu0 %v546
      %614 = vmatprep.subr.bf16.mxu0 0
      %615 = vmatpush1.bf16.msra.mxu0 %v547
      %616 = vmatprep.subr.bf16.mxu0 0
      %617 = vmatpush1.bf16.msra.mxu0 %v548
      %618 = vmatprep.subr.bf16.mxu0 0
      %619 = vmatpush1.bf16.msra.mxu0 %v549
      %620 = vmatprep.subr.bf16.mxu0 0
      %621 = vmatpush1.bf16.msra.mxu0 %v550
      %622 = vmatprep.subr.bf16.mxu0 0
      %623 = vmatpush1.bf16.msra.mxu0 %v551
      %624 = vmatprep.subr.bf16.mxu0 0
      %625 = vmatpush1.bf16.msra.mxu0 %v552
      %626 = vmatprep.subr.bf16.mxu0 0
      %627 = vmatpush1.bf16.msra.mxu0 %v553
      %628 = vmatprep.subr.bf16.mxu0 0
      %629 = vmatpush1.bf16.msra.mxu0 %v554
      %630 = vmatprep.subr.bf16.mxu0 0
      %631 = vmatpush1.bf16.msra.mxu0 %v555
      %632 = vmatprep.subr.bf16.mxu0 0
      %633 = vmatpush1.bf16.msra.mxu0 %v556
      %634 = vmatprep.subr.bf16.mxu0 0
      %635 = vmatpush1.bf16.msra.mxu0 %v557
      %636 = vmatprep.subr.bf16.mxu0 0
      %637 = vmatpush1.bf16.msra.mxu0 %v558
      %638 = vmatprep.subr.bf16.mxu0 0
      %639 = vmatpush1.bf16.msra.mxu0 %v559
      %640 = vmatprep.mubr.bf16.mxu0 %v397
      %641 = vmatmul.mubr.bf16.gmra.mrb[0].mxu0 %v390
      %v642 = vpop.f32.mrb[0].mxu0
      %v643 = vadd.f32 0.0, %v642
      %v644 = vpop.f32.mrb[0].mxu0
      %v645 = vpop.f32.mrb[0].mxu0
      %v646 = vpop.f32.mrb[0].mxu0
      %647 = vdwg.mxu0
      %648 = vmatprep.subr.bf16.mxu0 0
      %649 = vmatpush1.bf16.msra.mxu0 %v560
      %650 = vmatprep.subr.bf16.mxu0 0
      %651 = vmatpush1.bf16.msra.mxu0 %v561
      %652 = vmatprep.subr.bf16.mxu0 0
      %653 = vmatpush1.bf16.msra.mxu0 %v562
      %654 = vmatprep.subr.bf16.mxu0 0
      %655 = vmatpush1.bf16.msra.mxu0 %v563
      %656 = vmatprep.subr.bf16.mxu0 0
      %657 = vmatpush1.bf16.msra.mxu0 %v564
      %658 = vmatprep.subr.bf16.mxu0 0
      %659 = vmatpush1.bf16.msra.mxu0 %v565
      %660 = vmatprep.subr.bf16.mxu0 0
      %661 = vmatpush1.bf16.msra.mxu0 %v566
      %662 = vmatprep.subr.bf16.mxu0 0
      %663 = vmatpush1.bf16.msra.mxu0 %v567
      %664 = vmatprep.subr.bf16.mxu0 0
      %665 = vmatpush1.bf16.msra.mxu0 %v568
      %666 = vmatprep.subr.bf16.mxu0 0
      %667 = vmatpush1.bf16.msra.mxu0 %v569
      %668 = vmatprep.subr.bf16.mxu0 0
      %669 = vmatpush1.bf16.msra.mxu0 %v570
      %670 = vmatprep.subr.bf16.mxu0 0
      %671 = vmatpush1.bf16.msra.mxu0 %v571
      %672 = vmatprep.subr.bf16.mxu0 0
      %673 = vmatpush1.bf16.msra.mxu0 %v572
      %674 = vmatprep.subr.bf16.mxu0 0
      %675 = vmatpush1.bf16.msra.mxu0 %v573
      %676 = vmatprep.subr.bf16.mxu0 0
      %677 = vmatpush1.bf16.msra.mxu0 %v574
      %678 = vmatprep.subr.bf16.mxu0 0
      %679 = vmatpush1.bf16.msra.mxu0 %v575
      %680 = vmatprep.mubr.bf16.mxu0 %v411
      %681 = vmatmul.mubr.bf16.gmra.mrb[0].mxu0 %v404
      %v682 = vpop.f32.mrb[0].mxu0
      %v683 = vadd.f32 %v643, %v682
      %v684 = vpop.f32.mrb[0].mxu0
      %v685 = vpop.f32.mrb[0].mxu0
      %v686 = vpop.f32.mrb[0].mxu0
      %687 = vdwg.mxu0
      %v690 = vunpack.c.l.b16 %v241
      %v691 = vunpack.c.h.b16 %v241
      %v692 = vunpack.c.l.b16 %v242
      %v693 = vunpack.c.h.b16 %v242
      %v694 = vpack.c.b16 %v690, %v690
      %v695 = vpack.c.b16 %v691, %v691
      %v696 = vpack.c.b16 %v692, %v692
      %v697 = vpack.c.b16 %v693, %v693
      %v766 = vunpack.c.l.b16 %v243
      %v767 = vunpack.c.l.b16 %v244
      %v768 = vunpack.c.l.b16 %v245
      %v769 = vunpack.c.l.b16 %v246
      %v770 = vunpack.c.l.b16 %v247
      %v771 = vunpack.c.l.b16 %v248
      %v772 = vunpack.c.l.b16 %v249
      %v773 = vunpack.c.l.b16 %v250
      %v774 = vunpack.c.l.b16 %v251
      %v775 = vunpack.c.l.b16 %v252
      %v776 = vunpack.c.l.b16 %v253
      %v777 = vunpack.c.l.b16 %v254
      %v778 = vunpack.c.l.b16 %v255
      %v779 = vunpack.c.l.b16 %v256
      %v780 = vunpack.c.l.b16 %v257
      %v781 = vunpack.c.l.b16 %v258
      %v782 = vunpack.c.l.b16 %v259
      %v783 = vunpack.c.l.b16 %v260
      %v784 = vunpack.c.l.b16 %v261
      %v785 = vunpack.c.l.b16 %v262
      %v786 = vunpack.c.l.b16 %v263
      %v787 = vunpack.c.l.b16 %v264
      %v788 = vunpack.c.l.b16 %v265
      %v789 = vunpack.c.l.b16 %v266
      %v790 = vunpack.c.l.b16 %v267
      %v791 = vunpack.c.l.b16 %v268
      %v792 = vunpack.c.l.b16 %v269
      %v793 = vunpack.c.l.b16 %v270
      %v794 = vunpack.c.l.b16 %v271
      %v795 = vunpack.c.l.b16 %v272
      %v796 = vunpack.c.l.b16 %v273
      %v797 = vunpack.c.l.b16 %v274
      %v798 = vunpack.c.l.b16 %v275
      %v799 = vunpack.c.l.b16 %v276
      %v800 = vunpack.c.l.b16 %v277
      %v801 = vunpack.c.l.b16 %v278
      %v802 = vunpack.c.l.b16 %v279
      %v803 = vunpack.c.l.b16 %v280
      %v804 = vunpack.c.l.b16 %v281
      %v805 = vunpack.c.l.b16 %v282
      %v806 = vunpack.c.l.b16 %v283
      %v807 = vunpack.c.l.b16 %v284
      %v808 = vunpack.c.l.b16 %v285
      %v809 = vunpack.c.l.b16 %v286
      %v810 = vunpack.c.l.b16 %v287
      %v811 = vunpack.c.l.b16 %v288
      %v812 = vunpack.c.l.b16 %v289
      %v813 = vunpack.c.l.b16 %v290
      %v814 = vunpack.c.l.b16 %v291
      %v815 = vunpack.c.l.b16 %v292
      %v816 = vunpack.c.l.b16 %v293
      %v817 = vunpack.c.l.b16 %v294
      %v818 = vunpack.c.l.b16 %v295
      %v819 = vunpack.c.l.b16 %v296
      %v820 = vunpack.c.l.b16 %v297
      %v821 = vunpack.c.l.b16 %v298
      %v822 = vunpack.c.l.b16 %v299
      %v823 = vunpack.c.l.b16 %v300
      %v824 = vunpack.c.l.b16 %v301
      %v825 = vunpack.c.l.b16 %v302
      %v826 = vunpack.c.l.b16 %v303
      %v827 = vunpack.c.l.b16 %v304
      %v828 = vunpack.c.l.b16 %v305
      %v829 = vunpack.c.l.b16 %v306
      %v830 = vpack.c.b16 %v767, %v766
      %v831 = vpack.c.b16 %v769, %v768
      %v832 = vpack.c.b16 %v771, %v770
      %v833 = vpack.c.b16 %v773, %v772
      %v834 = vpack.c.b16 %v775, %v774
      %v835 = vpack.c.b16 %v777, %v776
      %v836 = vpack.c.b16 %v779, %v778
      %v837 = vpack.c.b16 %v781, %v780
      %v838 = vpack.c.b16 %v783, %v782
      %v839 = vpack.c.b16 %v785, %v784
      %v840 = vpack.c.b16 %v787, %v786
      %v841 = vpack.c.b16 %v789, %v788
      %v842 = vpack.c.b16 %v791, %v790
      %v843 = vpack.c.b16 %v793, %v792
      %v844 = vpack.c.b16 %v795, %v794
      %v845 = vpack.c.b16 %v797, %v796
      %v846 = vpack.c.b16 %v799, %v798
      %v847 = vpack.c.b16 %v801, %v800
      %v848 = vpack.c.b16 %v803, %v802
      %v849 = vpack.c.b16 %v805, %v804
      %v850 = vpack.c.b16 %v807, %v806
      %v851 = vpack.c.b16 %v809, %v808
      %v852 = vpack.c.b16 %v811, %v810
      %v853 = vpack.c.b16 %v813, %v812
      %v854 = vpack.c.b16 %v815, %v814
      %v855 = vpack.c.b16 %v817, %v816
      %v856 = vpack.c.b16 %v819, %v818
      %v857 = vpack.c.b16 %v821, %v820
      %v858 = vpack.c.b16 %v823, %v822
      %v859 = vpack.c.b16 %v825, %v824
      %v860 = vpack.c.b16 %v827, %v826
      %v861 = vpack.c.b16 %v829, %v828
      %894 = vmatprep.subr.bf16.mxu0 0
      %895 = vmatpush1.bf16.msra.mxu0 %v830
      %896 = vmatprep.subr.bf16.mxu0 0
      %897 = vmatpush1.bf16.msra.mxu0 %v831
      %898 = vmatprep.subr.bf16.mxu0 0
      %899 = vmatpush1.bf16.msra.mxu0 %v832
      %900 = vmatprep.subr.bf16.mxu0 0
      %901 = vmatpush1.bf16.msra.mxu0 %v833
      %902 = vmatprep.subr.bf16.mxu0 0
      %903 = vmatpush1.bf16.msra.mxu0 %v834
      %904 = vmatprep.subr.bf16.mxu0 0
      %905 = vmatpush1.bf16.msra.mxu0 %v835
      %906 = vmatprep.subr.bf16.mxu0 0
      %907 = vmatpush1.bf16.msra.mxu0 %v836
      %908 = vmatprep.subr.bf16.mxu0 0
      %909 = vmatpush1.bf16.msra.mxu0 %v837
      %910 = vmatprep.subr.bf16.mxu0 0
      %911 = vmatpush1.bf16.msra.mxu0 %v838
      %912 = vmatprep.subr.bf16.mxu0 0
      %913 = vmatpush1.bf16.msra.mxu0 %v839
      %914 = vmatprep.subr.bf16.mxu0 0
      %915 = vmatpush1.bf16.msra.mxu0 %v840
      %916 = vmatprep.subr.bf16.mxu0 0
      %917 = vmatpush1.bf16.msra.mxu0 %v841
      %918 = vmatprep.subr.bf16.mxu0 0
      %919 = vmatpush1.bf16.msra.mxu0 %v842
      %920 = vmatprep.subr.bf16.mxu0 0
      %921 = vmatpush1.bf16.msra.mxu0 %v843
      %922 = vmatprep.subr.bf16.mxu0 0
      %923 = vmatpush1.bf16.msra.mxu0 %v844
      %924 = vmatprep.subr.bf16.mxu0 0
      %925 = vmatpush1.bf16.msra.mxu0 %v845
      %926 = vmatprep.mubr.bf16.mxu0 %v695
      %927 = vmatmul.mubr.bf16.gmra.mrb[0].mxu0 %v694
      %v928 = vpop.f32.mrb[0].mxu0
      %v929 = vadd.f32 %v683, %v928
      %v930 = vpop.f32.mrb[0].mxu0
      %v931 = vpop.f32.mrb[0].mxu0
      %v932 = vpop.f32.mrb[0].mxu0
      %933 = vdwg.mxu0
      %934 = vmatprep.subr.bf16.mxu0 0
      %935 = vmatpush1.bf16.msra.mxu0 %v846
      %936 = vmatprep.subr.bf16.mxu0 0
      %937 = vmatpush1.bf16.msra.mxu0 %v847
      %938 = vmatprep.subr.bf16.mxu0 0
      %939 = vmatpush1.bf16.msra.mxu0 %v848
      %940 = vmatprep.subr.bf16.mxu0 0
      %941 = vmatpush1.bf16.msra.mxu0 %v849
      %942 = vmatprep.subr.bf16.mxu0 0
      %943 = vmatpush1.bf16.msra.mxu0 %v850
      %944 = vmatprep.subr.bf16.mxu0 0
      %945 = vmatpush1.bf16.msra.mxu0 %v851
      %946 = vmatprep.subr.bf16.mxu0 0
      %947 = vmatpush1.bf16.msra.mxu0 %v852
      %948 = vmatprep.subr.bf16.mxu0 0
      %949 = vmatpush1.bf16.msra.mxu0 %v853
      %950 = vmatprep.subr.bf16.mxu0 0
      %951 = vmatpush1.bf16.msra.mxu0 %v854
      %952 = vmatprep.subr.bf16.mxu0 0
      %953 = vmatpush1.bf16.msra.mxu0 %v855
      %954 = vmatprep.subr.bf16.mxu0 0
      %955 = vmatpush1.bf16.msra.mxu0 %v856
      %956 = vmatprep.subr.bf16.mxu0 0
      %957 = vmatpush1.bf16.msra.mxu0 %v857
      %958 = vmatprep.subr.bf16.mxu0 0
      %959 = vmatpush1.bf16.msra.mxu0 %v858
      %960 = vmatprep.subr.bf16.mxu0 0
      %961 = vmatpush1.bf16.msra.mxu0 %v859
      %962 = vmatprep.subr.bf16.mxu0 0
      %963 = vmatpush1.bf16.msra.mxu0 %v860
      %964 = vmatprep.subr.bf16.mxu0 0
      %965 = vmatpush1.bf16.msra.mxu0 %v861
      %966 = vmatprep.mubr.bf16.mxu0 %v697
      %967 = vmatmul.mubr.bf16.gmra.mrb[0].mxu0 %v696
      %v968 = vpop.f32.mrb[0].mxu0
      %v969 = vadd.f32 %v929, %v968
      %v970 = vpop.f32.mrb[0].mxu0
      %v971 = vpop.f32.mrb[0].mxu0
      %v972 = vpop.f32.mrb[0].mxu0
      %973 = vdwg.mxu0
      %v974 = vld [vmem:[%s229] sm:$0xee]
      %v975 = vld [vmem:[%s229 + $0x8] sm:$0xee]
      %v976 = vld [vmem:[%s229 + $0x10] sm:$0x11]
      %v977 = vld [vmem:[%s229 + $0x18] sm:$0x11]
      %s978 = scalar_lea.vmem %s1, 512
      %v979 = vld [vmem:[%s978] sm:$0xf]
      %v980 = vld [vmem:[%s978 + $0x4] sm:$0xf]
      %v981 = vld [vmem:[%s978 + $0x8] sm:$0xf]
      %v982 = vld [vmem:[%s978 + $0xc] sm:$0xf]
      %v983 = vld [vmem:[%s978 + $0x10] sm:$0xf]
      %v984 = vld [vmem:[%s978 + $0x14] sm:$0xf]
      %v985 = vld [vmem:[%s978 + $0x18] sm:$0xf]
      %v986 = vld [vmem:[%s978 + $0x1c] sm:$0xf]
      %v987 = vld [vmem:[%s978 + $0x20] sm:$0xf]
      %v988 = vld [vmem:[%s978 + $0x24] sm:$0xf]
      %v989 = vld [vmem:[%s978 + $0x28] sm:$0xf]
      %v990 = vld [vmem:[%s978 + $0x2c] sm:$0xf]
      %v991 = vld [vmem:[%s978 + $0x30] sm:$0xf]
      %v992 = vld [vmem:[%s978 + $0x34] sm:$0xf]
      %v993 = vld [vmem:[%s978 + $0x38] sm:$0xf]
      %v994 = vld [vmem:[%s978 + $0x3c] sm:$0xf]
      %v995 = vld [vmem:[%s978 + $0x40] sm:$0xf]
      %v996 = vld [vmem:[%s978 + $0x44] sm:$0xf]
      %v997 = vld [vmem:[%s978 + $0x48] sm:$0xf]
      %v998 = vld [vmem:[%s978 + $0x4c] sm:$0xf]
      %v999 = vld [vmem:[%s978 + $0x50] sm:$0xf]
      %v1000 = vld [vmem:[%s978 + $0x54] sm:$0xf]
      %v1001 = vld [vmem:[%s978 + $0x58] sm:$0xf]
      %v1002 = vld [vmem:[%s978 + $0x5c] sm:$0xf]
      %v1003 = vld [vmem:[%s978 + $0x60] sm:$0xf]
      %v1004 = vld [vmem:[%s978 + $0x64] sm:$0xf]
      %v1005 = vld [vmem:[%s978 + $0x68] sm:$0xf]
      %v1006 = vld [vmem:[%s978 + $0x6c] sm:$0xf]
      %v1007 = vld [vmem:[%s978 + $0x70] sm:$0xf]
      %v1008 = vld [vmem:[%s978 + $0x74] sm:$0xf]
      %v1009 = vld [vmem:[%s978 + $0x78] sm:$0xf]
      %v1010 = vld [vmem:[%s978 + $0x7c] sm:$0xf]
      %v1011 = vld [vmem:[%s978 + $0x80] sm:$0xf]
      %v1012 = vld [vmem:[%s978 + $0x84] sm:$0xf]
      %v1013 = vld [vmem:[%s978 + $0x88] sm:$0xf]
      %v1014 = vld [vmem:[%s978 + $0x8c] sm:$0xf]
      %v1015 = vld [vmem:[%s978 + $0x90] sm:$0xf]
      %v1016 = vld [vmem:[%s978 + $0x94] sm:$0xf]
      %v1017 = vld [vmem:[%s978 + $0x98] sm:$0xf]
      %v1018 = vld [vmem:[%s978 + $0x9c] sm:$0xf]
      %v1019 = vld [vmem:[%s978 + $0xa0] sm:$0xf]
      %v1020 = vld [vmem:[%s978 + $0xa4] sm:$0xf]
      %v1021 = vld [vmem:[%s978 + $0xa8] sm:$0xf]
      %v1022 = vld [vmem:[%s978 + $0xac] sm:$0xf]
      %v1023 = vld [vmem:[%s978 + $0xb0] sm:$0xf]
      %v1024 = vld [vmem:[%s978 + $0xb4] sm:$0xf]
      %v1025 = vld [vmem:[%s978 + $0xb8] sm:$0xf]
      %v1026 = vld [vmem:[%s978 + $0xbc] sm:$0xf]
      %v1027 = vld [vmem:[%s978 + $0xc0] sm:$0xf]
      %v1028 = vld [vmem:[%s978 + $0xc4] sm:$0xf]
      %v1029 = vld [vmem:[%s978 + $0xc8] sm:$0xf]
      %v1030 = vld [vmem:[%s978 + $0xcc] sm:$0xf]
      %v1031 = vld [vmem:[%s978 + $0xd0] sm:$0xf]
      %v1032 = vld [vmem:[%s978 + $0xd4] sm:$0xf]
      %v1033 = vld [vmem:[%s978 + $0xd8] sm:$0xf]
      %v1034 = vld [vmem:[%s978 + $0xdc] sm:$0xf]
      %v1035 = vld [vmem:[%s978 + $0xe0] sm:$0xf]
      %v1036 = vld [vmem:[%s978 + $0xe4] sm:$0xf]
      %v1037 = vld [vmem:[%s978 + $0xe8] sm:$0xf]
      %v1038 = vld [vmem:[%s978 + $0xec] sm:$0xf]
      %v1039 = vld [vmem:[%s978 + $0xf0] sm:$0xf]
      %v1040 = vld [vmem:[%s978 + $0xf4] sm:$0xf]
      %v1041 = vld [vmem:[%s978 + $0xf8] sm:$0xf]
      %v1042 = vld [vmem:[%s978 + $0xfc] sm:$0xf]
      %v1047 = vunpack.c.l.b16 %v974
      %v1048 = vunpack.c.h.b16 %v974
      %v1049 = vunpack.c.l.b16 %v975
      %v1050 = vunpack.c.h.b16 %v975
      %v1051 = vunpack.c.l.b16 %v976
      %v1052 = vunpack.c.h.b16 %v976
      %v1053 = vunpack.c.l.b16 %v977
      %v1054 = vunpack.c.h.b16 %v977
      %v1055 = vpack.c.b16 %v1051, %v1047
      %v1056 = vpack.c.b16 %v1052, %v1048
      %v1057 = vpack.c.b16 %v1053, %v1049
      %v1058 = vpack.c.b16 %v1054, %v1050
      %v1060 = vshrl.u32 %v1055, 16
      %v1062 = vrot.slane %v1060, 1
      %v1063 = vshll.u32 %v1055, 16
      %v1065 = vrot.slane %v1063, 2
      %v1066 = vor.u32 %v1062, %v1065
      %v1068 = vshrl.u32 %v1056, 16
      %v1070 = vrot.slane %v1068, 1
      %v1071 = vshll.u32 %v1056, 16
      %v1073 = vrot.slane %v1071, 2
      %v1074 = vor.u32 %v1070, %v1073
      %v1076 = vshrl.u32 %v1057, 16
      %v1078 = vrot.slane %v1076, 1
      %v1079 = vshll.u32 %v1057, 16
      %v1081 = vrot.slane %v1079, 2
      %v1082 = vor.u32 %v1078, %v1081
      %v1084 = vshrl.u32 %v1058, 16
      %v1086 = vrot.slane %v1084, 1
      %v1087 = vshll.u32 %v1058, 16
      %v1089 = vrot.slane %v1087, 2
      %v1090 = vor.u32 %v1086, %v1089
      %v1159 = vunpack.c.l.b16 %v979
      %v1160 = vunpack.c.l.b16 %v980
      %v1161 = vunpack.c.l.b16 %v981
      %v1162 = vunpack.c.l.b16 %v982
      %v1163 = vunpack.c.l.b16 %v983
      %v1164 = vunpack.c.l.b16 %v984
      %v1165 = vunpack.c.l.b16 %v985
      %v1166 = vunpack.c.l.b16 %v986
      %v1167 = vunpack.c.l.b16 %v987
      %v1168 = vunpack.c.l.b16 %v988
      %v1169 = vunpack.c.l.b16 %v989
      %v1170 = vunpack.c.l.b16 %v990
      %v1171 = vunpack.c.l.b16 %v991
      %v1172 = vunpack.c.l.b16 %v992
      %v1173 = vunpack.c.l.b16 %v993
      %v1174 = vunpack.c.l.b16 %v994
      %v1175 = vunpack.c.l.b16 %v995
      %v1176 = vunpack.c.l.b16 %v996
      %v1177 = vunpack.c.l.b16 %v997
      %v1178 = vunpack.c.l.b16 %v998
      %v1179 = vunpack.c.l.b16 %v999
      %v1180 = vunpack.c.l.b16 %v1000
      %v1181 = vunpack.c.l.b16 %v1001
      %v1182 = vunpack.c.l.b16 %v1002
      %v1183 = vunpack.c.l.b16 %v1003
      %v1184 = vunpack.c.l.b16 %v1004
      %v1185 = vunpack.c.l.b16 %v1005
      %v1186 = vunpack.c.l.b16 %v1006
      %v1187 = vunpack.c.l.b16 %v1007
      %v1188 = vunpack.c.l.b16 %v1008
      %v1189 = vunpack.c.l.b16 %v1009
      %v1190 = vunpack.c.l.b16 %v1010
      %v1191 = vunpack.c.l.b16 %v1011
      %v1192 = vunpack.c.l.b16 %v1012
      %v1193 = vunpack.c.l.b16 %v1013
      %v1194 = vunpack.c.l.b16 %v1014
      %v1195 = vunpack.c.l.b16 %v1015
      %v1196 = vunpack.c.l.b16 %v1016
      %v1197 = vunpack.c.l.b16 %v1017
      %v1198 = vunpack.c.l.b16 %v1018
      %v1199 = vunpack.c.l.b16 %v1019
      %v1200 = vunpack.c.l.b16 %v1020
      %v1201 = vunpack.c.l.b16 %v1021
      %v1202 = vunpack.c.l.b16 %v1022
      %v1203 = vunpack.c.l.b16 %v1023
      %v1204 = vunpack.c.l.b16 %v1024
      %v1205 = vunpack.c.l.b16 %v1025
      %v1206 = vunpack.c.l.b16 %v1026
      %v1207 = vunpack.c.l.b16 %v1027
      %v1208 = vunpack.c.l.b16 %v1028
      %v1209 = vunpack.c.l.b16 %v1029
      %v1210 = vunpack.c.l.b16 %v1030
      %v1211 = vunpack.c.l.b16 %v1031
      %v1212 = vunpack.c.l.b16 %v1032
      %v1213 = vunpack.c.l.b16 %v1033
      %v1214 = vunpack.c.l.b16 %v1034
      %v1215 = vunpack.c.l.b16 %v1035
      %v1216 = vunpack.c.l.b16 %v1036
      %v1217 = vunpack.c.l.b16 %v1037
      %v1218 = vunpack.c.l.b16 %v1038
      %v1219 = vunpack.c.l.b16 %v1039
      %v1220 = vunpack.c.l.b16 %v1040
      %v1221 = vunpack.c.l.b16 %v1041
      %v1222 = vunpack.c.l.b16 %v1042
      %v1223 = vpack.c.b16 %v1160, %v1159
      %v1224 = vpack.c.b16 %v1162, %v1161
      %v1225 = vpack.c.b16 %v1164, %v1163
      %v1226 = vpack.c.b16 %v1166, %v1165
      %v1227 = vpack.c.b16 %v1168, %v1167
      %v1228 = vpack.c.b16 %v1170, %v1169
      %v1229 = vpack.c.b16 %v1172, %v1171
      %v1230 = vpack.c.b16 %v1174, %v1173
      %v1231 = vpack.c.b16 %v1176, %v1175
      %v1232 = vpack.c.b16 %v1178, %v1177
      %v1233 = vpack.c.b16 %v1180, %v1179
      %v1234 = vpack.c.b16 %v1182, %v1181
      %v1235 = vpack.c.b16 %v1184, %v1183
      %v1236 = vpack.c.b16 %v1186, %v1185
      %v1237 = vpack.c.b16 %v1188, %v1187
      %v1238 = vpack.c.b16 %v1190, %v1189
      %v1239 = vpack.c.b16 %v1192, %v1191
      %v1240 = vpack.c.b16 %v1194, %v1193
      %v1241 = vpack.c.b16 %v1196, %v1195
      %v1242 = vpack.c.b16 %v1198, %v1197
      %v1243 = vpack.c.b16 %v1200, %v1199
      %v1244 = vpack.c.b16 %v1202, %v1201
      %v1245 = vpack.c.b16 %v1204, %v1203
      %v1246 = vpack.c.b16 %v1206, %v1205
      %v1247 = vpack.c.b16 %v1208, %v1207
      %v1248 = vpack.c.b16 %v1210, %v1209
      %v1249 = vpack.c.b16 %v1212, %v1211
      %v1250 = vpack.c.b16 %v1214, %v1213
      %v1251 = vpack.c.b16 %v1216, %v1215
      %v1252 = vpack.c.b16 %v1218, %v1217
      %v1253 = vpack.c.b16 %v1220, %v1219
      %v1254 = vpack.c.b16 %v1222, %v1221
      %1287 = vmatprep.subr.bf16.mxu0 0
      %1288 = vmatpush1.bf16.msra.mxu0 %v1223
      %1289 = vmatprep.subr.bf16.mxu0 0
      %1290 = vmatpush1.bf16.msra.mxu0 %v1224
      %1291 = vmatprep.subr.bf16.mxu0 0
      %1292 = vmatpush1.bf16.msra.mxu0 %v1225
      %1293 = vmatprep.subr.bf16.mxu0 0
      %1294 = vmatpush1.bf16.msra.mxu0 %v1226
      %1295 = vmatprep.subr.bf16.mxu0 0
      %1296 = vmatpush1.bf16.msra.mxu0 %v1227
      %1297 = vmatprep.subr.bf16.mxu0 0
      %1298 = vmatpush1.bf16.msra.mxu0 %v1228
      %1299 = vmatprep.subr.bf16.mxu0 0
      %1300 = vmatpush1.bf16.msra.mxu0 %v1229
      %1301 = vmatprep.subr.bf16.mxu0 0
      %1302 = vmatpush1.bf16.msra.mxu0 %v1230
      %1303 = vmatprep.subr.bf16.mxu0 0
      %1304 = vmatpush1.bf16.msra.mxu0 %v1231
      %1305 = vmatprep.subr.bf16.mxu0 0
      %1306 = vmatpush1.bf16.msra.mxu0 %v1232
      %1307 = vmatprep.subr.bf16.mxu0 0
      %1308 = vmatpush1.bf16.msra.mxu0 %v1233
      %1309 = vmatprep.subr.bf16.mxu0 0
      %1310 = vmatpush1.bf16.msra.mxu0 %v1234
      %1311 = vmatprep.subr.bf16.mxu0 0
      %1312 = vmatpush1.bf16.msra.mxu0 %v1235
      %1313 = vmatprep.subr.bf16.mxu0 0
      %1314 = vmatpush1.bf16.msra.mxu0 %v1236
      %1315 = vmatprep.subr.bf16.mxu0 0
      %1316 = vmatpush1.bf16.msra.mxu0 %v1237
      %1317 = vmatprep.subr.bf16.mxu0 0
      %1318 = vmatpush1.bf16.msra.mxu0 %v1238
      %1319 = vmatprep.mubr.bf16.mxu0 %v1074
      %1320 = vmatmul.mubr.bf16.gmra.mrb[0].mxu0 %v1066
      %v1321 = vpop.f32.mrb[0].mxu0
      %v1322 = vadd.f32 0.0, %v1321
      %v1323 = vpop.f32.mrb[0].mxu0
      %v1324 = vpop.f32.mrb[0].mxu0
      %v1325 = vpop.f32.mrb[0].mxu0
      %1326 = vdwg.mxu0
      %1327 = vmatprep.subr.bf16.mxu0 0
      %1328 = vmatpush1.bf16.msra.mxu0 %v1239
      %1329 = vmatprep.subr.bf16.mxu0 0
      %1330 = vmatpush1.bf16.msra.mxu0 %v1240
      %1331 = vmatprep.subr.bf16.mxu0 0
      %1332 = vmatpush1.bf16.msra.mxu0 %v1241
      %1333 = vmatprep.subr.bf16.mxu0 0
      %1334 = vmatpush1.bf16.msra.mxu0 %v1242
      %1335 = vmatprep.subr.bf16.mxu0 0
      %1336 = vmatpush1.bf16.msra.mxu0 %v1243
      %1337 = vmatprep.subr.bf16.mxu0 0
      %1338 = vmatpush1.bf16.msra.mxu0 %v1244
      %1339 = vmatprep.subr.bf16.mxu0 0
      %1340 = vmatpush1.bf16.msra.mxu0 %v1245
      %1341 = vmatprep.subr.bf16.mxu0 0
      %1342 = vmatpush1.bf16.msra.mxu0 %v1246
      %1343 = vmatprep.subr.bf16.mxu0 0
      %1344 = vmatpush1.bf16.msra.mxu0 %v1247
      %1345 = vmatprep.subr.bf16.mxu0 0
      %1346 = vmatpush1.bf16.msra.mxu0 %v1248
      %1347 = vmatprep.subr.bf16.mxu0 0
      %1348 = vmatpush1.bf16.msra.mxu0 %v1249
      %1349 = vmatprep.subr.bf16.mxu0 0
      %1350 = vmatpush1.bf16.msra.mxu0 %v1250
      %1351 = vmatprep.subr.bf16.mxu0 0
      %1352 = vmatpush1.bf16.msra.mxu0 %v1251
      %1353 = vmatprep.subr.bf16.mxu0 0
      %1354 = vmatpush1.bf16.msra.mxu0 %v1252
      %1355 = vmatprep.subr.bf16.mxu0 0
      %1356 = vmatpush1.bf16.msra.mxu0 %v1253
      %1357 = vmatprep.subr.bf16.mxu0 0
      %1358 = vmatpush1.bf16.msra.mxu0 %v1254
      %1359 = vmatprep.mubr.bf16.mxu0 %v1090
      %1360 = vmatmul.mubr.bf16.gmra.mrb[0].mxu0 %v1082
      %v1361 = vpop.f32.mrb[0].mxu0
      %v1362 = vadd.f32 %v1322, %v1361
      %v1363 = vpop.f32.mrb[0].mxu0
      %v1364 = vpop.f32.mrb[0].mxu0
      %v1365 = vpop.f32.mrb[0].mxu0
      %1366 = vdwg.mxu0
      %v1367 = vadd.f32 %v969, %v1362
      %v1368 = vld [vmem:[%s229] sm:$0xcc]
      %v1369 = vld [vmem:[%s229 + $0x8] sm:$0xcc]
      %s1370 = scalar_lea.vmem %s1, 768
      %v1371 = vld [vmem:[%s1370] sm:$0xf]
      %v1372 = vld [vmem:[%s1370 + $0x4] sm:$0xf]
      %v1373 = vld [vmem:[%s1370 + $0x8] sm:$0xf]
      %v1374 = vld [vmem:[%s1370 + $0xc] sm:$0xf]
      %v1375 = vld [vmem:[%s1370 + $0x10] sm:$0xf]
      %v1376 = vld [vmem:[%s1370 + $0x14] sm:$0xf]
      %v1377 = vld [vmem:[%s1370 + $0x18] sm:$0xf]
      %v1378 = vld [vmem:[%s1370 + $0x1c] sm:$0xf]
      %v1379 = vld [vmem:[%s1370 + $0x20] sm:$0xf]
      %v1380 = vld [vmem:[%s1370 + $0x24] sm:$0xf]
      %v1381 = vld [vmem:[%s1370 + $0x28] sm:$0xf]
      %v1382 = vld [vmem:[%s1370 + $0x2c] sm:$0xf]
      %v1383 = vld [vmem:[%s1370 + $0x30] sm:$0xf]
      %v1384 = vld [vmem:[%s1370 + $0x34] sm:$0xf]
      %v1385 = vld [vmem:[%s1370 + $0x38] sm:$0xf]
      %v1386 = vld [vmem:[%s1370 + $0x3c] sm:$0xf]
      %v1387 = vld [vmem:[%s1370 + $0x40] sm:$0xf]
      %v1388 = vld [vmem:[%s1370 + $0x44] sm:$0xf]
      %v1389 = vld [vmem:[%s1370 + $0x48] sm:$0xf]
      %v1390 = vld [vmem:[%s1370 + $0x4c] sm:$0xf]
      %v1391 = vld [vmem:[%s1370 + $0x50] sm:$0xf]
      %v1392 = vld [vmem:[%s1370 + $0x54] sm:$0xf]
      %v1393 = vld [vmem:[%s1370 + $0x58] sm:$0xf]
      %v1394 = vld [vmem:[%s1370 + $0x5c] sm:$0xf]
      %v1395 = vld [vmem:[%s1370 + $0x60] sm:$0xf]
      %v1396 = vld [vmem:[%s1370 + $0x64] sm:$0xf]
      %v1397 = vld [vmem:[%s1370 + $0x68] sm:$0xf]
      %v1398 = vld [vmem:[%s1370 + $0x6c] sm:$0xf]
      %v1399 = vld [vmem:[%s1370 + $0x70] sm:$0xf]
      %v1400 = vld [vmem:[%s1370 + $0x74] sm:$0xf]
      %v1401 = vld [vmem:[%s1370 + $0x78] sm:$0xf]
      %v1402 = vld [vmem:[%s1370 + $0x7c] sm:$0xf]
      %v1403 = vld [vmem:[%s1370 + $0x80] sm:$0xf]
      %v1404 = vld [vmem:[%s1370 + $0x84] sm:$0xf]
      %v1405 = vld [vmem:[%s1370 + $0x88] sm:$0xf]
      %v1406 = vld [vmem:[%s1370 + $0x8c] sm:$0xf]
      %v1407 = vld [vmem:[%s1370 + $0x90] sm:$0xf]
      %v1408 = vld [vmem:[%s1370 + $0x94] sm:$0xf]
      %v1409 = vld [vmem:[%s1370 + $0x98] sm:$0xf]
      %v1410 = vld [vmem:[%s1370 + $0x9c] sm:$0xf]
      %v1411 = vld [vmem:[%s1370 + $0xa0] sm:$0xf]
      %v1412 = vld [vmem:[%s1370 + $0xa4] sm:$0xf]
      %v1413 = vld [vmem:[%s1370 + $0xa8] sm:$0xf]
      %v1414 = vld [vmem:[%s1370 + $0xac] sm:$0xf]
      %v1415 = vld [vmem:[%s1370 + $0xb0] sm:$0xf]
      %v1416 = vld [vmem:[%s1370 + $0xb4] sm:$0xf]
      %v1417 = vld [vmem:[%s1370 + $0xb8] sm:$0xf]
      %v1418 = vld [vmem:[%s1370 + $0xbc] sm:$0xf]
      %v1419 = vld [vmem:[%s1370 + $0xc0] sm:$0xf]
      %v1420 = vld [vmem:[%s1370 + $0xc4] sm:$0xf]
      %v1421 = vld [vmem:[%s1370 + $0xc8] sm:$0xf]
      %v1422 = vld [vmem:[%s1370 + $0xcc] sm:$0xf]
      %v1423 = vld [vmem:[%s1370 + $0xd0] sm:$0xf]
      %v1424 = vld [vmem:[%s1370 + $0xd4] sm:$0xf]
      %v1425 = vld [vmem:[%s1370 + $0xd8] sm:$0xf]
      %v1426 = vld [vmem:[%s1370 + $0xdc] sm:$0xf]
      %v1427 = vld [vmem:[%s1370 + $0xe0] sm:$0xf]
      %v1428 = vld [vmem:[%s1370 + $0xe4] sm:$0xf]
      %v1429 = vld [vmem:[%s1370 + $0xe8] sm:$0xf]
      %v1430 = vld [vmem:[%s1370 + $0xec] sm:$0xf]
      %v1431 = vld [vmem:[%s1370 + $0xf0] sm:$0xf]
      %v1432 = vld [vmem:[%s1370 + $0xf4] sm:$0xf]
      %v1433 = vld [vmem:[%s1370 + $0xf8] sm:$0xf]
      %v1434 = vld [vmem:[%s1370 + $0xfc] sm:$0xf]
      %v1437 = vunpack.c.l.b16 %v1368
      %v1438 = vunpack.c.h.b16 %v1368
      %v1439 = vunpack.c.l.b16 %v1369
      %v1440 = vunpack.c.h.b16 %v1369
      %v1441 = vpack.c.b16 %v1051, %v1437
      %v1442 = vpack.c.b16 %v1052, %v1438
      %v1443 = vpack.c.b16 %v1053, %v1439
      %v1444 = vpack.c.b16 %v1054, %v1440
      %v1445 = vrot.slane %v1441, 2
      %v1446 = vrot.slane %v1442, 2
      %v1447 = vrot.slane %v1443, 2
      %v1448 = vrot.slane %v1444, 2
      %v1517 = vunpack.c.l.b16 %v1371
      %v1518 = vunpack.c.l.b16 %v1372
      %v1519 = vunpack.c.l.b16 %v1373
      %v1520 = vunpack.c.l.b16 %v1374
      %v1521 = vunpack.c.l.b16 %v1375
      %v1522 = vunpack.c.l.b16 %v1376
      %v1523 = vunpack.c.l.b16 %v1377
      %v1524 = vunpack.c.l.b16 %v1378
      %v1525 = vunpack.c.l.b16 %v1379
      %v1526 = vunpack.c.l.b16 %v1380
      %v1527 = vunpack.c.l.b16 %v1381
      %v1528 = vunpack.c.l.b16 %v1382
      %v1529 = vunpack.c.l.b16 %v1383
      %v1530 = vunpack.c.l.b16 %v1384
      %v1531 = vunpack.c.l.b16 %v1385
      %v1532 = vunpack.c.l.b16 %v1386
      %v1533 = vunpack.c.l.b16 %v1387
      %v1534 = vunpack.c.l.b16 %v1388
      %v1535 = vunpack.c.l.b16 %v1389
      %v1536 = vunpack.c.l.b16 %v1390
      %v1537 = vunpack.c.l.b16 %v1391
      %v1538 = vunpack.c.l.b16 %v1392
      %v1539 = vunpack.c.l.b16 %v1393
      %v1540 = vunpack.c.l.b16 %v1394
      %v1541 = vunpack.c.l.b16 %v1395
      %v1542 = vunpack.c.l.b16 %v1396
      %v1543 = vunpack.c.l.b16 %v1397
      %v1544 = vunpack.c.l.b16 %v1398
      %v1545 = vunpack.c.l.b16 %v1399
      %v1546 = vunpack.c.l.b16 %v1400
      %v1547 = vunpack.c.l.b16 %v1401
      %v1548 = vunpack.c.l.b16 %v1402
      %v1549 = vunpack.c.l.b16 %v1403
      %v1550 = vunpack.c.l.b16 %v1404
      %v1551 = vunpack.c.l.b16 %v1405
      %v1552 = vunpack.c.l.b16 %v1406
      %v1553 = vunpack.c.l.b16 %v1407
      %v1554 = vunpack.c.l.b16 %v1408
      %v1555 = vunpack.c.l.b16 %v1409
      %v1556 = vunpack.c.l.b16 %v1410
      %v1557 = vunpack.c.l.b16 %v1411
      %v1558 = vunpack.c.l.b16 %v1412
      %v1559 = vunpack.c.l.b16 %v1413
      %v1560 = vunpack.c.l.b16 %v1414
      %v1561 = vunpack.c.l.b16 %v1415
      %v1562 = vunpack.c.l.b16 %v1416
      %v1563 = vunpack.c.l.b16 %v1417
      %v1564 = vunpack.c.l.b16 %v1418
      %v1565 = vunpack.c.l.b16 %v1419
      %v1566 = vunpack.c.l.b16 %v1420
      %v1567 = vunpack.c.l.b16 %v1421
      %v1568 = vunpack.c.l.b16 %v1422
      %v1569 = vunpack.c.l.b16 %v1423
      %v1570 = vunpack.c.l.b16 %v1424
      %v1571 = vunpack.c.l.b16 %v1425
      %v1572 = vunpack.c.l.b16 %v1426
      %v1573 = vunpack.c.l.b16 %v1427
      %v1574 = vunpack.c.l.b16 %v1428
      %v1575 = vunpack.c.l.b16 %v1429
      %v1576 = vunpack.c.l.b16 %v1430
      %v1577 = vunpack.c.l.b16 %v1431
      %v1578 = vunpack.c.l.b16 %v1432
      %v1579 = vunpack.c.l.b16 %v1433
      %v1580 = vunpack.c.l.b16 %v1434
      %v1581 = vpack.c.b16 %v1518, %v1517
      %v1582 = vpack.c.b16 %v1520, %v1519
      %v1583 = vpack.c.b16 %v1522, %v1521
      %v1584 = vpack.c.b16 %v1524, %v1523
      %v1585 = vpack.c.b16 %v1526, %v1525
      %v1586 = vpack.c.b16 %v1528, %v1527
      %v1587 = vpack.c.b16 %v1530, %v1529
      %v1588 = vpack.c.b16 %v1532, %v1531
      %v1589 = vpack.c.b16 %v1534, %v1533
      %v1590 = vpack.c.b16 %v1536, %v1535
      %v1591 = vpack.c.b16 %v1538, %v1537
      %v1592 = vpack.c.b16 %v1540, %v1539
      %v1593 = vpack.c.b16 %v1542, %v1541
      %v1594 = vpack.c.b16 %v1544, %v1543
      %v1595 = vpack.c.b16 %v1546, %v1545
      %v1596 = vpack.c.b16 %v1548, %v1547
      %v1597 = vpack.c.b16 %v1550, %v1549
      %v1598 = vpack.c.b16 %v1552, %v1551
      %v1599 = vpack.c.b16 %v1554, %v1553
      %v1600 = vpack.c.b16 %v1556, %v1555
      %v1601 = vpack.c.b16 %v1558, %v1557
      %v1602 = vpack.c.b16 %v1560, %v1559
      %v1603 = vpack.c.b16 %v1562, %v1561
      %v1604 = vpack.c.b16 %v1564, %v1563
      %v1605 = vpack.c.b16 %v1566, %v1565
      %v1606 = vpack.c.b16 %v1568, %v1567
      %v1607 = vpack.c.b16 %v1570, %v1569
      %v1608 = vpack.c.b16 %v1572, %v1571
      %v1609 = vpack.c.b16 %v1574, %v1573
      %v1610 = vpack.c.b16 %v1576, %v1575
      %v1611 = vpack.c.b16 %v1578, %v1577
      %v1612 = vpack.c.b16 %v1580, %v1579
      %1645 = vmatprep.subr.bf16.mxu0 0
      %1646 = vmatpush1.bf16.msra.mxu0 %v1581
      %1647 = vmatprep.subr.bf16.mxu0 0
      %1648 = vmatpush1.bf16.msra.mxu0 %v1582
      %1649 = vmatprep.subr.bf16.mxu0 0
      %1650 = vmatpush1.bf16.msra.mxu0 %v1583
      %1651 = vmatprep.subr.bf16.mxu0 0
      %1652 = vmatpush1.bf16.msra.mxu0 %v1584
      %1653 = vmatprep.subr.bf16.mxu0 0
      %1654 = vmatpush1.bf16.msra.mxu0 %v1585
      %1655 = vmatprep.subr.bf16.mxu0 0
      %1656 = vmatpush1.bf16.msra.mxu0 %v1586
      %1657 = vmatprep.subr.bf16.mxu0 0
      %1658 = vmatpush1.bf16.msra.mxu0 %v1587
      %1659 = vmatprep.subr.bf16.mxu0 0
      %1660 = vmatpush1.bf16.msra.mxu0 %v1588
      %1661 = vmatprep.subr.bf16.mxu0 0
      %1662 = vmatpush1.bf16.msra.mxu0 %v1589
      %1663 = vmatprep.subr.bf16.mxu0 0
      %1664 = vmatpush1.bf16.msra.mxu0 %v1590
      %1665 = vmatprep.subr.bf16.mxu0 0
      %1666 = vmatpush1.bf16.msra.mxu0 %v1591
      %1667 = vmatprep.subr.bf16.mxu0 0
      %1668 = vmatpush1.bf16.msra.mxu0 %v1592
      %1669 = vmatprep.subr.bf16.mxu0 0
      %1670 = vmatpush1.bf16.msra.mxu0 %v1593
      %1671 = vmatprep.subr.bf16.mxu0 0
      %1672 = vmatpush1.bf16.msra.mxu0 %v1594
      %1673 = vmatprep.subr.bf16.mxu0 0
      %1674 = vmatpush1.bf16.msra.mxu0 %v1595
      %1675 = vmatprep.subr.bf16.mxu0 0
      %1676 = vmatpush1.bf16.msra.mxu0 %v1596
      %1677 = vmatprep.mubr.bf16.mxu0 %v1446
      %1678 = vmatmul.mubr.bf16.gmra.mrb[0].mxu0 %v1445
      %v1679 = vpop.f32.mrb[0].mxu0
      %v1680 = vadd.f32 0.0, %v1679
      %v1681 = vpop.f32.mrb[0].mxu0
      %v1682 = vpop.f32.mrb[0].mxu0
      %v1683 = vpop.f32.mrb[0].mxu0
      %1684 = vdwg.mxu0
      %1685 = vmatprep.subr.bf16.mxu0 0
      %1686 = vmatpush1.bf16.msra.mxu0 %v1597
      %1687 = vmatprep.subr.bf16.mxu0 0
      %1688 = vmatpush1.bf16.msra.mxu0 %v1598
      %1689 = vmatprep.subr.bf16.mxu0 0
      %1690 = vmatpush1.bf16.msra.mxu0 %v1599
      %1691 = vmatprep.subr.bf16.mxu0 0
      %1692 = vmatpush1.bf16.msra.mxu0 %v1600
      %1693 = vmatprep.subr.bf16.mxu0 0
      %1694 = vmatpush1.bf16.msra.mxu0 %v1601
      %1695 = vmatprep.subr.bf16.mxu0 0
      %1696 = vmatpush1.bf16.msra.mxu0 %v1602
      %1697 = vmatprep.subr.bf16.mxu0 0
      %1698 = vmatpush1.bf16.msra.mxu0 %v1603
      %1699 = vmatprep.subr.bf16.mxu0 0
      %1700 = vmatpush1.bf16.msra.mxu0 %v1604
      %1701 = vmatprep.subr.bf16.mxu0 0
      %1702 = vmatpush1.bf16.msra.mxu0 %v1605
      %1703 = vmatprep.subr.bf16.mxu0 0
      %1704 = vmatpush1.bf16.msra.mxu0 %v1606
      %1705 = vmatprep.subr.bf16.mxu0 0
      %1706 = vmatpush1.bf16.msra.mxu0 %v1607
      %1707 = vmatprep.subr.bf16.mxu0 0
      %1708 = vmatpush1.bf16.msra.mxu0 %v1608
      %1709 = vmatprep.subr.bf16.mxu0 0
      %1710 = vmatpush1.bf16.msra.mxu0 %v1609
      %1711 = vmatprep.subr.bf16.mxu0 0
      %1712 = vmatpush1.bf16.msra.mxu0 %v1610
      %1713 = vmatprep.subr.bf16.mxu0 0
      %1714 = vmatpush1.bf16.msra.mxu0 %v1611
      %1715 = vmatprep.subr.bf16.mxu0 0
      %1716 = vmatpush1.bf16.msra.mxu0 %v1612
      %1717 = vmatprep.mubr.bf16.mxu0 %v1448
      %1718 = vmatmul.mubr.bf16.gmra.mrb[0].mxu0 %v1447
      %v1719 = vpop.f32.mrb[0].mxu0
      %v1720 = vadd.f32 %v1680, %v1719
      %v1721 = vpop.f32.mrb[0].mxu0
      %v1722 = vpop.f32.mrb[0].mxu0
      %v1723 = vpop.f32.mrb[0].mxu0
      %1724 = vdwg.mxu0
      %v1725 = vadd.f32 %v1367, %v1720
      %v1726 = vpack.c.bf16 %v1725, %v1725
      %1727 = vst [vmem:[%s233] sm:$0x7] %v1726
      %v1728 = vld [vmem:[%s2] sm:$0x3f]
      %1730 = vset.pattern.permute.xlu0 0
      %1731 = vperm.xlu0 %1730, %v1728
      %v1732 = vpop.permute.xlu0 %1731
      %v1734 = vmul.f32 %v1725, %v1732
      %vm1735 = vcmask 1045504
      %v1736 = vsel %vm1735, %v1734, 0.0
      %v1737 = vrot.slane %v1736, 4
      %v1738 = vadd.f32 %v1736, %v1737
      %v1739 = vrot.slane %v1738, 2
      %v1740 = vadd.f32 %v1738, %v1739
      %v1741 = vrot.slane %v1740, 1
      %v1742 = vadd.f32 %v1740, %v1741
      %v1743 = vmul.f32 %v1734, %v1725
      %v1744 = vsel %vm1735, %v1743, 0.0
      %v1745 = vrot.slane %v1744, 4
      %v1746 = vadd.f32 %v1744, %v1745
      %v1747 = vrot.slane %v1746, 2
      %v1748 = vadd.f32 %v1746, %v1747
      %v1749 = vrot.slane %v1748, 1
      %v1750 = vadd.f32 %v1748, %v1749
      %1751 = vst [vmem:[%s236] sm:$0x1] %v1742
      %1752 = vst [vmem:[%s239] sm:$0x1] %v1750
      %p1753 = scmp.lt.s32.totalorder %s17, 1
      %s1754 = scalar_select %p1753, %s17, 1
      %s1755 = smul.addr %s1754, 4
      %s1756 = scalar_lea.vmem %s3, %s1755
      %p1757 = scmp.lt.s32.totalorder %s17, 1
      %s1758 = scalar_select %p1757, %s17, 1
      %s1759 = scalar_lea.vmem %s4, %s1758
      %p1760 = scmp.lt.s32.totalorder %s17, 1
      %s1761 = scalar_select %p1760, %s17, 1
      %s1762 = scalar_lea.vmem %s5, %s1761
      // Predicated region
      $region33: #{feature_extractor.8} parent=31 // pred_check
        %p1763 = pneg %p103
      $region34: #{feature_extractor.8} parent=31 // pred_check_branch
        %1765 = sbr.rel (%p1763) target = $region36
      $region35: #{feature_extractor.8} parent=31 // pred_region
        _
      $region36: #{feature_extractor.8} parent=31 // pred_fallthru
        _
      // Predicated region
      $region37: #{feature_extractor.8} parent=31 // pred_check
        %p1766 = pneg %p129
      $region38: #{feature_extractor.8} parent=31 // pred_check_branch
        %1768 = sbr.rel (%p1766) target = $region40
      $region39: #{feature_extractor.8} parent=31 // pred_region
        _
      $region40: #{feature_extractor.8} parent=31 // pred_fallthru
        _
      // Predicated region
      $region41: #{feature_extractor.8} parent=31 // pred_check
        %p1769 = pneg %p155
      $region42: #{feature_extractor.8} parent=31 // pred_check_branch
        %1771 = sbr.rel (%p1769) target = $region44
      $region43: #{feature_extractor.8} parent=31 // pred_region
        _
      $region44: #{feature_extractor.8} parent=31 // pred_fallthru
        _
    $region32: #{feature_extractor.8} parent=5 // pred_fallthru
      _
    %p1772 = scmp.le.s32.totalorder 2, %s12
    // Predicated region
    $region45: #{feature_extractor.8} parent=5 // pred_check
      %p1773 = pneg %p1772
    $region46: #{feature_extractor.8} parent=5 // pred_check_branch
      %1775 = sbr.rel (%p1773) target = $region48
    $region47: #{feature_extractor.8} parent=5 // pred_region
      %s1776 = ssub.s32 %s12, 2
      // Predicated region
      $region49: #{feature_extractor.8} parent=47 // pred_check
        %p1777 = pneg %p109
      $region50: #{feature_extractor.8} parent=47 // pred_check_branch
        %1779 = sbr.rel (%p1777) target = $region52
      $region51: #{feature_extractor.8} parent=47 // pred_region
        %p1780 = scmp.lt.s32.totalorder %s18, 1
        %s1781 = scalar_select %p1780, %s18, 1
        %s1782 = smul.addr %s1781, 4
        %s1783 = scalar_lea.vmem %s3, %s1782
      $region52: #{feature_extractor.8} parent=47 // pred_fallthru
        _
      // Predicated region
      $region53: #{feature_extractor.8} parent=47 // pred_check
        %p1784 = pneg %p135
      $region54: #{feature_extractor.8} parent=47 // pred_check_branch
        %1786 = sbr.rel (%p1784) target = $region56
      $region55: #{feature_extractor.8} parent=47 // pred_region
        %p1787 = scmp.lt.s32.totalorder %s18, 1
        %s1788 = scalar_select %p1787, %s18, 1
        %s1789 = scalar_lea.vmem %s4, %s1788
      $region56: #{feature_extractor.8} parent=47 // pred_fallthru
        _
      // Predicated region
      $region57: #{feature_extractor.8} parent=47 // pred_check
        %p1790 = pneg %p161
      $region58: #{feature_extractor.8} parent=47 // pred_check_branch
        %1792 = sbr.rel (%p1790) target = $region60
      $region59: #{feature_extractor.8} parent=47 // pred_region
        %p1793 = scmp.lt.s32.totalorder %s18, 1
        %s1794 = scalar_select %p1793, %s18, 1
        %s1795 = scalar_lea.vmem %s5, %s1794
      $region60: #{feature_extractor.8} parent=47 // pred_fallthru
        _
    $region48: #{feature_extractor.8} parent=5 // pred_fallthru
      _
  $region6: #{feature_extractor.8} parent=0 // loop_footer
    %s16 = sadd.s32 1, %s12
  $region7: #{feature_extractor.8} parent=0 // loop_footer_branch
    %11 = sbr.rel target = $region3
  $region8: #{feature_extractor.8} parent=0 // loop_exit
    _

</llo_original>
